<compile_context>
chip_gen: v7x
topology: tpu7x:2x2x1
jax: 0.10.0
libtpu: 0.0.40
codegen_flags: <defaults>
</compile_context>

<pallas_src>
import functools

import jax
import jax.numpy as jnp
from jax.experimental import pallas as pl
from jax.experimental.pallas import tpu as pltpu


def _round_up(x, m):
    return (x + m - 1) // m * m


# ----------------------------------------------------------------------------
# Kernel
# ----------------------------------------------------------------------------
def _vae_kernel(max_action, latent_pad, state_pad,
                sa_ref, noise_ref,
                e1w_ref, e1b_ref,
                e2w_ref, e2b_ref,
                hw_ref, hb_ref,
                d1w_ref, d1b_ref,
                d2w_ref, d2b_ref,
                d3w_ref, d3b_ref,
                u_ref, meanstd_ref,
                sz_ref):
    bf16 = jnp.bfloat16
    f32 = jnp.float32

    sa = sa_ref[...]            # (bb, 256) bf16: state in [:, :128], action in [:, 128:]
    noise = noise_ref[...]      # (bb, 128) f32 padded N(0,1) noise

    # --- encoder: relu(e1([s; a])), relu(e2(.)) --- one K=256 matmul
    h = jnp.dot(sa, e1w_ref[...], preferred_element_type=f32) + e1b_ref[...]
    h = jnp.maximum(h, 0.0).astype(bf16)

    h = jnp.dot(h, e2w_ref[...], preferred_element_type=f32) + e2b_ref[...]
    h = jnp.maximum(h, 0.0).astype(bf16)

    # --- fused mean / log_std head: one (768, 256) matmul, tile-aligned split ---
    head = jnp.dot(h, hw_ref[...], preferred_element_type=f32) + hb_ref[...]
    mean = head[:, :latent_pad]                          # (bb, 128)
    log_std = jnp.clip(head[:, latent_pad:], -4.0, 15.0)
    std = jnp.exp(log_std)                               # padded cols -> exp(0)=1

    # reparameterization: z = mean + std * N(0, 1); padded noise cols are 0.
    z = (mean + std * noise).astype(bf16)

    # --- decoder: relu(d1([s; z])), relu(d2(.)), max_action * tanh(d3(.)) ---
    # build [s; z] in a (bb, 256) bf16 scratch (both stores are 128-lane aligned)
    sz_ref[:, :state_pad] = sa[:, :state_pad]
    sz_ref[:, state_pad:] = z
    d = jnp.dot(sz_ref[...], d1w_ref[...], preferred_element_type=f32) + d1b_ref[...]
    d = jnp.maximum(d, 0.0).astype(bf16)

    d = jnp.dot(d, d2w_ref[...], preferred_element_type=f32) + d2b_ref[...]
    d = jnp.maximum(d, 0.0).astype(bf16)

    out = jnp.dot(d, d3w_ref[...], preferred_element_type=f32) + d3b_ref[...]
    u_ref[...] = max_action * jnp.tanh(out)              # lane-dense (bb, 128)

    # fused (bb, 256) output slab: mean in [:, :128], std in [:, 128:]
    meanstd_ref[:, :latent_pad] = mean
    meanstd_ref[:, latent_pad:] = std


# ----------------------------------------------------------------------------
# Parameter construction (PyTorch-Linear-style logical params)
# ----------------------------------------------------------------------------
def init_params(key, state_dim, action_dim, latent_dim, hidden=750):
    """Deterministic PyTorch-Linear-style init (uniform +-1/sqrt(fan_in))."""
    def linear(k, fan_in, fan_out):
        kw, kb = jax.random.split(k)
        bound = 1.0 / jnp.sqrt(fan_in)
        w = jax.random.uniform(kw, (fan_in, fan_out), jnp.float32, -bound, bound)
        b = jax.random.uniform(kb, (1, fan_out), jnp.float32, -bound, bound)
        return w, b

    keys = jax.random.split(key, 7)
    e1_w, e1_b = linear(keys[0], state_dim + action_dim, hidden)
    e2_w, e2_b = linear(keys[1], hidden, hidden)
    mean_w, mean_b = linear(keys[2], hidden, latent_dim)
    logstd_w, logstd_b = linear(keys[3], hidden, latent_dim)
    d1_w, d1_b = linear(keys[4], state_dim + latent_dim, hidden)
    d2_w, d2_b = linear(keys[5], hidden, hidden)
    d3_w, d3_b = linear(keys[6], hidden, action_dim)

    return {
        # logical split of the concat matmuls (reference uses these directly)
        "e1_ws": e1_w[:state_dim], "e1_wa": e1_w[state_dim:], "e1_b": e1_b,
        "e2_w": e2_w, "e2_b": e2_b,
        "mean_w": mean_w, "mean_b": mean_b,
        "logstd_w": logstd_w, "logstd_b": logstd_b,
        "d1_ws": d1_w[:state_dim], "d1_wz": d1_w[state_dim:], "d1_b": d1_b,
        "d2_w": d2_w, "d2_b": d2_b,
        "d3_w": d3_w, "d3_b": d3_b,
    }


def pack_params(p, state_dim, action_dim, latent_dim, hidden=750):
    """Zero-pad params to TPU tiles, cast weights to bf16, fuse concats/heads."""
    SP = _round_up(state_dim, 128)      # 126 -> 128
    AP = _round_up(action_dim, 128)     # 8   -> 128
    LP = _round_up(latent_dim, 128)     # 16  -> 128
    HP = _round_up(hidden, 128)         # 750 -> 768

    bf16 = jnp.bfloat16
    f32 = jnp.float32

    # fused e1: rows [0:state_dim] = state weights, rows [SP:SP+action_dim] = action
    e1w = jnp.zeros((SP + AP, HP), f32)
    e1w = e1w.at[:state_dim, :hidden].set(p["e1_ws"])
    e1w = e1w.at[SP:SP + action_dim, :hidden].set(p["e1_wa"])
    e1b = jnp.zeros((1, HP), f32).at[:, :hidden].set(p["e1_b"])

    e2w = jnp.zeros((HP, HP), f32).at[:hidden, :hidden].set(p["e2_w"])
    e2b = jnp.zeros((1, HP), f32).at[:, :hidden].set(p["e2_b"])

    # fused mean / log_std head: (HP, 2*LP); mean cols [0:latent],
    # log_std cols [LP:LP+latent]; padded cols are zero.
    head_w = jnp.zeros((HP, 2 * LP), f32)
    head_w = head_w.at[:hidden, :latent_dim].set(p["mean_w"])
    head_w = head_w.at[:hidden, LP:LP + latent_dim].set(p["logstd_w"])
    head_b = jnp.zeros((1, 2 * LP), f32)
    head_b = head_b.at[:, :latent_dim].set(p["mean_b"])
    head_b = head_b.at[:, LP:LP + latent_dim].set(p["logstd_b"])

    # fused d1: rows [0:state_dim] = state weights, rows [SP:SP+latent_dim] = z
    d1w = jnp.zeros((SP + LP, HP), f32)
    d1w = d1w.at[:state_dim, :hidden].set(p["d1_ws"])
    d1w = d1w.at[SP:SP + latent_dim, :hidden].set(p["d1_wz"])
    d1b = jnp.zeros((1, HP), f32).at[:, :hidden].set(p["d1_b"])

    d2w = jnp.zeros((HP, HP), f32).at[:hidden, :hidden].set(p["d2_w"])
    d2b = jnp.zeros((1, HP), f32).at[:, :hidden].set(p["d2_b"])

    d3w = jnp.zeros((HP, AP), f32).at[:hidden, :action_dim].set(p["d3_w"])
    d3b = jnp.zeros((1, AP), f32).at[:, :action_dim].set(p["d3_b"])

    return {
        "e1_w": e1w.astype(bf16), "e1_b": e1b,
        "e2_w": e2w.astype(bf16), "e2_b": e2b,
        "head_w": head_w.astype(bf16), "head_b": head_b,
        "d1_w": d1w.astype(bf16), "d1_b": d1b,
        "d2_w": d2w.astype(bf16), "d2_b": d2b,
        "d3_w": d3w.astype(bf16), "d3_b": d3b,
    }


# ----------------------------------------------------------------------------
# Wrapper
# ----------------------------------------------------------------------------
def vae_forward(state, action, noise, packed, *, max_action,
                state_dim, action_dim, latent_dim):
    B = state.shape[0]
    SP = _round_up(state_dim, 128)
    AP_in = _round_up(action_dim, 128)
    LP = packed["head_w"].shape[1] // 2
    SAP = packed["e1_w"].shape[0]           # SP + AP_in
    SZP = packed["d1_w"].shape[0]           # SP + LP
    AP_out = packed["d3_w"].shape[1]

    # Batch tiling: amortize per-step overhead with a large tile, but for
    # B > 128 force >= 2 grid steps so "parallel" can use both v7x TensorCores.
    if B <= 128:
        bb = _round_up(B, 16)
    else:
        bb = min(512, _round_up((B + 1) // 2, 16))
    Bp = _round_up(B, bb)
    grid = (Bp // bb,)

    bf16 = jnp.bfloat16

    # fused, pre-cast [state; action] input slab (state at lanes 0, action at SP)
    sa_pad = jnp.zeros((Bp, SAP), bf16)
    sa_pad = sa_pad.at[:B, :state_dim].set(state.astype(bf16))
    sa_pad = sa_pad.at[:B, SP:SP + action_dim].set(action.astype(bf16))
    n_pad = jnp.pad(noise, ((0, Bp - B), (0, LP - latent_dim)))

    def stream_spec(width):
        return pl.BlockSpec((bb, width), lambda i: (i, 0))

    def resident_spec(arr):
        # constant index_map -> weights stay VMEM-resident; single-buffer them.
        try:
            return pl.BlockSpec(arr.shape, lambda i: (0, 0),
                                pipeline_mode=pl.Buffered(1))
        except (TypeError, AttributeError):   # older jax without pipeline_mode
            return pl.BlockSpec(arr.shape, lambda i: (0, 0))

    weight_names = ["e1_w", "e1_b", "e2_w", "e2_b", "head_w", "head_b",
                    "d1_w", "d1_b", "d2_w", "d2_b", "d3_w", "d3_b"]
    weights = [packed[n] for n in weight_names]

    in_specs = [stream_spec(SAP), stream_spec(LP)]
    in_specs += [resident_spec(w) for w in weights]

    out_specs = (stream_spec(AP_out), stream_spec(2 * LP))
    out_shape = (
        jax.ShapeDtypeStruct((Bp, AP_out), jnp.float32),   # u slab
        jax.ShapeDtypeStruct((Bp, 2 * LP), jnp.float32),   # [mean | std] slab
    )

    # weights ~3.7 MB (single-buffered) + streams + (bb, 768) f32 intermediates
    vmem_bytes = min(30 << 20, (8 << 20) + bb * (32 << 10))

    kernel = functools.partial(_vae_kernel, float(max_action), int(LP), int(SP))
    u_slab, ms_slab = pl.pallas_call(
        kernel,
        grid=grid,
        in_specs=in_specs,
        out_specs=out_specs,
        out_shape=out_shape,
        scratch_shapes=[pltpu.VMEM((bb, SZP), bf16)],
        compiler_params=pltpu.CompilerParams(
            dimension_semantics=("parallel",),
            vmem_limit_bytes=vmem_bytes,
        ),
    )(sa_pad, n_pad, *weights)

    u = u_slab[:B, :action_dim]
    mean = ms_slab[:B, :latent_dim]
    std = ms_slab[:B, LP:LP + latent_dim]
    return u, mean, std


# ----------------------------------------------------------------------------
# Pure-JAX reference with identical bf16 mixed-precision policy
# ----------------------------------------------------------------------------
def vae_reference(state, action, noise, p, *, max_action):
    bf16 = jnp.bfloat16
    f32 = jnp.float32

    def mm(x, w):
        return jnp.dot(x.astype(bf16), w.astype(bf16),
                       preferred_element_type=f32)

    h = jnp.maximum(mm(state, p["e1_ws"]) + mm(action, p["e1_wa"]) + p["e1_b"], 0.0)
    h = jnp.maximum(mm(h, p["e2_w"]) + p["e2_b"], 0.0)
    mean = mm(h, p["mean_w"]) + p["mean_b"]
    log_std = jnp.clip(mm(h, p["logstd_w"]) + p["logstd_b"], -4.0, 15.0)
    std = jnp.exp(log_std)
    z = mean + std * noise
    d = jnp.maximum(mm(state, p["d1_ws"]) + mm(z, p["d1_wz"]) + p["d1_b"], 0.0)
    d = jnp.maximum(mm(d, p["d2_w"]) + p["d2_b"], 0.0)
    u = max_action * jnp.tanh(mm(d, p["d3_w"]) + p["d3_b"])
    return u, mean, std


# ----------------------------------------------------------------------------
# Demo / correctness check
# ----------------------------------------------------------------------------
if __name__ == "__main__":
    state_dim = 126          # matches the module-level constant in BCQ.py
    action_dim = 8
    latent_dim = 2 * action_dim   # BCQ convention
    max_action = 1.0

    root = jax.random.PRNGKey(0)
    k_params, k_data = jax.random.split(root)
    params = init_params(k_params, state_dim, action_dim, latent_dim)
    packed = pack_params(params, state_dim, action_dim, latent_dim)

    def run_check(batch, key):
        ks, ka, kn = jax.random.split(key, 3)
        state = jax.random.normal(ks, (batch, state_dim), jnp.float32)
        action = jax.random.uniform(ka, (batch, action_dim), jnp.float32, -1.0, 1.0)
        noise = jax.random.normal(kn, (batch, latent_dim), jnp.float32)

        u, mean, std = vae_forward(state, action, noise, packed,
                                   max_action=max_action,
                                   state_dim=state_dim,
                                   action_dim=action_dim,
                                   latent_dim=latent_dim)
        jax.block_until_ready((u, mean, std))

        u_ref, mean_ref, std_ref = vae_reference(state, action, noise, params,
                                                 max_action=max_action)
        assert u.shape == (batch, action_dim)
        assert mean.shape == (batch, latent_dim)
        assert std.shape == (batch, latent_dim)
        assert jnp.allclose(u, u_ref, atol=5e-3, rtol=5e-3), \
            float(jnp.max(jnp.abs(u - u_ref)))
        assert jnp.allclose(mean, mean_ref, atol=5e-3, rtol=5e-3), \
            float(jnp.max(jnp.abs(mean - mean_ref)))
        assert jnp.allclose(std, std_ref, atol=1e-2, rtol=1e-2), \
            float(jnp.max(jnp.abs(std - std_ref)))

    k1, k2 = jax.random.split(k_data)
    run_check(8, k1)     # small batch, single grid step
    run_check(192, k2)   # multi-step grid path (bb=96, grid=2) with resident weights

    print("KERNEL_OK")
</pallas_src>

<mosaic_0001>
module attributes {stable_mosaic.version = 11 : i64} {
  func.func @_vae_kernel(%arg0: i32, %arg1: memref<16x256xbf16, #tpu.memory_space<vmem>>, %arg2: memref<16x128xf32, #tpu.memory_space<vmem>>, %arg3: memref<256x768xbf16, #tpu.memory_space<vmem>>, %arg4: memref<1x768xf32, #tpu.memory_space<vmem>>, %arg5: memref<768x768xbf16, #tpu.memory_space<vmem>>, %arg6: memref<1x768xf32, #tpu.memory_space<vmem>>, %arg7: memref<768x256xbf16, #tpu.memory_space<vmem>>, %arg8: memref<1x256xf32, #tpu.memory_space<vmem>>, %arg9: memref<256x768xbf16, #tpu.memory_space<vmem>>, %arg10: memref<1x768xf32, #tpu.memory_space<vmem>>, %arg11: memref<768x768xbf16, #tpu.memory_space<vmem>>, %arg12: memref<1x768xf32, #tpu.memory_space<vmem>>, %arg13: memref<768x128xbf16, #tpu.memory_space<vmem>>, %arg14: memref<1x128xf32, #tpu.memory_space<vmem>>, %arg15: memref<16x128xf32, #tpu.memory_space<vmem>>, %arg16: memref<16x256xf32, #tpu.memory_space<vmem>>, %arg17: memref<16x256xbf16, #tpu.memory_space<vmem>>) attributes {dimension_semantics = [#tpu.dimension_semantics<parallel>], iteration_bounds = array<i64: 1>, scalar_prefetch = 0 : i64, scratch_operands = 1 : i64, tpu.core_type = #tpu.core_type<tc>, window_params = [{transform_indices = @transform_0, window_bounds = array<i64: 16, 256>}, {transform_indices = @transform_1, window_bounds = array<i64: 16, 128>}, {pipeline_mode = #tpu.pipeline_mode<synchronous>, transform_indices = @transform_2, window_bounds = array<i64: 256, 768>}, {pipeline_mode = #tpu.pipeline_mode<synchronous>, transform_indices = @transform_3, window_bounds = array<i64: 1, 768>}, {pipeline_mode = #tpu.pipeline_mode<synchronous>, transform_indices = @transform_4, window_bounds = array<i64: 768, 768>}, {pipeline_mode = #tpu.pipeline_mode<synchronous>, transform_indices = @transform_5, window_bounds = array<i64: 1, 768>}, {pipeline_mode = #tpu.pipeline_mode<synchronous>, transform_indices = @transform_6, window_bounds = array<i64: 768, 256>}, {pipeline_mode = #tpu.pipeline_mode<synchronous>, transform_indices = @transform_7, window_bounds = array<i64: 1, 256>}, {pipeline_mode = #tpu.pipeline_mode<synchronous>, transform_indices = @transform_8, window_bounds = array<i64: 256, 768>}, {pipeline_mode = #tpu.pipeline_mode<synchronous>, transform_indices = @transform_9, window_bounds = array<i64: 1, 768>}, {pipeline_mode = #tpu.pipeline_mode<synchronous>, transform_indices = @transform_10, window_bounds = array<i64: 768, 768>}, {pipeline_mode = #tpu.pipeline_mode<synchronous>, transform_indices = @transform_11, window_bounds = array<i64: 1, 768>}, {pipeline_mode = #tpu.pipeline_mode<synchronous>, transform_indices = @transform_12, window_bounds = array<i64: 768, 128>}, {pipeline_mode = #tpu.pipeline_mode<synchronous>, transform_indices = @transform_13, window_bounds = array<i64: 1, 128>}, {transform_indices = @transform_14, window_bounds = array<i64: 16, 128>}, {transform_indices = @transform_15, window_bounds = array<i64: 16, 256>}]} {
    %c0 = arith.constant 0 : index
    %c0_0 = arith.constant 0 : index
    %0 = vector.load %arg1[%c0, %c0_0] : memref<16x256xbf16, #tpu.memory_space<vmem>>, vector<16x256xbf16>
    %c0_1 = arith.constant 0 : index
    %c0_2 = arith.constant 0 : index
    %1 = vector.load %arg2[%c0_1, %c0_2] : memref<16x128xf32, #tpu.memory_space<vmem>>, vector<16x128xf32>
    %c0_3 = arith.constant 0 : index
    %c0_4 = arith.constant 0 : index
    %2 = vector.load %arg3[%c0_3, %c0_4] : memref<256x768xbf16, #tpu.memory_space<vmem>>, vector<256x768xbf16>
    %cst = arith.constant dense<0.000000e+00> : vector<16x768xf32>
    %3 = tpu.matmul %0, %2, %cst {dimension_numbers = #tpu.dot_dimension_numbers<[1], [0], [0], [1], [0, 0, 1, 1], [], []>} : vector<16x256xbf16>, vector<256x768xbf16>, vector<16x768xf32> -> vector<16x768xf32>
    %c0_5 = arith.constant 0 : index
    %c0_6 = arith.constant 0 : index
    %4 = vector.load %arg4[%c0_5, %c0_6] : memref<1x768xf32, #tpu.memory_space<vmem>>, vector<1x768xf32>
    %5 = vector.broadcast %4 : vector<1x768xf32> to vector<16x768xf32>
    %6 = arith.addf %3, %5 : vector<16x768xf32>
    %cst_7 = arith.constant 0.000000e+00 : f32
    %7 = vector.broadcast %cst_7 : f32 to vector<16x768xf32>
    %8 = arith.maximumf %6, %7 : vector<16x768xf32>
    %9 = arith.truncf %8 : vector<16x768xf32> to vector<16x768xbf16>
    %c0_8 = arith.constant 0 : index
    %c0_9 = arith.constant 0 : index
    %10 = vector.load %arg5[%c0_8, %c0_9] : memref<768x768xbf16, #tpu.memory_space<vmem>>, vector<768x768xbf16>
    %cst_10 = arith.constant dense<0.000000e+00> : vector<16x768xf32>
    %11 = tpu.matmul %9, %10, %cst_10 {dimension_numbers = #tpu.dot_dimension_numbers<[1], [0], [0], [1], [0, 0, 1, 1], [], []>} : vector<16x768xbf16>, vector<768x768xbf16>, vector<16x768xf32> -> vector<16x768xf32>
    %c0_11 = arith.constant 0 : index
    %c0_12 = arith.constant 0 : index
    %12 = vector.load %arg6[%c0_11, %c0_12] : memref<1x768xf32, #tpu.memory_space<vmem>>, vector<1x768xf32>
    %13 = vector.broadcast %12 : vector<1x768xf32> to vector<16x768xf32>
    %14 = arith.addf %11, %13 : vector<16x768xf32>
    %cst_13 = arith.constant 0.000000e+00 : f32
    %15 = vector.broadcast %cst_13 : f32 to vector<16x768xf32>
    %16 = arith.maximumf %14, %15 : vector<16x768xf32>
    %17 = arith.truncf %16 : vector<16x768xf32> to vector<16x768xbf16>
    %c0_14 = arith.constant 0 : index
    %c0_15 = arith.constant 0 : index
    %18 = vector.load %arg7[%c0_14, %c0_15] : memref<768x256xbf16, #tpu.memory_space<vmem>>, vector<768x256xbf16>
    %cst_16 = arith.constant dense<0.000000e+00> : vector<16x256xf32>
    %19 = tpu.matmul %17, %18, %cst_16 {dimension_numbers = #tpu.dot_dimension_numbers<[1], [0], [0], [1], [0, 0, 1, 1], [], []>} : vector<16x768xbf16>, vector<768x256xbf16>, vector<16x256xf32> -> vector<16x256xf32>
    %c0_17 = arith.constant 0 : index
    %c0_18 = arith.constant 0 : index
    %20 = vector.load %arg8[%c0_17, %c0_18] : memref<1x256xf32, #tpu.memory_space<vmem>>, vector<1x256xf32>
    %21 = vector.broadcast %20 : vector<1x256xf32> to vector<16x256xf32>
    %22 = arith.addf %19, %21 : vector<16x256xf32>
    %23 = vector.extract_strided_slice %22 {offsets = [0, 0], sizes = [16, 128], strides = [1, 1]} : vector<16x256xf32> to vector<16x128xf32>
    %24 = vector.extract_strided_slice %22 {offsets = [0, 128], sizes = [16, 128], strides = [1, 1]} : vector<16x256xf32> to vector<16x128xf32>
    %cst_19 = arith.constant -4.000000e+00 : f32
    %cst_20 = arith.constant 1.500000e+01 : f32
    %25 = vector.broadcast %cst_19 : f32 to vector<16x128xf32>
    %26 = arith.maximumf %25, %24 : vector<16x128xf32>
    %27 = vector.broadcast %cst_20 : f32 to vector<16x128xf32>
    %28 = arith.minimumf %27, %26 : vector<16x128xf32>
    %29 = math.exp %28 : vector<16x128xf32>
    %30 = arith.mulf %29, %1 : vector<16x128xf32>
    %31 = arith.addf %23, %30 : vector<16x128xf32>
    %32 = arith.truncf %31 : vector<16x128xf32> to vector<16x128xbf16>
    %33 = vector.extract_strided_slice %0 {offsets = [0, 0], sizes = [16, 128], strides = [1, 1]} : vector<16x256xbf16> to vector<16x128xbf16>
    %c0_21 = arith.constant 0 : index
    %c0_22 = arith.constant 0 : index
    %34 = vector.load %arg17[%c0_21, %c0_22] : memref<16x256xbf16, #tpu.memory_space<vmem>>, vector<16x128xbf16>
    tpu.vector_store %arg17[%c0_21, %c0_22], %33 {strides = array<i32>} : memref<16x256xbf16, #tpu.memory_space<vmem>>, vector<16x128xbf16>,
    %c0_23 = arith.constant 0 : index
    %c128 = arith.constant 128 : index
    %35 = vector.load %arg17[%c0_23, %c128] : memref<16x256xbf16, #tpu.memory_space<vmem>>, vector<16x128xbf16>
    tpu.vector_store %arg17[%c0_23, %c128], %32 {strides = array<i32>} : memref<16x256xbf16, #tpu.memory_space<vmem>>, vector<16x128xbf16>,
    %c0_24 = arith.constant 0 : index
    %c0_25 = arith.constant 0 : index
    %36 = vector.load %arg17[%c0_24, %c0_25] : memref<16x256xbf16, #tpu.memory_space<vmem>>, vector<16x256xbf16>
    %c0_26 = arith.constant 0 : index
    %c0_27 = arith.constant 0 : index
    %37 = vector.load %arg9[%c0_26, %c0_27] : memref<256x768xbf16, #tpu.memory_space<vmem>>, vector<256x768xbf16>
    %cst_28 = arith.constant dense<0.000000e+00> : vector<16x768xf32>
    %38 = tpu.matmul %36, %37, %cst_28 {dimension_numbers = #tpu.dot_dimension_numbers<[1], [0], [0], [1], [0, 0, 1, 1], [], []>} : vector<16x256xbf16>, vector<256x768xbf16>, vector<16x768xf32> -> vector<16x768xf32>
    %c0_29 = arith.constant 0 : index
    %c0_30 = arith.constant 0 : index
    %39 = vector.load %arg10[%c0_29, %c0_30] : memref<1x768xf32, #tpu.memory_space<vmem>>, vector<1x768xf32>
    %40 = vector.broadcast %39 : vector<1x768xf32> to vector<16x768xf32>
    %41 = arith.addf %38, %40 : vector<16x768xf32>
    %cst_31 = arith.constant 0.000000e+00 : f32
    %42 = vector.broadcast %cst_31 : f32 to vector<16x768xf32>
    %43 = arith.maximumf %41, %42 : vector<16x768xf32>
    %44 = arith.truncf %43 : vector<16x768xf32> to vector<16x768xbf16>
    %c0_32 = arith.constant 0 : index
    %c0_33 = arith.constant 0 : index
    %45 = vector.load %arg11[%c0_32, %c0_33] : memref<768x768xbf16, #tpu.memory_space<vmem>>, vector<768x768xbf16>
    %cst_34 = arith.constant dense<0.000000e+00> : vector<16x768xf32>
    %46 = tpu.matmul %44, %45, %cst_34 {dimension_numbers = #tpu.dot_dimension_numbers<[1], [0], [0], [1], [0, 0, 1, 1], [], []>} : vector<16x768xbf16>, vector<768x768xbf16>, vector<16x768xf32> -> vector<16x768xf32>
    %c0_35 = arith.constant 0 : index
    %c0_36 = arith.constant 0 : index
    %47 = vector.load %arg12[%c0_35, %c0_36] : memref<1x768xf32, #tpu.memory_space<vmem>>, vector<1x768xf32>
    %48 = vector.broadcast %47 : vector<1x768xf32> to vector<16x768xf32>
    %49 = arith.addf %46, %48 : vector<16x768xf32>
    %cst_37 = arith.constant 0.000000e+00 : f32
    %50 = vector.broadcast %cst_37 : f32 to vector<16x768xf32>
    %51 = arith.maximumf %49, %50 : vector<16x768xf32>
    %52 = arith.truncf %51 : vector<16x768xf32> to vector<16x768xbf16>
    %c0_38 = arith.constant 0 : index
    %c0_39 = arith.constant 0 : index
    %53 = vector.load %arg13[%c0_38, %c0_39] : memref<768x128xbf16, #tpu.memory_space<vmem>>, vector<768x128xbf16>
    %cst_40 = arith.constant dense<0.000000e+00> : vector<16x128xf32>
    %54 = tpu.matmul %52, %53, %cst_40 {dimension_numbers = #tpu.dot_dimension_numbers<[1], [0], [0], [1], [0, 0, 1, 1], [], []>} : vector<16x768xbf16>, vector<768x128xbf16>, vector<16x128xf32> -> vector<16x128xf32>
    %c0_41 = arith.constant 0 : index
    %c0_42 = arith.constant 0 : index
    %55 = vector.load %arg14[%c0_41, %c0_42] : memref<1x128xf32, #tpu.memory_space<vmem>>, vector<1x128xf32>
    %56 = vector.broadcast %55 : vector<1x128xf32> to vector<16x128xf32>
    %57 = arith.addf %54, %56 : vector<16x128xf32>
    %58 = math.tanh %57 : vector<16x128xf32>
    %cst_43 = arith.constant 1.000000e+00 : f32
    %59 = vector.broadcast %cst_43 : f32 to vector<16x128xf32>
    %60 = arith.mulf %59, %58 : vector<16x128xf32>
    %c0_44 = arith.constant 0 : index
    %c0_45 = arith.constant 0 : index
    %61 = vector.load %arg15[%c0_44, %c0_45] : memref<16x128xf32, #tpu.memory_space<vmem>>, vector<16x128xf32>
    tpu.vector_store %arg15[%c0_44, %c0_45], %60 {strides = array<i32>} : memref<16x128xf32, #tpu.memory_space<vmem>>, vector<16x128xf32>,
    %c0_46 = arith.constant 0 : index
    %c0_47 = arith.constant 0 : index
    %62 = vector.load %arg16[%c0_46, %c0_47] : memref<16x256xf32, #tpu.memory_space<vmem>>, vector<16x128xf32>
    tpu.vector_store %arg16[%c0_46, %c0_47], %23 {strides = array<i32>} : memref<16x256xf32, #tpu.memory_space<vmem>>, vector<16x128xf32>,
    %c0_48 = arith.constant 0 : index
    %c128_49 = arith.constant 128 : index
    %63 = vector.load %arg16[%c0_48, %c128_49] : memref<16x256xf32, #tpu.memory_space<vmem>>, vector<16x128xf32>
    tpu.vector_store %arg16[%c0_48, %c128_49], %29 {strides = array<i32>} : memref<16x256xf32, #tpu.memory_space<vmem>>, vector<16x128xf32>,
    return
  }
  func.func @transform_0(%arg0: i32) -> (i32, i32) {
    %c0_i32 = arith.constant 0 : i32
    %c0_i32_0 = arith.constant 0 : i32
    return %arg0, %c0_i32 : i32, i32
  }
  func.func @transform_1(%arg0: i32) -> (i32, i32) {
    %c0_i32 = arith.constant 0 : i32
    %c0_i32_0 = arith.constant 0 : i32
    return %arg0, %c0_i32 : i32, i32
  }
  func.func @transform_2(%arg0: i32) -> (i32, i32) {
    %c0_i32 = arith.constant 0 : i32
    %c0_i32_0 = arith.constant 0 : i32
    %c0_i32_1 = arith.constant 0 : i32
    return %c0_i32, %c0_i32_0 : i32, i32
  }
  func.func @transform_3(%arg0: i32) -> (i32, i32) {
    %c0_i32 = arith.constant 0 : i32
    %c0_i32_0 = arith.constant 0 : i32
    %c0_i32_1 = arith.constant 0 : i32
    return %c0_i32, %c0_i32_0 : i32, i32
  }
  func.func @transform_4(%arg0: i32) -> (i32, i32) {
    %c0_i32 = arith.constant 0 : i32
    %c0_i32_0 = arith.constant 0 : i32
    %c0_i32_1 = arith.constant 0 : i32
    return %c0_i32, %c0_i32_0 : i32, i32
  }
  func.func @transform_5(%arg0: i32) -> (i32, i32) {
    %c0_i32 = arith.constant 0 : i32
    %c0_i32_0 = arith.constant 0 : i32
    %c0_i32_1 = arith.constant 0 : i32
    return %c0_i32, %c0_i32_0 : i32, i32
  }
  func.func @transform_6(%arg0: i32) -> (i32, i32) {
    %c0_i32 = arith.constant 0 : i32
    %c0_i32_0 = arith.constant 0 : i32
    %c0_i32_1 = arith.constant 0 : i32
    return %c0_i32, %c0_i32_0 : i32, i32
  }
  func.func @transform_7(%arg0: i32) -> (i32, i32) {
    %c0_i32 = arith.constant 0 : i32
    %c0_i32_0 = arith.constant 0 : i32
    %c0_i32_1 = arith.constant 0 : i32
    return %c0_i32, %c0_i32_0 : i32, i32
  }
  func.func @transform_8(%arg0: i32) -> (i32, i32) {
    %c0_i32 = arith.constant 0 : i32
    %c0_i32_0 = arith.constant 0 : i32
    %c0_i32_1 = arith.constant 0 : i32
    return %c0_i32, %c0_i32_0 : i32, i32
  }
  func.func @transform_9(%arg0: i32) -> (i32, i32) {
    %c0_i32 = arith.constant 0 : i32
    %c0_i32_0 = arith.constant 0 : i32
    %c0_i32_1 = arith.constant 0 : i32
    return %c0_i32, %c0_i32_0 : i32, i32
  }
  func.func @transform_10(%arg0: i32) -> (i32, i32) {
    %c0_i32 = arith.constant 0 : i32
    %c0_i32_0 = arith.constant 0 : i32
    %c0_i32_1 = arith.constant 0 : i32
    return %c0_i32, %c0_i32_0 : i32, i32
  }
  func.func @transform_11(%arg0: i32) -> (i32, i32) {
    %c0_i32 = arith.constant 0 : i32
    %c0_i32_0 = arith.constant 0 : i32
    %c0_i32_1 = arith.constant 0 : i32
    return %c0_i32, %c0_i32_0 : i32, i32
  }
  func.func @transform_12(%arg0: i32) -> (i32, i32) {
    %c0_i32 = arith.constant 0 : i32
    %c0_i32_0 = arith.constant 0 : i32
    %c0_i32_1 = arith.constant 0 : i32
    return %c0_i32, %c0_i32_0 : i32, i32
  }
  func.func @transform_13(%arg0: i32) -> (i32, i32) {
    %c0_i32 = arith.constant 0 : i32
    %c0_i32_0 = arith.constant 0 : i32
    %c0_i32_1 = arith.constant 0 : i32
    return %c0_i32, %c0_i32_0 : i32, i32
  }
  func.func @transform_14(%arg0: i32) -> (i32, i32) {
    %c0_i32 = arith.constant 0 : i32
    %c0_i32_0 = arith.constant 0 : i32
    return %arg0, %c0_i32 : i32, i32
  }
  func.func @transform_15(%arg0: i32) -> (i32, i32) {
    %c0_i32 = arith.constant 0 : i32
    %c0_i32_0 = arith.constant 0 : i32
    return %arg0, %c0_i32 : i32, i32
  }
}

</mosaic_0001>

<llo_original>
// kernel: tpu_custom_call.1
$region0: #{tpu_custom_call.1}
  #allocation0 [shape = 'u32[]', space=smem, size = 0x4, offset = 0x4, fixed_abs, tag = 'smem constant byte address 0x4 - core index']
  #allocation1 [shape = 'u32[144,128]{1,0:T(1,128)}', space=vmem, size = 0x12000, scoped, tag = 'internal scratch']
  #allocation2 [shape = 'bf16[16,256]{1,0:T(16,128)(2,1)}', space=vmem, size = 0x2000, scoped, tag = 'scratch operand']
  %s0 = inlined_call_operand.hbm [shape: bf16[16,256], index: 0, kind: input, shape index: {}]
  %s1 = inlined_call_operand.hbm [shape: f32[16,128], index: 1, kind: input, shape index: {}]
  %s2 = inlined_call_operand.hbm [shape: bf16[256,768], index: 2, kind: input, shape index: {}]
  %s3 = inlined_call_operand.hbm [shape: f32[1,768], index: 3, kind: input, shape index: {}]
  %s4 = inlined_call_operand.hbm [shape: bf16[768,768], index: 4, kind: input, shape index: {}]
  %s5 = inlined_call_operand.hbm [shape: f32[1,768], index: 5, kind: input, shape index: {}]
  %s6 = inlined_call_operand.hbm [shape: bf16[768,256], index: 6, kind: input, shape index: {}]
  %s7 = inlined_call_operand.hbm [shape: f32[1,256], index: 7, kind: input, shape index: {}]
  %s8 = inlined_call_operand.hbm [shape: bf16[256,768], index: 8, kind: input, shape index: {}]
  %s9 = inlined_call_operand.hbm [shape: f32[1,768], index: 9, kind: input, shape index: {}]
  %s10 = inlined_call_operand.hbm [shape: bf16[768,768], index: 10, kind: input, shape index: {}]
  %s11 = inlined_call_operand.hbm [shape: f32[1,768], index: 11, kind: input, shape index: {}]
  %s12 = inlined_call_operand.hbm [shape: bf16[768,128], index: 12, kind: input, shape index: {}]
  %s13 = inlined_call_operand.hbm [shape: f32[1,128], index: 13, kind: input, shape index: {}]
  %s14 = inlined_call_operand.hbm [shape: f32[16,128], index: 14, kind: output, shape index: {0}]
  %s15 = inlined_call_operand.hbm [shape: f32[16,256], index: 15, kind: output, shape index: {1}]
  %16 = xla_tuple %s14, %s15
  %s17 = sld [smem:[#allocation0]]
  $region130: #{tpu_custom_call.1} parent=0
    _
  %s19 = ssub.s32 1, %s17
  %s20 = scalar_select 0, %s19, %s17
  $region1: #{tpu_custom_call.1} parent=0
    #allocation3 [shape = 'u8[8192]{0}', space=vmem, size = 0x2000, scoped, tag = 'input window, operand 0, single buffered']
    #allocation4 [shape = 's32[1]{0}', space=sflag, size = 0x4, scoped, tag = 'scoped memory for tpu_custom_call.1']
    #allocation5 [shape = 's32[1]{0}', space=sflag, size = 0x4, scoped, tag = 'scoped memory for tpu_custom_call.1']
    #allocation6 [shape = 'u8[8192]{0}', space=vmem, size = 0x2000, scoped, tag = 'input window, operand 1, single buffered']
    #allocation7 [shape = 's32[1]{0}', space=sflag, size = 0x4, scoped, tag = 'scoped memory for tpu_custom_call.1']
    #allocation8 [shape = 'u8[393216]{0}', space=vmem, size = 0x60000, scoped, tag = 'input window, operand 2, single buffered']
    #allocation9 [shape = 'u8[3072]{0}', space=vmem, size = 0xc00, scoped, tag = 'input window, operand 3, single buffered']
    #allocation10 [shape = 's32[1]{0}', space=sflag, size = 0x4, scoped, tag = 'scoped memory for tpu_custom_call.1']
    #allocation11 [shape = 'u8[1179648]{0}', space=vmem, size = 0x120000, scoped, tag = 'input window, operand 4, single buffered']
    #allocation12 [shape = 'u8[3072]{0}', space=vmem, size = 0xc00, scoped, tag = 'input window, operand 5, single buffered']
    #allocation13 [shape = 's32[1]{0}', space=sflag, size = 0x4, scoped, tag = 'scoped memory for tpu_custom_call.1']
    #allocation14 [shape = 'u8[393216]{0}', space=vmem, size = 0x60000, scoped, tag = 'input window, operand 6, single buffered']
    #allocation15 [shape = 'u8[1024]{0}', space=vmem, size = 0x400, scoped, tag = 'input window, operand 7, single buffered']
    #allocation16 [shape = 's32[1]{0}', space=sflag, size = 0x4, scoped, tag = 'scoped memory for tpu_custom_call.1']
    #allocation17 [shape = 'u8[393216]{0}', space=vmem, size = 0x60000, scoped, tag = 'input window, operand 8, single buffered']
    #allocation18 [shape = 'u8[3072]{0}', space=vmem, size = 0xc00, scoped, tag = 'input window, operand 9, single buffered']
    #allocation19 [shape = 's32[1]{0}', space=sflag, size = 0x4, scoped, tag = 'scoped memory for tpu_custom_call.1']
    #allocation20 [shape = 'u8[1179648]{0}', space=vmem, size = 0x120000, scoped, tag = 'input window, operand 10, single buffered']
    #allocation21 [shape = 'u8[3072]{0}', space=vmem, size = 0xc00, scoped, tag = 'input window, operand 11, single buffered']
    #allocation22 [shape = 's32[1]{0}', space=sflag, size = 0x4, scoped, tag = 'scoped memory for tpu_custom_call.1']
    #allocation23 [shape = 'u8[196608]{0}', space=vmem, size = 0x30000, scoped, tag = 'input window, operand 12, single buffered']
    #allocation24 [shape = 'u8[512]{0}', space=vmem, size = 0x400, scoped, tag = 'input window, operand 13, single buffered']
    #allocation25 [shape = 's32[1]{0}', space=sflag, size = 0x4, scoped, tag = 'scoped memory for tpu_custom_call.1']
    #allocation26 [shape = 'u8[8192]{0}', space=vmem, size = 0x2000, scoped, tag = 'output window, operand 0, single buffered']
    #allocation27 [shape = 'u8[16384]{0}', space=vmem, size = 0x4000, scoped, tag = 'output window, operand 1, single buffered']
    #allocation28 [shape = 's32[1]{0}', space=sflag, size = 0x4, scoped, tag = 'scoped memory for tpu_custom_call.1']
    %21 = vsyncpa [#allocation4], 0
    %22 = vsyncpa [#allocation7], 0
    %23 = vsyncpa [#allocation10], 0
    %24 = vsyncpa [#allocation13], 0
    %25 = vsyncpa [#allocation16], 0
    %26 = vsyncpa [#allocation19], 0
    %27 = vsyncpa [#allocation22], 0
    %28 = vsyncpa [#allocation25], 0
    %29 = vsyncpa [#allocation5], 0
    %30 = vsyncpa [#allocation28], 0
    // Predicated region
    $region2: #{tpu_custom_call.1} parent=1 // pred_check
      _
    $region3: #{tpu_custom_call.1} parent=1 // pred_check_branch
      %32 = sbr.rel (0) target = $region5
    $region4: #{tpu_custom_call.1} parent=1 // pred_region
      %s34 = ssub.s32 256, 256
      %35 = vsyncadd [#allocation4], %s34
      %s36 = sshll.u32 [#allocation3], 4
      %s37 = int_to_ptr.vmem [resolvable:$true] %s36
      %42 = dma.hbm_to_vmem [thread:$0]  %s0, 256, %s37, [#allocation4], 128, 128, 8
    $region5: #{tpu_custom_call.1} parent=1 // pred_fallthru
      _
    // Predicated region
    $region6: #{tpu_custom_call.1} parent=1 // pred_check
      _
    $region7: #{tpu_custom_call.1} parent=1 // pred_check_branch
      %44 = sbr.rel (0) target = $region9
    $region8: #{tpu_custom_call.1} parent=1 // pred_region
      %s46 = ssub.s32 256, 256
      %47 = vsyncadd [#allocation7], %s46
      %s48 = sshll.u32 [#allocation6], 4
      %s49 = int_to_ptr.vmem [resolvable:$true] %s48
      %54 = dma.hbm_to_vmem [thread:$0]  %s1, 256, %s49, [#allocation7], 128, 128, 8
    $region9: #{tpu_custom_call.1} parent=1 // pred_fallthru
      _
    // Predicated region
    $region10: #{tpu_custom_call.1} parent=1 // pred_check
      _
    $region11: #{tpu_custom_call.1} parent=1 // pred_check_branch
      %56 = sbr.rel (0) target = $region13
    $region12: #{tpu_custom_call.1} parent=1 // pred_region
      %s58 = ssub.s32 12288, 12288
      %59 = vsyncadd [#allocation7], %s58
      %s60 = sshll.u32 [#allocation8], 4
      %s61 = int_to_ptr.vmem [resolvable:$true] %s60
      %66 = dma.hbm_to_vmem [thread:$0]  %s2, 12288, %s61, [#allocation7], 384, 384, 24
    $region13: #{tpu_custom_call.1} parent=1 // pred_fallthru
      _
    // Predicated region
    $region14: #{tpu_custom_call.1} parent=1 // pred_check
      _
    $region15: #{tpu_custom_call.1} parent=1 // pred_check_branch
      %68 = sbr.rel (0) target = $region17
    $region16: #{tpu_custom_call.1} parent=1 // pred_region
      %s70 = ssub.s32 96, 96
      %71 = vsyncadd [#allocation10], %s70
      %s73 = sshll.u32 [#allocation9], 4
      %s74 = int_to_ptr.vmem [resolvable:$true] %s73
      %76 = dma.hbm_to_vmem [thread:$0]  %s3, 96, %s74, [#allocation10]
    $region17: #{tpu_custom_call.1} parent=1 // pred_fallthru
      _
    // Predicated region
    $region18: #{tpu_custom_call.1} parent=1 // pred_check
      _
    $region19: #{tpu_custom_call.1} parent=1 // pred_check_branch
      %78 = sbr.rel (0) target = $region21
    $region20: #{tpu_custom_call.1} parent=1 // pred_region
      %s80 = ssub.s32 36864, 36864
      %81 = vsyncadd [#allocation10], %s80
      %s82 = sshll.u32 [#allocation11], 4
      %s83 = int_to_ptr.vmem [resolvable:$true] %s82
      %88 = dma.hbm_to_vmem [thread:$0]  %s4, 36864, %s83, [#allocation10], 384, 384, 24
    $region21: #{tpu_custom_call.1} parent=1 // pred_fallthru
      _
    // Predicated region
    $region22: #{tpu_custom_call.1} parent=1 // pred_check
      _
    $region23: #{tpu_custom_call.1} parent=1 // pred_check_branch
      %90 = sbr.rel (0) target = $region25
    $region24: #{tpu_custom_call.1} parent=1 // pred_region
      %s92 = ssub.s32 96, 96
      %93 = vsyncadd [#allocation13], %s92
      %s95 = sshll.u32 [#allocation12], 4
      %s96 = int_to_ptr.vmem [resolvable:$true] %s95
      %98 = dma.hbm_to_vmem [thread:$0]  %s5, 96, %s96, [#allocation13]
    $region25: #{tpu_custom_call.1} parent=1 // pred_fallthru
      _
    // Predicated region
    $region26: #{tpu_custom_call.1} parent=1 // pred_check
      _
    $region27: #{tpu_custom_call.1} parent=1 // pred_check_branch
      %100 = sbr.rel (0) target = $region29
    $region28: #{tpu_custom_call.1} parent=1 // pred_region
      %s102 = ssub.s32 12288, 12288
      %103 = vsyncadd [#allocation13], %s102
      %s104 = sshll.u32 [#allocation14], 4
      %s105 = int_to_ptr.vmem [resolvable:$true] %s104
      %110 = dma.hbm_to_vmem [thread:$0]  %s6, 12288, %s105, [#allocation13], 128, 128, 8
    $region29: #{tpu_custom_call.1} parent=1 // pred_fallthru
      _
    // Predicated region
    $region30: #{tpu_custom_call.1} parent=1 // pred_check
      _
    $region31: #{tpu_custom_call.1} parent=1 // pred_check_branch
      %112 = sbr.rel (0) target = $region33
    $region32: #{tpu_custom_call.1} parent=1 // pred_region
      %s114 = ssub.s32 32, 32
      %115 = vsyncadd [#allocation16], %s114
      %s117 = sshll.u32 [#allocation15], 4
      %s118 = int_to_ptr.vmem [resolvable:$true] %s117
      %120 = dma.hbm_to_vmem [thread:$0]  %s7, 32, %s118, [#allocation16]
    $region33: #{tpu_custom_call.1} parent=1 // pred_fallthru
      _
    // Predicated region
    $region34: #{tpu_custom_call.1} parent=1 // pred_check
      _
    $region35: #{tpu_custom_call.1} parent=1 // pred_check_branch
      %122 = sbr.rel (0) target = $region37
    $region36: #{tpu_custom_call.1} parent=1 // pred_region
      %s124 = ssub.s32 12288, 12288
      %125 = vsyncadd [#allocation16], %s124
      %s126 = sshll.u32 [#allocation17], 4
      %s127 = int_to_ptr.vmem [resolvable:$true] %s126
      %132 = dma.hbm_to_vmem [thread:$0]  %s8, 12288, %s127, [#allocation16], 384, 384, 24
    $region37: #{tpu_custom_call.1} parent=1 // pred_fallthru
      _
    // Predicated region
    $region38: #{tpu_custom_call.1} parent=1 // pred_check
      _
    $region39: #{tpu_custom_call.1} parent=1 // pred_check_branch
      %134 = sbr.rel (0) target = $region41
    $region40: #{tpu_custom_call.1} parent=1 // pred_region
      %s136 = ssub.s32 96, 96
      %137 = vsyncadd [#allocation19], %s136
      %s139 = sshll.u32 [#allocation18], 4
      %s140 = int_to_ptr.vmem [resolvable:$true] %s139
      %142 = dma.hbm_to_vmem [thread:$0]  %s9, 96, %s140, [#allocation19]
    $region41: #{tpu_custom_call.1} parent=1 // pred_fallthru
      _
    // Predicated region
    $region42: #{tpu_custom_call.1} parent=1 // pred_check
      _
    $region43: #{tpu_custom_call.1} parent=1 // pred_check_branch
      %144 = sbr.rel (0) target = $region45
    $region44: #{tpu_custom_call.1} parent=1 // pred_region
      %s146 = ssub.s32 36864, 36864
      %147 = vsyncadd [#allocation19], %s146
      %s148 = sshll.u32 [#allocation20], 4
      %s149 = int_to_ptr.vmem [resolvable:$true] %s148
      %154 = dma.hbm_to_vmem [thread:$0]  %s10, 36864, %s149, [#allocation19], 384, 384, 24
    $region45: #{tpu_custom_call.1} parent=1 // pred_fallthru
      _
    // Predicated region
    $region46: #{tpu_custom_call.1} parent=1 // pred_check
      _
    $region47: #{tpu_custom_call.1} parent=1 // pred_check_branch
      %156 = sbr.rel (0) target = $region49
    $region48: #{tpu_custom_call.1} parent=1 // pred_region
      %s158 = ssub.s32 96, 96
      %159 = vsyncadd [#allocation22], %s158
      %s161 = sshll.u32 [#allocation21], 4
      %s162 = int_to_ptr.vmem [resolvable:$true] %s161
      %164 = dma.hbm_to_vmem [thread:$0]  %s11, 96, %s162, [#allocation22]
    $region49: #{tpu_custom_call.1} parent=1 // pred_fallthru
      _
    // Predicated region
    $region50: #{tpu_custom_call.1} parent=1 // pred_check
      _
    $region51: #{tpu_custom_call.1} parent=1 // pred_check_branch
      %166 = sbr.rel (0) target = $region53
    $region52: #{tpu_custom_call.1} parent=1 // pred_region
      %s168 = ssub.s32 6144, 6144
      %169 = vsyncadd [#allocation22], %s168
      %s170 = sshll.u32 [#allocation23], 4
      %s171 = int_to_ptr.vmem [resolvable:$true] %s170
      %176 = dma.hbm_to_vmem [thread:$0]  %s12, 6144, %s171, [#allocation22], 64, 64, 4
    $region53: #{tpu_custom_call.1} parent=1 // pred_fallthru
      _
    // Predicated region
    $region54: #{tpu_custom_call.1} parent=1 // pred_check
      _
    $region55: #{tpu_custom_call.1} parent=1 // pred_check_branch
      %178 = sbr.rel (0) target = $region57
    $region56: #{tpu_custom_call.1} parent=1 // pred_region
      %s180 = ssub.s32 16, 16
      %181 = vsyncadd [#allocation25], %s180
      %s183 = sshll.u32 [#allocation24], 4
      %s184 = int_to_ptr.vmem [resolvable:$true] %s183
      %186 = dma.hbm_to_vmem [thread:$0]  %s13, 16, %s184, [#allocation25]
    $region57: #{tpu_custom_call.1} parent=1 // pred_fallthru
      _
    // Predicated region
    $region58: #{tpu_custom_call.1} parent=1 // pred_check
      _
    $region59: #{tpu_custom_call.1} parent=1 // pred_check_branch
      %188 = sbr.rel (0) target = $region61
    $region60: #{tpu_custom_call.1} parent=1 // pred_region
      %189 = dma.done [#allocation4], 256
    $region61: #{tpu_custom_call.1} parent=1 // pred_fallthru
      _
    // Predicated region
    $region62: #{tpu_custom_call.1} parent=1 // pred_check
      _
    $region63: #{tpu_custom_call.1} parent=1 // pred_check_branch
      %191 = sbr.rel (0) target = $region65
    $region64: #{tpu_custom_call.1} parent=1 // pred_region
      %192 = dma.done [#allocation7], 256
    $region65: #{tpu_custom_call.1} parent=1 // pred_fallthru
      _
    // Predicated region
    $region66: #{tpu_custom_call.1} parent=1 // pred_check
      _
    $region67: #{tpu_custom_call.1} parent=1 // pred_check_branch
      %194 = sbr.rel (0) target = $region69
    $region68: #{tpu_custom_call.1} parent=1 // pred_region
      %195 = dma.done [#allocation7], 12288
    $region69: #{tpu_custom_call.1} parent=1 // pred_fallthru
      _
    // Predicated region
    $region70: #{tpu_custom_call.1} parent=1 // pred_check
      _
    $region71: #{tpu_custom_call.1} parent=1 // pred_check_branch
      %197 = sbr.rel (0) target = $region73
    $region72: #{tpu_custom_call.1} parent=1 // pred_region
      %198 = dma.done [#allocation10], 96
    $region73: #{tpu_custom_call.1} parent=1 // pred_fallthru
      _
    // Predicated region
    $region74: #{tpu_custom_call.1} parent=1 // pred_check
      _
    $region75: #{tpu_custom_call.1} parent=1 // pred_check_branch
      %200 = sbr.rel (0) target = $region77
    $region76: #{tpu_custom_call.1} parent=1 // pred_region
      %201 = dma.done [#allocation10], 36864
    $region77: #{tpu_custom_call.1} parent=1 // pred_fallthru
      _
    // Predicated region
    $region78: #{tpu_custom_call.1} parent=1 // pred_check
      _
    $region79: #{tpu_custom_call.1} parent=1 // pred_check_branch
      %203 = sbr.rel (0) target = $region81
    $region80: #{tpu_custom_call.1} parent=1 // pred_region
      %204 = dma.done [#allocation13], 96
    $region81: #{tpu_custom_call.1} parent=1 // pred_fallthru
      _
    // Predicated region
    $region82: #{tpu_custom_call.1} parent=1 // pred_check
      _
    $region83: #{tpu_custom_call.1} parent=1 // pred_check_branch
      %206 = sbr.rel (0) target = $region85
    $region84: #{tpu_custom_call.1} parent=1 // pred_region
      %207 = dma.done [#allocation13], 12288
    $region85: #{tpu_custom_call.1} parent=1 // pred_fallthru
      _
    // Predicated region
    $region86: #{tpu_custom_call.1} parent=1 // pred_check
      _
    $region87: #{tpu_custom_call.1} parent=1 // pred_check_branch
      %209 = sbr.rel (0) target = $region89
    $region88: #{tpu_custom_call.1} parent=1 // pred_region
      %210 = dma.done [#allocation16], 32
    $region89: #{tpu_custom_call.1} parent=1 // pred_fallthru
      _
    // Predicated region
    $region90: #{tpu_custom_call.1} parent=1 // pred_check
      _
    $region91: #{tpu_custom_call.1} parent=1 // pred_check_branch
      %212 = sbr.rel (0) target = $region93
    $region92: #{tpu_custom_call.1} parent=1 // pred_region
      %213 = dma.done [#allocation16], 12288
    $region93: #{tpu_custom_call.1} parent=1 // pred_fallthru
      _
    // Predicated region
    $region94: #{tpu_custom_call.1} parent=1 // pred_check
      _
    $region95: #{tpu_custom_call.1} parent=1 // pred_check_branch
      %215 = sbr.rel (0) target = $region97
    $region96: #{tpu_custom_call.1} parent=1 // pred_region
      %216 = dma.done [#allocation19], 96
    $region97: #{tpu_custom_call.1} parent=1 // pred_fallthru
      _
    // Predicated region
    $region98: #{tpu_custom_call.1} parent=1 // pred_check
      _
    $region99: #{tpu_custom_call.1} parent=1 // pred_check_branch
      %218 = sbr.rel (0) target = $region101
    $region100: #{tpu_custom_call.1} parent=1 // pred_region
      %219 = dma.done [#allocation19], 36864
    $region101: #{tpu_custom_call.1} parent=1 // pred_fallthru
      _
    // Predicated region
    $region102: #{tpu_custom_call.1} parent=1 // pred_check
      _
    $region103: #{tpu_custom_call.1} parent=1 // pred_check_branch
      %221 = sbr.rel (0) target = $region105
    $region104: #{tpu_custom_call.1} parent=1 // pred_region
      %222 = dma.done [#allocation22], 96
    $region105: #{tpu_custom_call.1} parent=1 // pred_fallthru
      _
    // Predicated region
    $region106: #{tpu_custom_call.1} parent=1 // pred_check
      _
    $region107: #{tpu_custom_call.1} parent=1 // pred_check_branch
      %224 = sbr.rel (0) target = $region109
    $region108: #{tpu_custom_call.1} parent=1 // pred_region
      %225 = dma.done [#allocation22], 6144
    $region109: #{tpu_custom_call.1} parent=1 // pred_fallthru
      _
    // Predicated region
    $region110: #{tpu_custom_call.1} parent=1 // pred_check
      _
    $region111: #{tpu_custom_call.1} parent=1 // pred_check_branch
      %227 = sbr.rel (0) target = $region113
    $region112: #{tpu_custom_call.1} parent=1 // pred_region
      %228 = dma.done [#allocation25], 16
    $region113: #{tpu_custom_call.1} parent=1 // pred_fallthru
      _
    %v230 = vld [vmem:[#allocation3] sm:$0xff]
    %v231 = vld [vmem:[#allocation3 + $0x8] sm:$0xff]
    %v232 = vld [vmem:[#allocation6] sm:$0xff]
    %v233 = vld [vmem:[#allocation6 + $0x8] sm:$0xff]
    %v234 = vld [vmem:[#allocation8] sm:$0xff]
    %v235 = vld [vmem:[#allocation8 + $0x8] sm:$0xff]
    %v236 = vld [vmem:[#allocation8 + $0x10] sm:$0xff]
    %v237 = vld [vmem:[#allocation8 + $0x18] sm:$0xff]
    %v238 = vld [vmem:[#allocation8 + $0x20] sm:$0xff]
    %v239 = vld [vmem:[#allocation8 + $0x28] sm:$0xff]
    %v240 = vld [vmem:[#allocation8 + $0x30] sm:$0xff]
    %v241 = vld [vmem:[#allocation8 + $0x38] sm:$0xff]
    %v242 = vld [vmem:[#allocation8 + $0x40] sm:$0xff]
    %v243 = vld [vmem:[#allocation8 + $0x48] sm:$0xff]
    %v244 = vld [vmem:[#allocation8 + $0x50] sm:$0xff]
    %v245 = vld [vmem:[#allocation8 + $0x58] sm:$0xff]
    %v246 = vld [vmem:[#allocation8 + $0x60] sm:$0xff]
    %v247 = vld [vmem:[#allocation8 + $0x68] sm:$0xff]
    %v248 = vld [vmem:[#allocation8 + $0x70] sm:$0xff]
    %v249 = vld [vmem:[#allocation8 + $0x78] sm:$0xff]
    %v250 = vld [vmem:[#allocation8 + $0x80] sm:$0xff]
    %v251 = vld [vmem:[#allocation8 + $0x88] sm:$0xff]
    %v252 = vld [vmem:[#allocation8 + $0x90] sm:$0xff]
    %v253 = vld [vmem:[#allocation8 + $0x98] sm:$0xff]
    %v254 = vld [vmem:[#allocation8 + $0xa0] sm:$0xff]
    %v255 = vld [vmem:[#allocation8 + $0xa8] sm:$0xff]
    %v256 = vld [vmem:[#allocation8 + $0xb0] sm:$0xff]
    %v257 = vld [vmem:[#allocation8 + $0xb8] sm:$0xff]
    %v258 = vld [vmem:[#allocation8 + $0xc0] sm:$0xff]
    %v259 = vld [vmem:[#allocation8 + $0xc8] sm:$0xff]
    %v260 = vld [vmem:[#allocation8 + $0xd0] sm:$0xff]
    %v261 = vld [vmem:[#allocation8 + $0xd8] sm:$0xff]
    %v262 = vld [vmem:[#allocation8 + $0xe0] sm:$0xff]
    %v263 = vld [vmem:[#allocation8 + $0xe8] sm:$0xff]
    %v264 = vld [vmem:[#allocation8 + $0xf0] sm:$0xff]
    %v265 = vld [vmem:[#allocation8 + $0xf8] sm:$0xff]
    %v266 = vld [vmem:[#allocation8 + $0x100] sm:$0xff]
    %v267 = vld [vmem:[#allocation8 + $0x108] sm:$0xff]
    %v268 = vld [vmem:[#allocation8 + $0x110] sm:$0xff]
    %v269 = vld [vmem:[#allocation8 + $0x118] sm:$0xff]
    %v270 = vld [vmem:[#allocation8 + $0x120] sm:$0xff]
    %v271 = vld [vmem:[#allocation8 + $0x128] sm:$0xff]
    %v272 = vld [vmem:[#allocation8 + $0x130] sm:$0xff]
    %v273 = vld [vmem:[#allocation8 + $0x138] sm:$0xff]
    %v274 = vld [vmem:[#allocation8 + $0x140] sm:$0xff]
    %v275 = vld [vmem:[#allocation8 + $0x148] sm:$0xff]
    %v276 = vld [vmem:[#allocation8 + $0x150] sm:$0xff]
    %v277 = vld [vmem:[#allocation8 + $0x158] sm:$0xff]
    %v278 = vld [vmem:[#allocation8 + $0x160] sm:$0xff]
    %v279 = vld [vmem:[#allocation8 + $0x168] sm:$0xff]
    %v280 = vld [vmem:[#allocation8 + $0x170] sm:$0xff]
    %v281 = vld [vmem:[#allocation8 + $0x178] sm:$0xff]
    %v282 = vld [vmem:[#allocation8 + $0x180] sm:$0xff]
    %v283 = vld [vmem:[#allocation8 + $0x188] sm:$0xff]
    %v284 = vld [vmem:[#allocation8 + $0x190] sm:$0xff]
    %v285 = vld [vmem:[#allocation8 + $0x198] sm:$0xff]
    %v286 = vld [vmem:[#allocation8 + $0x1a0] sm:$0xff]
    %v287 = vld [vmem:[#allocation8 + $0x1a8] sm:$0xff]
    %v288 = vld [vmem:[#allocation8 + $0x1b0] sm:$0xff]
    %v289 = vld [vmem:[#allocation8 + $0x1b8] sm:$0xff]
    %v290 = vld [vmem:[#allocation8 + $0x1c0] sm:$0xff]
    %v291 = vld [vmem:[#allocation8 + $0x1c8] sm:$0xff]
    %v292 = vld [vmem:[#allocation8 + $0x1d0] sm:$0xff]
    %v293 = vld [vmem:[#allocation8 + $0x1d8] sm:$0xff]
    %v294 = vld [vmem:[#allocation8 + $0x1e0] sm:$0xff]
    %v295 = vld [vmem:[#allocation8 + $0x1e8] sm:$0xff]
    %v296 = vld [vmem:[#allocation8 + $0x1f0] sm:$0xff]
    %v297 = vld [vmem:[#allocation8 + $0x1f8] sm:$0xff]
    %v298 = vld [vmem:[#allocation8 + $0x200] sm:$0xff]
    %v299 = vld [vmem:[#allocation8 + $0x208] sm:$0xff]
    %v300 = vld [vmem:[#allocation8 + $0x210] sm:$0xff]
    %v301 = vld [vmem:[#allocation8 + $0x218] sm:$0xff]
    %v302 = vld [vmem:[#allocation8 + $0x220] sm:$0xff]
    %v303 = vld [vmem:[#allocation8 + $0x228] sm:$0xff]
    %v304 = vld [vmem:[#allocation8 + $0x230] sm:$0xff]
    %v305 = vld [vmem:[#allocation8 + $0x238] sm:$0xff]
    %v306 = vld [vmem:[#allocation8 + $0x240] sm:$0xff]
    %v307 = vld [vmem:[#allocation8 + $0x248] sm:$0xff]
    %v308 = vld [vmem:[#allocation8 + $0x250] sm:$0xff]
    %v309 = vld [vmem:[#allocation8 + $0x258] sm:$0xff]
    %v310 = vld [vmem:[#allocation8 + $0x260] sm:$0xff]
    %v311 = vld [vmem:[#allocation8 + $0x268] sm:$0xff]
    %v312 = vld [vmem:[#allocation8 + $0x270] sm:$0xff]
    %v313 = vld [vmem:[#allocation8 + $0x278] sm:$0xff]
    %v314 = vld [vmem:[#allocation8 + $0x280] sm:$0xff]
    %v315 = vld [vmem:[#allocation8 + $0x288] sm:$0xff]
    %v316 = vld [vmem:[#allocation8 + $0x290] sm:$0xff]
    %v317 = vld [vmem:[#allocation8 + $0x298] sm:$0xff]
    %v318 = vld [vmem:[#allocation8 + $0x2a0] sm:$0xff]
    %v319 = vld [vmem:[#allocation8 + $0x2a8] sm:$0xff]
    %v320 = vld [vmem:[#allocation8 + $0x2b0] sm:$0xff]
    %v321 = vld [vmem:[#allocation8 + $0x2b8] sm:$0xff]
    %v322 = vld [vmem:[#allocation8 + $0x2c0] sm:$0xff]
    %v323 = vld [vmem:[#allocation8 + $0x2c8] sm:$0xff]
    %v324 = vld [vmem:[#allocation8 + $0x2d0] sm:$0xff]
    %v325 = vld [vmem:[#allocation8 + $0x2d8] sm:$0xff]
    %v326 = vld [vmem:[#allocation8 + $0x2e0] sm:$0xff]
    %v327 = vld [vmem:[#allocation8 + $0x2e8] sm:$0xff]
    %v328 = vld [vmem:[#allocation8 + $0x2f0] sm:$0xff]
    %v329 = vld [vmem:[#allocation8 + $0x2f8] sm:$0xff]
    %v330 = vld [vmem:[#allocation9] sm:$0x3f]
    %v332 = vlaneseq
    %v333 = vshrl.u32 %v332, 7
    %v334 = vsub.s32 0, %v333
    %v335 = vrot.slane %v330, %v334
    %v336 = vlaneseq
    %v337 = vshrl.u32 %v336, 7
    %v338 = vsub.s32 1, %v337
    %v339 = vrot.slane %v330, %v338
    %v340 = vlaneseq
    %v341 = vshrl.u32 %v340, 7
    %v342 = vsub.s32 2, %v341
    %v343 = vrot.slane %v330, %v342
    %v344 = vlaneseq
    %v345 = vshrl.u32 %v344, 7
    %v346 = vsub.s32 3, %v345
    %v347 = vrot.slane %v330, %v346
    %v348 = vlaneseq
    %v349 = vshrl.u32 %v348, 7
    %v350 = vsub.s32 4, %v349
    %v351 = vrot.slane %v330, %v350
    %v352 = vlaneseq
    %v353 = vshrl.u32 %v352, 7
    %v354 = vsub.s32 5, %v353
    %v355 = vrot.slane %v330, %v354
    %v364 = vunpack.c.l.b16 %v230
    %v365 = vunpack.c.h.b16 %v230
    %v366 = vunpack.c.l.b16 %v231
    %v367 = vunpack.c.h.b16 %v231
    %v368 = vpack.c.b16 %v366, %v364
    %v369 = vpack.c.b16 %v367, %v365
    %v468 = vunpack.c.l.b16 %v234
    %v469 = vunpack.c.h.b16 %v234
    %v470 = vunpack.c.l.b16 %v235
    %v471 = vunpack.c.h.b16 %v235
    %v472 = vunpack.c.l.b16 %v236
    %v473 = vunpack.c.h.b16 %v236
    %v474 = vunpack.c.l.b16 %v237
    %v475 = vunpack.c.h.b16 %v237
    %v476 = vunpack.c.l.b16 %v238
    %v477 = vunpack.c.h.b16 %v238
    %v478 = vunpack.c.l.b16 %v239
    %v479 = vunpack.c.h.b16 %v239
    %v480 = vunpack.c.l.b16 %v240
    %v481 = vunpack.c.h.b16 %v240
    %v482 = vunpack.c.l.b16 %v241
    %v483 = vunpack.c.h.b16 %v241
    %v484 = vunpack.c.l.b16 %v242
    %v485 = vunpack.c.h.b16 %v242
    %v486 = vunpack.c.l.b16 %v243
    %v487 = vunpack.c.h.b16 %v243
    %v488 = vunpack.c.l.b16 %v244
    %v489 = vunpack.c.h.b16 %v244
    %v490 = vunpack.c.l.b16 %v245
    %v491 = vunpack.c.h.b16 %v245
    %v492 = vunpack.c.l.b16 %v246
    %v493 = vunpack.c.h.b16 %v246
    %v494 = vunpack.c.l.b16 %v247
    %v495 = vunpack.c.h.b16 %v247
    %v496 = vunpack.c.l.b16 %v248
    %v497 = vunpack.c.h.b16 %v248
    %v498 = vunpack.c.l.b16 %v249
    %v499 = vunpack.c.h.b16 %v249
    %v500 = vunpack.c.l.b16 %v250
    %v501 = vunpack.c.h.b16 %v250
    %v502 = vunpack.c.l.b16 %v251
    %v503 = vunpack.c.h.b16 %v251
    %v504 = vunpack.c.l.b16 %v252
    %v505 = vunpack.c.h.b16 %v252
    %v506 = vunpack.c.l.b16 %v253
    %v507 = vunpack.c.h.b16 %v253
    %v508 = vunpack.c.l.b16 %v254
    %v509 = vunpack.c.h.b16 %v254
    %v510 = vunpack.c.l.b16 %v255
    %v511 = vunpack.c.h.b16 %v255
    %v512 = vunpack.c.l.b16 %v256
    %v513 = vunpack.c.h.b16 %v256
    %v514 = vunpack.c.l.b16 %v257
    %v515 = vunpack.c.h.b16 %v257
    %v516 = vunpack.c.l.b16 %v258
    %v517 = vunpack.c.h.b16 %v258
    %v518 = vunpack.c.l.b16 %v259
    %v519 = vunpack.c.h.b16 %v259
    %v520 = vunpack.c.l.b16 %v260
    %v521 = vunpack.c.h.b16 %v260
    %v522 = vunpack.c.l.b16 %v261
    %v523 = vunpack.c.h.b16 %v261
    %v524 = vunpack.c.l.b16 %v262
    %v525 = vunpack.c.h.b16 %v262
    %v526 = vunpack.c.l.b16 %v263
    %v527 = vunpack.c.h.b16 %v263
    %v528 = vunpack.c.l.b16 %v264
    %v529 = vunpack.c.h.b16 %v264
    %v530 = vunpack.c.l.b16 %v265
    %v531 = vunpack.c.h.b16 %v265
    %v532 = vunpack.c.l.b16 %v266
    %v533 = vunpack.c.h.b16 %v266
    %v534 = vunpack.c.l.b16 %v267
    %v535 = vunpack.c.h.b16 %v267
    %v536 = vunpack.c.l.b16 %v268
    %v537 = vunpack.c.h.b16 %v268
    %v538 = vunpack.c.l.b16 %v269
    %v539 = vunpack.c.h.b16 %v269
    %v540 = vunpack.c.l.b16 %v270
    %v541 = vunpack.c.h.b16 %v270
    %v542 = vunpack.c.l.b16 %v271
    %v543 = vunpack.c.h.b16 %v271
    %v544 = vunpack.c.l.b16 %v272
    %v545 = vunpack.c.h.b16 %v272
    %v546 = vunpack.c.l.b16 %v273
    %v547 = vunpack.c.h.b16 %v273
    %v548 = vunpack.c.l.b16 %v274
    %v549 = vunpack.c.h.b16 %v274
    %v550 = vunpack.c.l.b16 %v275
    %v551 = vunpack.c.h.b16 %v275
    %v552 = vunpack.c.l.b16 %v276
    %v553 = vunpack.c.h.b16 %v276
    %v554 = vunpack.c.l.b16 %v277
    %v555 = vunpack.c.h.b16 %v277
    %v556 = vunpack.c.l.b16 %v278
    %v557 = vunpack.c.h.b16 %v278
    %v558 = vunpack.c.l.b16 %v279
    %v559 = vunpack.c.h.b16 %v279
    %v560 = vunpack.c.l.b16 %v280
    %v561 = vunpack.c.h.b16 %v280
    %v562 = vunpack.c.l.b16 %v281
    %v563 = vunpack.c.h.b16 %v281
    %v564 = vunpack.c.l.b16 %v282
    %v565 = vunpack.c.h.b16 %v282
    %v566 = vunpack.c.l.b16 %v283
    %v567 = vunpack.c.h.b16 %v283
    %v568 = vunpack.c.l.b16 %v284
    %v569 = vunpack.c.h.b16 %v284
    %v570 = vunpack.c.l.b16 %v285
    %v571 = vunpack.c.h.b16 %v285
    %v572 = vunpack.c.l.b16 %v286
    %v573 = vunpack.c.h.b16 %v286
    %v574 = vunpack.c.l.b16 %v287
    %v575 = vunpack.c.h.b16 %v287
    %v576 = vunpack.c.l.b16 %v288
    %v577 = vunpack.c.h.b16 %v288
    %v578 = vunpack.c.l.b16 %v289
    %v579 = vunpack.c.h.b16 %v289
    %v580 = vunpack.c.l.b16 %v290
    %v581 = vunpack.c.h.b16 %v290
    %v582 = vunpack.c.l.b16 %v291
    %v583 = vunpack.c.h.b16 %v291
    %v584 = vunpack.c.l.b16 %v292
    %v585 = vunpack.c.h.b16 %v292
    %v586 = vunpack.c.l.b16 %v293
    %v587 = vunpack.c.h.b16 %v293
    %v588 = vunpack.c.l.b16 %v294
    %v589 = vunpack.c.h.b16 %v294
    %v590 = vunpack.c.l.b16 %v295
    %v591 = vunpack.c.h.b16 %v295
    %v592 = vunpack.c.l.b16 %v296
    %v593 = vunpack.c.h.b16 %v296
    %v594 = vunpack.c.l.b16 %v297
    %v595 = vunpack.c.h.b16 %v297
    %v596 = vunpack.c.l.b16 %v298
    %v597 = vunpack.c.h.b16 %v298
    %v598 = vunpack.c.l.b16 %v299
    %v599 = vunpack.c.h.b16 %v299
    %v600 = vunpack.c.l.b16 %v300
    %v601 = vunpack.c.h.b16 %v300
    %v602 = vunpack.c.l.b16 %v301
    %v603 = vunpack.c.h.b16 %v301
    %v604 = vunpack.c.l.b16 %v302
    %v605 = vunpack.c.h.b16 %v302
    %v606 = vunpack.c.l.b16 %v303
    %v607 = vunpack.c.h.b16 %v303
    %v608 = vunpack.c.l.b16 %v304
    %v609 = vunpack.c.h.b16 %v304
    %v610 = vunpack.c.l.b16 %v305
    %v611 = vunpack.c.h.b16 %v305
    %v612 = vunpack.c.l.b16 %v306
    %v613 = vunpack.c.h.b16 %v306
    %v614 = vunpack.c.l.b16 %v307
    %v615 = vunpack.c.h.b16 %v307
    %v616 = vunpack.c.l.b16 %v308
    %v617 = vunpack.c.h.b16 %v308
    %v618 = vunpack.c.l.b16 %v309
    %v619 = vunpack.c.h.b16 %v309
    %v620 = vunpack.c.l.b16 %v310
    %v621 = vunpack.c.h.b16 %v310
    %v622 = vunpack.c.l.b16 %v311
    %v623 = vunpack.c.h.b16 %v311
    %v624 = vunpack.c.l.b16 %v312
    %v625 = vunpack.c.h.b16 %v312
    %v626 = vunpack.c.l.b16 %v313
    %v627 = vunpack.c.h.b16 %v313
    %v628 = vunpack.c.l.b16 %v314
    %v629 = vunpack.c.h.b16 %v314
    %v630 = vunpack.c.l.b16 %v315
    %v631 = vunpack.c.h.b16 %v315
    %v632 = vunpack.c.l.b16 %v316
    %v633 = vunpack.c.h.b16 %v316
    %v634 = vunpack.c.l.b16 %v317
    %v635 = vunpack.c.h.b16 %v317
    %v636 = vunpack.c.l.b16 %v318
    %v637 = vunpack.c.h.b16 %v318
    %v638 = vunpack.c.l.b16 %v319
    %v639 = vunpack.c.h.b16 %v319
    %v640 = vunpack.c.l.b16 %v320
    %v641 = vunpack.c.h.b16 %v320
    %v642 = vunpack.c.l.b16 %v321
    %v643 = vunpack.c.h.b16 %v321
    %v644 = vunpack.c.l.b16 %v322
    %v645 = vunpack.c.h.b16 %v322
    %v646 = vunpack.c.l.b16 %v323
    %v647 = vunpack.c.h.b16 %v323
    %v648 = vunpack.c.l.b16 %v324
    %v649 = vunpack.c.h.b16 %v324
    %v650 = vunpack.c.l.b16 %v325
    %v651 = vunpack.c.h.b16 %v325
    %v652 = vunpack.c.l.b16 %v326
    %v653 = vunpack.c.h.b16 %v326
    %v654 = vunpack.c.l.b16 %v327
    %v655 = vunpack.c.h.b16 %v327
    %v656 = vunpack.c.l.b16 %v328
    %v657 = vunpack.c.h.b16 %v328
    %v658 = vunpack.c.l.b16 %v329
    %v659 = vunpack.c.h.b16 %v329
    %v660 = vpack.c.b16 %v474, %v468
    %v661 = vpack.c.b16 %v475, %v469
    %v662 = vpack.c.b16 %v476, %v470
    %v663 = vpack.c.b16 %v477, %v471
    %v664 = vpack.c.b16 %v478, %v472
    %v665 = vpack.c.b16 %v479, %v473
    %v666 = vpack.c.b16 %v486, %v480
    %v667 = vpack.c.b16 %v487, %v481
    %v668 = vpack.c.b16 %v488, %v482
    %v669 = vpack.c.b16 %v489, %v483
    %v670 = vpack.c.b16 %v490, %v484
    %v671 = vpack.c.b16 %v491, %v485
    %v672 = vpack.c.b16 %v498, %v492
    %v673 = vpack.c.b16 %v499, %v493
    %v674 = vpack.c.b16 %v500, %v494
    %v675 = vpack.c.b16 %v501, %v495
    %v676 = vpack.c.b16 %v502, %v496
    %v677 = vpack.c.b16 %v503, %v497
    %v678 = vpack.c.b16 %v510, %v504
    %v679 = vpack.c.b16 %v511, %v505
    %v680 = vpack.c.b16 %v512, %v506
    %v681 = vpack.c.b16 %v513, %v507
    %v682 = vpack.c.b16 %v514, %v508
    %v683 = vpack.c.b16 %v515, %v509
    %v684 = vpack.c.b16 %v522, %v516
    %v685 = vpack.c.b16 %v523, %v517
    %v686 = vpack.c.b16 %v524, %v518
    %v687 = vpack.c.b16 %v525, %v519
    %v688 = vpack.c.b16 %v526, %v520
    %v689 = vpack.c.b16 %v527, %v521
    %v690 = vpack.c.b16 %v534, %v528
    %v691 = vpack.c.b16 %v535, %v529
    %v692 = vpack.c.b16 %v536, %v530
    %v693 = vpack.c.b16 %v537, %v531
    %v694 = vpack.c.b16 %v538, %v532
    %v695 = vpack.c.b16 %v539, %v533
    %v696 = vpack.c.b16 %v546, %v540
    %v697 = vpack.c.b16 %v547, %v541
    %v698 = vpack.c.b16 %v548, %v542
    %v699 = vpack.c.b16 %v549, %v543
    %v700 = vpack.c.b16 %v550, %v544
    %v701 = vpack.c.b16 %v551, %v545
    %v702 = vpack.c.b16 %v558, %v552
    %v703 = vpack.c.b16 %v559, %v553
    %v704 = vpack.c.b16 %v560, %v554
    %v705 = vpack.c.b16 %v561, %v555
    %v706 = vpack.c.b16 %v562, %v556
    %v707 = vpack.c.b16 %v563, %v557
    %v708 = vpack.c.b16 %v570, %v564
    %v709 = vpack.c.b16 %v571, %v565
    %v710 = vpack.c.b16 %v572, %v566
    %v711 = vpack.c.b16 %v573, %v567
    %v712 = vpack.c.b16 %v574, %v568
    %v713 = vpack.c.b16 %v575, %v569
    %v714 = vpack.c.b16 %v582, %v576
    %v715 = vpack.c.b16 %v583, %v577
    %v716 = vpack.c.b16 %v584, %v578
    %v717 = vpack.c.b16 %v585, %v579
    %v718 = vpack.c.b16 %v586, %v580
    %v719 = vpack.c.b16 %v587, %v581
    %v720 = vpack.c.b16 %v594, %v588
    %v721 = vpack.c.b16 %v595, %v589
    %v722 = vpack.c.b16 %v596, %v590
    %v723 = vpack.c.b16 %v597, %v591
    %v724 = vpack.c.b16 %v598, %v592
    %v725 = vpack.c.b16 %v599, %v593
    %v726 = vpack.c.b16 %v606, %v600
    %v727 = vpack.c.b16 %v607, %v601
    %v728 = vpack.c.b16 %v608, %v602
    %v729 = vpack.c.b16 %v609, %v603
    %v730 = vpack.c.b16 %v610, %v604
    %v731 = vpack.c.b16 %v611, %v605
    %v732 = vpack.c.b16 %v618, %v612
    %v733 = vpack.c.b16 %v619, %v613
    %v734 = vpack.c.b16 %v620, %v614
    %v735 = vpack.c.b16 %v621, %v615
    %v736 = vpack.c.b16 %v622, %v616
    %v737 = vpack.c.b16 %v623, %v617
    %v738 = vpack.c.b16 %v630, %v624
    %v739 = vpack.c.b16 %v631, %v625
    %v740 = vpack.c.b16 %v632, %v626
    %v741 = vpack.c.b16 %v633, %v627
    %v742 = vpack.c.b16 %v634, %v628
    %v743 = vpack.c.b16 %v635, %v629
    %v744 = vpack.c.b16 %v642, %v636
    %v745 = vpack.c.b16 %v643, %v637
    %v746 = vpack.c.b16 %v644, %v638
    %v747 = vpack.c.b16 %v645, %v639
    %v748 = vpack.c.b16 %v646, %v640
    %v749 = vpack.c.b16 %v647, %v641
    %v750 = vpack.c.b16 %v654, %v648
    %v751 = vpack.c.b16 %v655, %v649
    %v752 = vpack.c.b16 %v656, %v650
    %v753 = vpack.c.b16 %v657, %v651
    %v754 = vpack.c.b16 %v658, %v652
    %v755 = vpack.c.b16 %v659, %v653
    %852 = vmatprep.subr.bf16.mxu0 %v661
    %853 = vmatpush1.bf16.msra.mxu0 %v660
    %854 = vmatprep.subr.bf16.mxu0 %v667
    %855 = vmatpush1.bf16.msra.mxu0 %v666
    %856 = vmatprep.subr.bf16.mxu0 %v673
    %857 = vmatpush1.bf16.msra.mxu0 %v672
    %858 = vmatprep.subr.bf16.mxu0 %v679
    %859 = vmatpush1.bf16.msra.mxu0 %v678
    %860 = vmatprep.subr.bf16.mxu0 %v685
    %861 = vmatpush1.bf16.msra.mxu0 %v684
    %862 = vmatprep.subr.bf16.mxu0 %v691
    %863 = vmatpush1.bf16.msra.mxu0 %v690
    %864 = vmatprep.subr.bf16.mxu0 %v697
    %865 = vmatpush1.bf16.msra.mxu0 %v696
    %866 = vmatprep.subr.bf16.mxu0 %v703
    %867 = vmatpush1.bf16.msra.mxu0 %v702
    %868 = vmatprep.subr.bf16.mxu0 %v709
    %869 = vmatpush1.bf16.msra.mxu0 %v708
    %870 = vmatprep.subr.bf16.mxu0 %v715
    %871 = vmatpush1.bf16.msra.mxu0 %v714
    %872 = vmatprep.subr.bf16.mxu0 %v721
    %873 = vmatpush1.bf16.msra.mxu0 %v720
    %874 = vmatprep.subr.bf16.mxu0 %v727
    %875 = vmatpush1.bf16.msra.mxu0 %v726
    %876 = vmatprep.subr.bf16.mxu0 %v733
    %877 = vmatpush1.bf16.msra.mxu0 %v732
    %878 = vmatprep.subr.bf16.mxu0 %v739
    %879 = vmatpush1.bf16.msra.mxu0 %v738
    %880 = vmatprep.subr.bf16.mxu0 %v745
    %881 = vmatpush1.bf16.msra.mxu0 %v744
    %882 = vmatprep.subr.bf16.mxu0 %v751
    %883 = vmatpush1.bf16.msra.mxu0 %v750
    %884 = vmatprep.mubr.bf16.mxu0 %v369
    %885 = vmatmul.mubr.bf16.gmra.mrb[0].mxu0 %v368
    %v886 = vpop.f32.mrb[0].mxu0
    %v887 = vadd.f32 %v335, %v886
    %v888 = vpop.f32.mrb[0].mxu0
    %v889 = vadd.f32 %v339, %v888
    %v890 = vpop.f32.mrb[0].mxu0
    %v891 = vadd.f32 %v335, %v890
    %v892 = vpop.f32.mrb[0].mxu0
    %v893 = vadd.f32 %v339, %v892
    %894 = vdwg.mxu0
    %895 = vmatprep.subr.bf16.mxu0 %v663
    %896 = vmatpush1.bf16.msra.mxu0 %v662
    %897 = vmatprep.subr.bf16.mxu0 %v669
    %898 = vmatpush1.bf16.msra.mxu0 %v668
    %899 = vmatprep.subr.bf16.mxu0 %v675
    %900 = vmatpush1.bf16.msra.mxu0 %v674
    %901 = vmatprep.subr.bf16.mxu0 %v681
    %902 = vmatpush1.bf16.msra.mxu0 %v680
    %903 = vmatprep.subr.bf16.mxu0 %v687
    %904 = vmatpush1.bf16.msra.mxu0 %v686
    %905 = vmatprep.subr.bf16.mxu0 %v693
    %906 = vmatpush1.bf16.msra.mxu0 %v692
    %907 = vmatprep.subr.bf16.mxu0 %v699
    %908 = vmatpush1.bf16.msra.mxu0 %v698
    %909 = vmatprep.subr.bf16.mxu0 %v705
    %910 = vmatpush1.bf16.msra.mxu0 %v704
    %911 = vmatprep.subr.bf16.mxu0 %v711
    %912 = vmatpush1.bf16.msra.mxu0 %v710
    %913 = vmatprep.subr.bf16.mxu0 %v717
    %914 = vmatpush1.bf16.msra.mxu0 %v716
    %915 = vmatprep.subr.bf16.mxu0 %v723
    %916 = vmatpush1.bf16.msra.mxu0 %v722
    %917 = vmatprep.subr.bf16.mxu0 %v729
    %918 = vmatpush1.bf16.msra.mxu0 %v728
    %919 = vmatprep.subr.bf16.mxu0 %v735
    %920 = vmatpush1.bf16.msra.mxu0 %v734
    %921 = vmatprep.subr.bf16.mxu0 %v741
    %922 = vmatpush1.bf16.msra.mxu0 %v740
    %923 = vmatprep.subr.bf16.mxu0 %v747
    %924 = vmatpush1.bf16.msra.mxu0 %v746
    %925 = vmatprep.subr.bf16.mxu0 %v753
    %926 = vmatpush1.bf16.msra.mxu0 %v752
    %927 = vmatprep.mubr.bf16.mxu0 %v369
    %928 = vmatmul.mubr.bf16.gmra.mrb[0].mxu0 %v368
    %v929 = vpop.f32.mrb[0].mxu0
    %v930 = vadd.f32 %v343, %v929
    %v931 = vpop.f32.mrb[0].mxu0
    %v932 = vadd.f32 %v347, %v931
    %v933 = vpop.f32.mrb[0].mxu0
    %v934 = vadd.f32 %v343, %v933
    %v935 = vpop.f32.mrb[0].mxu0
    %v936 = vadd.f32 %v347, %v935
    %937 = vdwg.mxu0
    %938 = vmatprep.subr.bf16.mxu0 %v665
    %939 = vmatpush1.bf16.msra.mxu0 %v664
    %940 = vmatprep.subr.bf16.mxu0 %v671
    %941 = vmatpush1.bf16.msra.mxu0 %v670
    %942 = vmatprep.subr.bf16.mxu0 %v677
    %943 = vmatpush1.bf16.msra.mxu0 %v676
    %944 = vmatprep.subr.bf16.mxu0 %v683
    %945 = vmatpush1.bf16.msra.mxu0 %v682
    %946 = vmatprep.subr.bf16.mxu0 %v689
    %947 = vmatpush1.bf16.msra.mxu0 %v688
    %948 = vmatprep.subr.bf16.mxu0 %v695
    %949 = vmatpush1.bf16.msra.mxu0 %v694
    %950 = vmatprep.subr.bf16.mxu0 %v701
    %951 = vmatpush1.bf16.msra.mxu0 %v700
    %952 = vmatprep.subr.bf16.mxu0 %v707
    %953 = vmatpush1.bf16.msra.mxu0 %v706
    %954 = vmatprep.subr.bf16.mxu0 %v713
    %955 = vmatpush1.bf16.msra.mxu0 %v712
    %956 = vmatprep.subr.bf16.mxu0 %v719
    %957 = vmatpush1.bf16.msra.mxu0 %v718
    %958 = vmatprep.subr.bf16.mxu0 %v725
    %959 = vmatpush1.bf16.msra.mxu0 %v724
    %960 = vmatprep.subr.bf16.mxu0 %v731
    %961 = vmatpush1.bf16.msra.mxu0 %v730
    %962 = vmatprep.subr.bf16.mxu0 %v737
    %963 = vmatpush1.bf16.msra.mxu0 %v736
    %964 = vmatprep.subr.bf16.mxu0 %v743
    %965 = vmatpush1.bf16.msra.mxu0 %v742
    %966 = vmatprep.subr.bf16.mxu0 %v749
    %967 = vmatpush1.bf16.msra.mxu0 %v748
    %968 = vmatprep.subr.bf16.mxu0 %v755
    %969 = vmatpush1.bf16.msra.mxu0 %v754
    %970 = vmatprep.mubr.bf16.mxu0 %v369
    %971 = vmatmul.mubr.bf16.gmra.mrb[0].mxu0 %v368
    %v972 = vpop.f32.mrb[0].mxu0
    %v973 = vadd.f32 %v351, %v972
    %v974 = vpop.f32.mrb[0].mxu0
    %v975 = vadd.f32 %v355, %v974
    %v976 = vpop.f32.mrb[0].mxu0
    %v977 = vadd.f32 %v351, %v976
    %v978 = vpop.f32.mrb[0].mxu0
    %v979 = vadd.f32 %v355, %v978
    %980 = vdwg.mxu0
    %v981 = vmax.f32 %v887, 0.0
    %v982 = vmax.f32 %v889, 0.0
    %v983 = vmax.f32 %v930, 0.0
    %v984 = vmax.f32 %v932, 0.0
    %v985 = vmax.f32 %v973, 0.0
    %v986 = vmax.f32 %v975, 0.0
    %v987 = vmax.f32 %v891, 0.0
    %v988 = vmax.f32 %v893, 0.0
    %v989 = vmax.f32 %v934, 0.0
    %v990 = vmax.f32 %v936, 0.0
    %v991 = vmax.f32 %v977, 0.0
    %v992 = vmax.f32 %v979, 0.0
    %v993 = vpack.c.bf16 %v987, %v981
    %v994 = vpack.c.bf16 %v988, %v982
    %v995 = vpack.c.bf16 %v989, %v983
    %v996 = vpack.c.bf16 %v990, %v984
    %v997 = vpack.c.bf16 %v991, %v985
    %v998 = vpack.c.bf16 %v992, %v986
    %v999 = vld [vmem:[#allocation11] sm:$0xff]
    %v1000 = vld [vmem:[#allocation11 + $0x8] sm:$0xff]
    %v1001 = vld [vmem:[#allocation11 + $0x10] sm:$0xff]
    %v1002 = vld [vmem:[#allocation11 + $0x18] sm:$0xff]
    %v1003 = vld [vmem:[#allocation11 + $0x20] sm:$0xff]
    %v1004 = vld [vmem:[#allocation11 + $0x28] sm:$0xff]
    %v1005 = vld [vmem:[#allocation11 + $0x30] sm:$0xff]
    %v1006 = vld [vmem:[#allocation11 + $0x38] sm:$0xff]
    %v1007 = vld [vmem:[#allocation11 + $0x40] sm:$0xff]
    %v1008 = vld [vmem:[#allocation11 + $0x48] sm:$0xff]
    %v1009 = vld [vmem:[#allocation11 + $0x50] sm:$0xff]
    %v1010 = vld [vmem:[#allocation11 + $0x58] sm:$0xff]
    %v1011 = vld [vmem:[#allocation11 + $0x60] sm:$0xff]
    %v1012 = vld [vmem:[#allocation11 + $0x68] sm:$0xff]
    %v1013 = vld [vmem:[#allocation11 + $0x70] sm:$0xff]
    %v1014 = vld [vmem:[#allocation11 + $0x78] sm:$0xff]
    %v1015 = vld [vmem:[#allocation11 + $0x80] sm:$0xff]
    %v1016 = vld [vmem:[#allocation11 + $0x88] sm:$0xff]
    %v1017 = vld [vmem:[#allocation11 + $0x90] sm:$0xff]
    %v1018 = vld [vmem:[#allocation11 + $0x98] sm:$0xff]
    %v1019 = vld [vmem:[#allocation11 + $0xa0] sm:$0xff]
    %v1020 = vld [vmem:[#allocation11 + $0xa8] sm:$0xff]
    %v1021 = vld [vmem:[#allocation11 + $0xb0] sm:$0xff]
    %v1022 = vld [vmem:[#allocation11 + $0xb8] sm:$0xff]
    %v1023 = vld [vmem:[#allocation11 + $0xc0] sm:$0xff]
    %v1024 = vld [vmem:[#allocation11 + $0xc8] sm:$0xff]
    %v1025 = vld [vmem:[#allocation11 + $0xd0] sm:$0xff]
    %v1026 = vld [vmem:[#allocation11 + $0xd8] sm:$0xff]
    %v1027 = vld [vmem:[#allocation11 + $0xe0] sm:$0xff]
    %v1028 = vld [vmem:[#allocation11 + $0xe8] sm:$0xff]
    %v1029 = vld [vmem:[#allocation11 + $0xf0] sm:$0xff]
    %v1030 = vld [vmem:[#allocation11 + $0xf8] sm:$0xff]
    %v1031 = vld [vmem:[#allocation11 + $0x100] sm:$0xff]
    %v1032 = vld [vmem:[#allocation11 + $0x108] sm:$0xff]
    %v1033 = vld [vmem:[#allocation11 + $0x110] sm:$0xff]
    %v1034 = vld [vmem:[#allocation11 + $0x118] sm:$0xff]
    %v1035 = vld [vmem:[#allocation11 + $0x120] sm:$0xff]
    %v1036 = vld [vmem:[#allocation11 + $0x128] sm:$0xff]
    %v1037 = vld [vmem:[#allocation11 + $0x130] sm:$0xff]
    %v1038 = vld [vmem:[#allocation11 + $0x138] sm:$0xff]
    %v1039 = vld [vmem:[#allocation11 + $0x140] sm:$0xff]
    %v1040 = vld [vmem:[#allocation11 + $0x148] sm:$0xff]
    %v1041 = vld [vmem:[#allocation11 + $0x150] sm:$0xff]
    %v1042 = vld [vmem:[#allocation11 + $0x158] sm:$0xff]
    %v1043 = vld [vmem:[#allocation11 + $0x160] sm:$0xff]
    %v1044 = vld [vmem:[#allocation11 + $0x168] sm:$0xff]
    %v1045 = vld [vmem:[#allocation11 + $0x170] sm:$0xff]
    %v1046 = vld [vmem:[#allocation11 + $0x178] sm:$0xff]
    %v1047 = vld [vmem:[#allocation11 + $0x180] sm:$0xff]
    %v1048 = vld [vmem:[#allocation11 + $0x188] sm:$0xff]
    %v1049 = vld [vmem:[#allocation11 + $0x190] sm:$0xff]
    %v1050 = vld [vmem:[#allocation11 + $0x198] sm:$0xff]
    %v1051 = vld [vmem:[#allocation11 + $0x1a0] sm:$0xff]
    %v1052 = vld [vmem:[#allocation11 + $0x1a8] sm:$0xff]
    %v1053 = vld [vmem:[#allocation11 + $0x1b0] sm:$0xff]
    %v1054 = vld [vmem:[#allocation11 + $0x1b8] sm:$0xff]
    %v1055 = vld [vmem:[#allocation11 + $0x1c0] sm:$0xff]
    %v1056 = vld [vmem:[#allocation11 + $0x1c8] sm:$0xff]
    %v1057 = vld [vmem:[#allocation11 + $0x1d0] sm:$0xff]
    %v1058 = vld [vmem:[#allocation11 + $0x1d8] sm:$0xff]
    %v1059 = vld [vmem:[#allocation11 + $0x1e0] sm:$0xff]
    %v1060 = vld [vmem:[#allocation11 + $0x1e8] sm:$0xff]
    %v1061 = vld [vmem:[#allocation11 + $0x1f0] sm:$0xff]
    %v1062 = vld [vmem:[#allocation11 + $0x1f8] sm:$0xff]
    %v1063 = vld [vmem:[#allocation11 + $0x200] sm:$0xff]
    %v1064 = vld [vmem:[#allocation11 + $0x208] sm:$0xff]
    %v1065 = vld [vmem:[#allocation11 + $0x210] sm:$0xff]
    %v1066 = vld [vmem:[#allocation11 + $0x218] sm:$0xff]
    %v1067 = vld [vmem:[#allocation11 + $0x220] sm:$0xff]
    %v1068 = vld [vmem:[#allocation11 + $0x228] sm:$0xff]
    %v1069 = vld [vmem:[#allocation11 + $0x230] sm:$0xff]
    %v1070 = vld [vmem:[#allocation11 + $0x238] sm:$0xff]
    %v1071 = vld [vmem:[#allocation11 + $0x240] sm:$0xff]
    %v1072 = vld [vmem:[#allocation11 + $0x248] sm:$0xff]
    %v1073 = vld [vmem:[#allocation11 + $0x250] sm:$0xff]
    %v1074 = vld [vmem:[#allocation11 + $0x258] sm:$0xff]
    %v1075 = vld [vmem:[#allocation11 + $0x260] sm:$0xff]
    %v1076 = vld [vmem:[#allocation11 + $0x268] sm:$0xff]
    %v1077 = vld [vmem:[#allocation11 + $0x270] sm:$0xff]
    %v1078 = vld [vmem:[#allocation11 + $0x278] sm:$0xff]
    %v1079 = vld [vmem:[#allocation11 + $0x280] sm:$0xff]
    %v1080 = vld [vmem:[#allocation11 + $0x288] sm:$0xff]
    %v1081 = vld [vmem:[#allocation11 + $0x290] sm:$0xff]
    %v1082 = vld [vmem:[#allocation11 + $0x298] sm:$0xff]
    %v1083 = vld [vmem:[#allocation11 + $0x2a0] sm:$0xff]
    %v1084 = vld [vmem:[#allocation11 + $0x2a8] sm:$0xff]
    %v1085 = vld [vmem:[#allocation11 + $0x2b0] sm:$0xff]
    %v1086 = vld [vmem:[#allocation11 + $0x2b8] sm:$0xff]
    %v1087 = vld [vmem:[#allocation11 + $0x2c0] sm:$0xff]
    %v1088 = vld [vmem:[#allocation11 + $0x2c8] sm:$0xff]
    %v1089 = vld [vmem:[#allocation11 + $0x2d0] sm:$0xff]
    %v1090 = vld [vmem:[#allocation11 + $0x2d8] sm:$0xff]
    %v1091 = vld [vmem:[#allocation11 + $0x2e0] sm:$0xff]
    %v1092 = vld [vmem:[#allocation11 + $0x2e8] sm:$0xff]
    %v1093 = vld [vmem:[#allocation11 + $0x2f0] sm:$0xff]
    %v1094 = vld [vmem:[#allocation11 + $0x2f8] sm:$0xff]
    %v1095 = vld [vmem:[#allocation11 + $0x300] sm:$0xff]
    %v1096 = vld [vmem:[#allocation11 + $0x308] sm:$0xff]
    %v1097 = vld [vmem:[#allocation11 + $0x310] sm:$0xff]
    %v1098 = vld [vmem:[#allocation11 + $0x318] sm:$0xff]
    %v1099 = vld [vmem:[#allocation11 + $0x320] sm:$0xff]
    %v1100 = vld [vmem:[#allocation11 + $0x328] sm:$0xff]
    %v1101 = vld [vmem:[#allocation11 + $0x330] sm:$0xff]
    %v1102 = vld [vmem:[#allocation11 + $0x338] sm:$0xff]
    %v1103 = vld [vmem:[#allocation11 + $0x340] sm:$0xff]
    %v1104 = vld [vmem:[#allocation11 + $0x348] sm:$0xff]
    %v1105 = vld [vmem:[#allocation11 + $0x350] sm:$0xff]
    %v1106 = vld [vmem:[#allocation11 + $0x358] sm:$0xff]
    %v1107 = vld [vmem:[#allocation11 + $0x360] sm:$0xff]
    %v1108 = vld [vmem:[#allocation11 + $0x368] sm:$0xff]
    %v1109 = vld [vmem:[#allocation11 + $0x370] sm:$0xff]
    %v1110 = vld [vmem:[#allocation11 + $0x378] sm:$0xff]
    %v1111 = vld [vmem:[#allocation11 + $0x380] sm:$0xff]
    %v1112 = vld [vmem:[#allocation11 + $0x388] sm:$0xff]
    %v1113 = vld [vmem:[#allocation11 + $0x390] sm:$0xff]
    %v1114 = vld [vmem:[#allocation11 + $0x398] sm:$0xff]
    %v1115 = vld [vmem:[#allocation11 + $0x3a0] sm:$0xff]
    %v1116 = vld [vmem:[#allocation11 + $0x3a8] sm:$0xff]
    %v1117 = vld [vmem:[#allocation11 + $0x3b0] sm:$0xff]
    %v1118 = vld [vmem:[#allocation11 + $0x3b8] sm:$0xff]
    %v1119 = vld [vmem:[#allocation11 + $0x3c0] sm:$0xff]
    %v1120 = vld [vmem:[#allocation11 + $0x3c8] sm:$0xff]
    %v1121 = vld [vmem:[#allocation11 + $0x3d0] sm:$0xff]
    %v1122 = vld [vmem:[#allocation11 + $0x3d8] sm:$0xff]
    %v1123 = vld [vmem:[#allocation11 + $0x3e0] sm:$0xff]
    %v1124 = vld [vmem:[#allocation11 + $0x3e8] sm:$0xff]
    %v1125 = vld [vmem:[#allocation11 + $0x3f0] sm:$0xff]
    %v1126 = vld [vmem:[#allocation11 + $0x3f8] sm:$0xff]
    %v1127 = vld [vmem:[#allocation11 + $0x400] sm:$0xff]
    %v1128 = vld [vmem:[#allocation11 + $0x408] sm:$0xff]
    %v1129 = vld [vmem:[#allocation11 + $0x410] sm:$0xff]
    %v1130 = vld [vmem:[#allocation11 + $0x418] sm:$0xff]
    %v1131 = vld [vmem:[#allocation11 + $0x420] sm:$0xff]
    %v1132 = vld [vmem:[#allocation11 + $0x428] sm:$0xff]
    %v1133 = vld [vmem:[#allocation11 + $0x430] sm:$0xff]
    %v1134 = vld [vmem:[#allocation11 + $0x438] sm:$0xff]
    %v1135 = vld [vmem:[#allocation11 + $0x440] sm:$0xff]
    %v1136 = vld [vmem:[#allocation11 + $0x448] sm:$0xff]
    %v1137 = vld [vmem:[#allocation11 + $0x450] sm:$0xff]
    %v1138 = vld [vmem:[#allocation11 + $0x458] sm:$0xff]
    %v1139 = vld [vmem:[#allocation11 + $0x460] sm:$0xff]
    %v1140 = vld [vmem:[#allocation11 + $0x468] sm:$0xff]
    %v1141 = vld [vmem:[#allocation11 + $0x470] sm:$0xff]
    %v1142 = vld [vmem:[#allocation11 + $0x478] sm:$0xff]
    %v1143 = vld [vmem:[#allocation11 + $0x480] sm:$0xff]
    %v1144 = vld [vmem:[#allocation11 + $0x488] sm:$0xff]
    %v1145 = vld [vmem:[#allocation11 + $0x490] sm:$0xff]
    %v1146 = vld [vmem:[#allocation11 + $0x498] sm:$0xff]
    %v1147 = vld [vmem:[#allocation11 + $0x4a0] sm:$0xff]
    %v1148 = vld [vmem:[#allocation11 + $0x4a8] sm:$0xff]
    %v1149 = vld [vmem:[#allocation11 + $0x4b0] sm:$0xff]
    %v1150 = vld [vmem:[#allocation11 + $0x4b8] sm:$0xff]
    %v1151 = vld [vmem:[#allocation11 + $0x4c0] sm:$0xff]
    %v1152 = vld [vmem:[#allocation11 + $0x4c8] sm:$0xff]
    %v1153 = vld [vmem:[#allocation11 + $0x4d0] sm:$0xff]
    %v1154 = vld [vmem:[#allocation11 + $0x4d8] sm:$0xff]
    %v1155 = vld [vmem:[#allocation11 + $0x4e0] sm:$0xff]
    %v1156 = vld [vmem:[#allocation11 + $0x4e8] sm:$0xff]
    %v1157 = vld [vmem:[#allocation11 + $0x4f0] sm:$0xff]
    %v1158 = vld [vmem:[#allocation11 + $0x4f8] sm:$0xff]
    %v1159 = vld [vmem:[#allocation11 + $0x500] sm:$0xff]
    %v1160 = vld [vmem:[#allocation11 + $0x508] sm:$0xff]
    %v1161 = vld [vmem:[#allocation11 + $0x510] sm:$0xff]
    %v1162 = vld [vmem:[#allocation11 + $0x518] sm:$0xff]
    %v1163 = vld [vmem:[#allocation11 + $0x520] sm:$0xff]
    %v1164 = vld [vmem:[#allocation11 + $0x528] sm:$0xff]
    %v1165 = vld [vmem:[#allocation11 + $0x530] sm:$0xff]
    %v1166 = vld [vmem:[#allocation11 + $0x538] sm:$0xff]
    %v1167 = vld [vmem:[#allocation11 + $0x540] sm:$0xff]
    %v1168 = vld [vmem:[#allocation11 + $0x548] sm:$0xff]
    %v1169 = vld [vmem:[#allocation11 + $0x550] sm:$0xff]
    %v1170 = vld [vmem:[#allocation11 + $0x558] sm:$0xff]
    %v1171 = vld [vmem:[#allocation11 + $0x560] sm:$0xff]
    %v1172 = vld [vmem:[#allocation11 + $0x568] sm:$0xff]
    %v1173 = vld [vmem:[#allocation11 + $0x570] sm:$0xff]
    %v1174 = vld [vmem:[#allocation11 + $0x578] sm:$0xff]
    %v1175 = vld [vmem:[#allocation11 + $0x580] sm:$0xff]
    %v1176 = vld [vmem:[#allocation11 + $0x588] sm:$0xff]
    %v1177 = vld [vmem:[#allocation11 + $0x590] sm:$0xff]
    %v1178 = vld [vmem:[#allocation11 + $0x598] sm:$0xff]
    %v1179 = vld [vmem:[#allocation11 + $0x5a0] sm:$0xff]
    %v1180 = vld [vmem:[#allocation11 + $0x5a8] sm:$0xff]
    %v1181 = vld [vmem:[#allocation11 + $0x5b0] sm:$0xff]
    %v1182 = vld [vmem:[#allocation11 + $0x5b8] sm:$0xff]
    %v1183 = vld [vmem:[#allocation11 + $0x5c0] sm:$0xff]
    %v1184 = vld [vmem:[#allocation11 + $0x5c8] sm:$0xff]
    %v1185 = vld [vmem:[#allocation11 + $0x5d0] sm:$0xff]
    %v1186 = vld [vmem:[#allocation11 + $0x5d8] sm:$0xff]
    %v1187 = vld [vmem:[#allocation11 + $0x5e0] sm:$0xff]
    %v1188 = vld [vmem:[#allocation11 + $0x5e8] sm:$0xff]
    %v1189 = vld [vmem:[#allocation11 + $0x5f0] sm:$0xff]
    %v1190 = vld [vmem:[#allocation11 + $0x5f8] sm:$0xff]
    %v1191 = vld [vmem:[#allocation11 + $0x600] sm:$0xff]
    %v1192 = vld [vmem:[#allocation11 + $0x608] sm:$0xff]
    %v1193 = vld [vmem:[#allocation11 + $0x610] sm:$0xff]
    %v1194 = vld [vmem:[#allocation11 + $0x618] sm:$0xff]
    %v1195 = vld [vmem:[#allocation11 + $0x620] sm:$0xff]
    %v1196 = vld [vmem:[#allocation11 + $0x628] sm:$0xff]
    %v1197 = vld [vmem:[#allocation11 + $0x630] sm:$0xff]
    %v1198 = vld [vmem:[#allocation11 + $0x638] sm:$0xff]
    %v1199 = vld [vmem:[#allocation11 + $0x640] sm:$0xff]
    %v1200 = vld [vmem:[#allocation11 + $0x648] sm:$0xff]
    %v1201 = vld [vmem:[#allocation11 + $0x650] sm:$0xff]
    %v1202 = vld [vmem:[#allocation11 + $0x658] sm:$0xff]
    %v1203 = vld [vmem:[#allocation11 + $0x660] sm:$0xff]
    %v1204 = vld [vmem:[#allocation11 + $0x668] sm:$0xff]
    %v1205 = vld [vmem:[#allocation11 + $0x670] sm:$0xff]
    %v1206 = vld [vmem:[#allocation11 + $0x678] sm:$0xff]
    %v1207 = vld [vmem:[#allocation11 + $0x680] sm:$0xff]
    %v1208 = vld [vmem:[#allocation11 + $0x688] sm:$0xff]
    %v1209 = vld [vmem:[#allocation11 + $0x690] sm:$0xff]
    %v1210 = vld [vmem:[#allocation11 + $0x698] sm:$0xff]
    %v1211 = vld [vmem:[#allocation11 + $0x6a0] sm:$0xff]
    %v1212 = vld [vmem:[#allocation11 + $0x6a8] sm:$0xff]
    %v1213 = vld [vmem:[#allocation11 + $0x6b0] sm:$0xff]
    %v1214 = vld [vmem:[#allocation11 + $0x6b8] sm:$0xff]
    %v1215 = vld [vmem:[#allocation11 + $0x6c0] sm:$0xff]
    %v1216 = vld [vmem:[#allocation11 + $0x6c8] sm:$0xff]
    %v1217 = vld [vmem:[#allocation11 + $0x6d0] sm:$0xff]
    %v1218 = vld [vmem:[#allocation11 + $0x6d8] sm:$0xff]
    %v1219 = vld [vmem:[#allocation11 + $0x6e0] sm:$0xff]
    %v1220 = vld [vmem:[#allocation11 + $0x6e8] sm:$0xff]
    %v1221 = vld [vmem:[#allocation11 + $0x6f0] sm:$0xff]
    %v1222 = vld [vmem:[#allocation11 + $0x6f8] sm:$0xff]
    %v1223 = vld [vmem:[#allocation11 + $0x700] sm:$0xff]
    %v1224 = vld [vmem:[#allocation11 + $0x708] sm:$0xff]
    %v1225 = vld [vmem:[#allocation11 + $0x710] sm:$0xff]
    %v1226 = vld [vmem:[#allocation11 + $0x718] sm:$0xff]
    %v1227 = vld [vmem:[#allocation11 + $0x720] sm:$0xff]
    %v1228 = vld [vmem:[#allocation11 + $0x728] sm:$0xff]
    %v1229 = vld [vmem:[#allocation11 + $0x730] sm:$0xff]
    %v1230 = vld [vmem:[#allocation11 + $0x738] sm:$0xff]
    %v1231 = vld [vmem:[#allocation11 + $0x740] sm:$0xff]
    %v1232 = vld [vmem:[#allocation11 + $0x748] sm:$0xff]
    %v1233 = vld [vmem:[#allocation11 + $0x750] sm:$0xff]
    %v1234 = vld [vmem:[#allocation11 + $0x758] sm:$0xff]
    %v1235 = vld [vmem:[#allocation11 + $0x760] sm:$0xff]
    %v1236 = vld [vmem:[#allocation11 + $0x768] sm:$0xff]
    %v1237 = vld [vmem:[#allocation11 + $0x770] sm:$0xff]
    %v1238 = vld [vmem:[#allocation11 + $0x778] sm:$0xff]
    %v1239 = vld [vmem:[#allocation11 + $0x780] sm:$0xff]
    %v1240 = vld [vmem:[#allocation11 + $0x788] sm:$0xff]
    %v1241 = vld [vmem:[#allocation11 + $0x790] sm:$0xff]
    %v1242 = vld [vmem:[#allocation11 + $0x798] sm:$0xff]
    %v1243 = vld [vmem:[#allocation11 + $0x7a0] sm:$0xff]
    %v1244 = vld [vmem:[#allocation11 + $0x7a8] sm:$0xff]
    %v1245 = vld [vmem:[#allocation11 + $0x7b0] sm:$0xff]
    %v1246 = vld [vmem:[#allocation11 + $0x7b8] sm:$0xff]
    %v1247 = vld [vmem:[#allocation11 + $0x7c0] sm:$0xff]
    %v1248 = vld [vmem:[#allocation11 + $0x7c8] sm:$0xff]
    %v1249 = vld [vmem:[#allocation11 + $0x7d0] sm:$0xff]
    %v1250 = vld [vmem:[#allocation11 + $0x7d8] sm:$0xff]
    %v1251 = vld [vmem:[#allocation11 + $0x7e0] sm:$0xff]
    %v1252 = vld [vmem:[#allocation11 + $0x7e8] sm:$0xff]
    %v1253 = vld [vmem:[#allocation11 + $0x7f0] sm:$0xff]
    %v1254 = vld [vmem:[#allocation11 + $0x7f8] sm:$0xff]
    %v1255 = vld [vmem:[#allocation11 + $0x800] sm:$0xff]
    %v1256 = vld [vmem:[#allocation11 + $0x808] sm:$0xff]
    %v1257 = vld [vmem:[#allocation11 + $0x810] sm:$0xff]
    %v1258 = vld [vmem:[#allocation11 + $0x818] sm:$0xff]
    %v1259 = vld [vmem:[#allocation11 + $0x820] sm:$0xff]
    %v1260 = vld [vmem:[#allocation11 + $0x828] sm:$0xff]
    %v1261 = vld [vmem:[#allocation11 + $0x830] sm:$0xff]
    %v1262 = vld [vmem:[#allocation11 + $0x838] sm:$0xff]
    %v1263 = vld [vmem:[#allocation11 + $0x840] sm:$0xff]
    %v1264 = vld [vmem:[#allocation11 + $0x848] sm:$0xff]
    %v1265 = vld [vmem:[#allocation11 + $0x850] sm:$0xff]
    %v1266 = vld [vmem:[#allocation11 + $0x858] sm:$0xff]
    %v1267 = vld [vmem:[#allocation11 + $0x860] sm:$0xff]
    %v1268 = vld [vmem:[#allocation11 + $0x868] sm:$0xff]
    %v1269 = vld [vmem:[#allocation11 + $0x870] sm:$0xff]
    %v1270 = vld [vmem:[#allocation11 + $0x878] sm:$0xff]
    %v1271 = vld [vmem:[#allocation11 + $0x880] sm:$0xff]
    %v1272 = vld [vmem:[#allocation11 + $0x888] sm:$0xff]
    %v1273 = vld [vmem:[#allocation11 + $0x890] sm:$0xff]
    %v1274 = vld [vmem:[#allocation11 + $0x898] sm:$0xff]
    %v1275 = vld [vmem:[#allocation11 + $0x8a0] sm:$0xff]
    %v1276 = vld [vmem:[#allocation11 + $0x8a8] sm:$0xff]
    %v1277 = vld [vmem:[#allocation11 + $0x8b0] sm:$0xff]
    %v1278 = vld [vmem:[#allocation11 + $0x8b8] sm:$0xff]
    %v1279 = vld [vmem:[#allocation11 + $0x8c0] sm:$0xff]
    %v1280 = vld [vmem:[#allocation11 + $0x8c8] sm:$0xff]
    %v1281 = vld [vmem:[#allocation11 + $0x8d0] sm:$0xff]
    %v1282 = vld [vmem:[#allocation11 + $0x8d8] sm:$0xff]
    %v1283 = vld [vmem:[#allocation11 + $0x8e0] sm:$0xff]
    %v1284 = vld [vmem:[#allocation11 + $0x8e8] sm:$0xff]
    %v1285 = vld [vmem:[#allocation11 + $0x8f0] sm:$0xff]
    %v1286 = vld [vmem:[#allocation11 + $0x8f8] sm:$0xff]
    %v1287 = vld [vmem:[#allocation12] sm:$0x3f]
    %v1289 = vlaneseq
    %v1290 = vshrl.u32 %v1289, 7
    %v1291 = vsub.s32 0, %v1290
    %v1292 = vrot.slane %v1287, %v1291
    %v1293 = vlaneseq
    %v1294 = vshrl.u32 %v1293, 7
    %v1295 = vsub.s32 1, %v1294
    %v1296 = vrot.slane %v1287, %v1295
    %v1297 = vlaneseq
    %v1298 = vshrl.u32 %v1297, 7
    %v1299 = vsub.s32 2, %v1298
    %v1300 = vrot.slane %v1287, %v1299
    %v1301 = vlaneseq
    %v1302 = vshrl.u32 %v1301, 7
    %v1303 = vsub.s32 3, %v1302
    %v1304 = vrot.slane %v1287, %v1303
    %v1305 = vlaneseq
    %v1306 = vshrl.u32 %v1305, 7
    %v1307 = vsub.s32 4, %v1306
    %v1308 = vrot.slane %v1287, %v1307
    %v1309 = vlaneseq
    %v1310 = vshrl.u32 %v1309, 7
    %v1311 = vsub.s32 5, %v1310
    %v1312 = vrot.slane %v1287, %v1311
    %v1607 = vunpack.c.l.b16 %v999
    %v1608 = vunpack.c.h.b16 %v999
    %v1609 = vunpack.c.l.b16 %v1000
    %v1610 = vunpack.c.h.b16 %v1000
    %v1611 = vunpack.c.l.b16 %v1001
    %v1612 = vunpack.c.h.b16 %v1001
    %v1613 = vunpack.c.l.b16 %v1002
    %v1614 = vunpack.c.h.b16 %v1002
    %v1615 = vunpack.c.l.b16 %v1003
    %v1616 = vunpack.c.h.b16 %v1003
    %v1617 = vunpack.c.l.b16 %v1004
    %v1618 = vunpack.c.h.b16 %v1004
    %v1619 = vunpack.c.l.b16 %v1005
    %v1620 = vunpack.c.h.b16 %v1005
    %v1621 = vunpack.c.l.b16 %v1006
    %v1622 = vunpack.c.h.b16 %v1006
    %v1623 = vunpack.c.l.b16 %v1007
    %v1624 = vunpack.c.h.b16 %v1007
    %v1625 = vunpack.c.l.b16 %v1008
    %v1626 = vunpack.c.h.b16 %v1008
    %v1627 = vunpack.c.l.b16 %v1009
    %v1628 = vunpack.c.h.b16 %v1009
    %v1629 = vunpack.c.l.b16 %v1010
    %v1630 = vunpack.c.h.b16 %v1010
    %v1631 = vunpack.c.l.b16 %v1011
    %v1632 = vunpack.c.h.b16 %v1011
    %v1633 = vunpack.c.l.b16 %v1012
    %v1634 = vunpack.c.h.b16 %v1012
    %v1635 = vunpack.c.l.b16 %v1013
    %v1636 = vunpack.c.h.b16 %v1013
    %v1637 = vunpack.c.l.b16 %v1014
    %v1638 = vunpack.c.h.b16 %v1014
    %v1639 = vunpack.c.l.b16 %v1015
    %v1640 = vunpack.c.h.b16 %v1015
    %v1641 = vunpack.c.l.b16 %v1016
    %v1642 = vunpack.c.h.b16 %v1016
    %v1643 = vunpack.c.l.b16 %v1017
    %v1644 = vunpack.c.h.b16 %v1017
    %v1645 = vunpack.c.l.b16 %v1018
    %v1646 = vunpack.c.h.b16 %v1018
    %v1647 = vunpack.c.l.b16 %v1019
    %v1648 = vunpack.c.h.b16 %v1019
    %v1649 = vunpack.c.l.b16 %v1020
    %v1650 = vunpack.c.h.b16 %v1020
    %v1651 = vunpack.c.l.b16 %v1021
    %v1652 = vunpack.c.h.b16 %v1021
    %v1653 = vunpack.c.l.b16 %v1022
    %v1654 = vunpack.c.h.b16 %v1022
    %v1655 = vunpack.c.l.b16 %v1023
    %v1656 = vunpack.c.h.b16 %v1023
    %v1657 = vunpack.c.l.b16 %v1024
    %v1658 = vunpack.c.h.b16 %v1024
    %v1659 = vunpack.c.l.b16 %v1025
    %v1660 = vunpack.c.h.b16 %v1025
    %v1661 = vunpack.c.l.b16 %v1026
    %v1662 = vunpack.c.h.b16 %v1026
    %v1663 = vunpack.c.l.b16 %v1027
    %v1664 = vunpack.c.h.b16 %v1027
    %v1665 = vunpack.c.l.b16 %v1028
    %v1666 = vunpack.c.h.b16 %v1028
    %v1667 = vunpack.c.l.b16 %v1029
    %v1668 = vunpack.c.h.b16 %v1029
    %v1669 = vunpack.c.l.b16 %v1030
    %v1670 = vunpack.c.h.b16 %v1030
    %v1671 = vunpack.c.l.b16 %v1031
    %v1672 = vunpack.c.h.b16 %v1031
    %v1673 = vunpack.c.l.b16 %v1032
    %v1674 = vunpack.c.h.b16 %v1032
    %v1675 = vunpack.c.l.b16 %v1033
    %v1676 = vunpack.c.h.b16 %v1033
    %v1677 = vunpack.c.l.b16 %v1034
    %v1678 = vunpack.c.h.b16 %v1034
    %v1679 = vunpack.c.l.b16 %v1035
    %v1680 = vunpack.c.h.b16 %v1035
    %v1681 = vunpack.c.l.b16 %v1036
    %v1682 = vunpack.c.h.b16 %v1036
    %v1683 = vunpack.c.l.b16 %v1037
    %v1684 = vunpack.c.h.b16 %v1037
    %v1685 = vunpack.c.l.b16 %v1038
    %v1686 = vunpack.c.h.b16 %v1038
    %v1687 = vunpack.c.l.b16 %v1039
    %v1688 = vunpack.c.h.b16 %v1039
    %v1689 = vunpack.c.l.b16 %v1040
    %v1690 = vunpack.c.h.b16 %v1040
    %v1691 = vunpack.c.l.b16 %v1041
    %v1692 = vunpack.c.h.b16 %v1041
    %v1693 = vunpack.c.l.b16 %v1042
    %v1694 = vunpack.c.h.b16 %v1042
    %v1695 = vunpack.c.l.b16 %v1043
    %v1696 = vunpack.c.h.b16 %v1043
    %v1697 = vunpack.c.l.b16 %v1044
    %v1698 = vunpack.c.h.b16 %v1044
    %v1699 = vunpack.c.l.b16 %v1045
    %v1700 = vunpack.c.h.b16 %v1045
    %v1701 = vunpack.c.l.b16 %v1046
    %v1702 = vunpack.c.h.b16 %v1046
    %v1703 = vunpack.c.l.b16 %v1047
    %v1704 = vunpack.c.h.b16 %v1047
    %v1705 = vunpack.c.l.b16 %v1048
    %v1706 = vunpack.c.h.b16 %v1048
    %v1707 = vunpack.c.l.b16 %v1049
    %v1708 = vunpack.c.h.b16 %v1049
    %v1709 = vunpack.c.l.b16 %v1050
    %v1710 = vunpack.c.h.b16 %v1050
    %v1711 = vunpack.c.l.b16 %v1051
    %v1712 = vunpack.c.h.b16 %v1051
    %v1713 = vunpack.c.l.b16 %v1052
    %v1714 = vunpack.c.h.b16 %v1052
    %v1715 = vunpack.c.l.b16 %v1053
    %v1716 = vunpack.c.h.b16 %v1053
    %v1717 = vunpack.c.l.b16 %v1054
    %v1718 = vunpack.c.h.b16 %v1054
    %v1719 = vunpack.c.l.b16 %v1055
    %v1720 = vunpack.c.h.b16 %v1055
    %v1721 = vunpack.c.l.b16 %v1056
    %v1722 = vunpack.c.h.b16 %v1056
    %v1723 = vunpack.c.l.b16 %v1057
    %v1724 = vunpack.c.h.b16 %v1057
    %v1725 = vunpack.c.l.b16 %v1058
    %v1726 = vunpack.c.h.b16 %v1058
    %v1727 = vunpack.c.l.b16 %v1059
    %v1728 = vunpack.c.h.b16 %v1059
    %v1729 = vunpack.c.l.b16 %v1060
    %v1730 = vunpack.c.h.b16 %v1060
    %v1731 = vunpack.c.l.b16 %v1061
    %v1732 = vunpack.c.h.b16 %v1061
    %v1733 = vunpack.c.l.b16 %v1062
    %v1734 = vunpack.c.h.b16 %v1062
    %v1735 = vunpack.c.l.b16 %v1063
    %v1736 = vunpack.c.h.b16 %v1063
    %v1737 = vunpack.c.l.b16 %v1064
    %v1738 = vunpack.c.h.b16 %v1064
    %v1739 = vunpack.c.l.b16 %v1065
    %v1740 = vunpack.c.h.b16 %v1065
    %v1741 = vunpack.c.l.b16 %v1066
    %v1742 = vunpack.c.h.b16 %v1066
    %v1743 = vunpack.c.l.b16 %v1067
    %v1744 = vunpack.c.h.b16 %v1067
    %v1745 = vunpack.c.l.b16 %v1068
    %v1746 = vunpack.c.h.b16 %v1068
    %v1747 = vunpack.c.l.b16 %v1069
    %v1748 = vunpack.c.h.b16 %v1069
    %v1749 = vunpack.c.l.b16 %v1070
    %v1750 = vunpack.c.h.b16 %v1070
    %v1751 = vunpack.c.l.b16 %v1071
    %v1752 = vunpack.c.h.b16 %v1071
    %v1753 = vunpack.c.l.b16 %v1072
    %v1754 = vunpack.c.h.b16 %v1072
    %v1755 = vunpack.c.l.b16 %v1073
    %v1756 = vunpack.c.h.b16 %v1073
    %v1757 = vunpack.c.l.b16 %v1074
    %v1758 = vunpack.c.h.b16 %v1074
    %v1759 = vunpack.c.l.b16 %v1075
    %v1760 = vunpack.c.h.b16 %v1075
    %v1761 = vunpack.c.l.b16 %v1076
    %v1762 = vunpack.c.h.b16 %v1076
    %v1763 = vunpack.c.l.b16 %v1077
    %v1764 = vunpack.c.h.b16 %v1077
    %v1765 = vunpack.c.l.b16 %v1078
    %v1766 = vunpack.c.h.b16 %v1078
    %v1767 = vunpack.c.l.b16 %v1079
    %v1768 = vunpack.c.h.b16 %v1079
    %v1769 = vunpack.c.l.b16 %v1080
    %v1770 = vunpack.c.h.b16 %v1080
    %v1771 = vunpack.c.l.b16 %v1081
    %v1772 = vunpack.c.h.b16 %v1081
    %v1773 = vunpack.c.l.b16 %v1082
    %v1774 = vunpack.c.h.b16 %v1082
    %v1775 = vunpack.c.l.b16 %v1083
    %v1776 = vunpack.c.h.b16 %v1083
    %v1777 = vunpack.c.l.b16 %v1084
    %v1778 = vunpack.c.h.b16 %v1084
    %v1779 = vunpack.c.l.b16 %v1085
    %v1780 = vunpack.c.h.b16 %v1085
    %v1781 = vunpack.c.l.b16 %v1086
    %v1782 = vunpack.c.h.b16 %v1086
    %v1783 = vunpack.c.l.b16 %v1087
    %v1784 = vunpack.c.h.b16 %v1087
    %v1785 = vunpack.c.l.b16 %v1088
    %v1786 = vunpack.c.h.b16 %v1088
    %v1787 = vunpack.c.l.b16 %v1089
    %v1788 = vunpack.c.h.b16 %v1089
    %v1789 = vunpack.c.l.b16 %v1090
    %v1790 = vunpack.c.h.b16 %v1090
    %v1791 = vunpack.c.l.b16 %v1091
    %v1792 = vunpack.c.h.b16 %v1091
    %v1793 = vunpack.c.l.b16 %v1092
    %v1794 = vunpack.c.h.b16 %v1092
    %v1795 = vunpack.c.l.b16 %v1093
    %v1796 = vunpack.c.h.b16 %v1093
    %v1797 = vunpack.c.l.b16 %v1094
    %v1798 = vunpack.c.h.b16 %v1094
    %v1799 = vunpack.c.l.b16 %v1095
    %v1800 = vunpack.c.h.b16 %v1095
    %v1801 = vunpack.c.l.b16 %v1096
    %v1802 = vunpack.c.h.b16 %v1096
    %v1803 = vunpack.c.l.b16 %v1097
    %v1804 = vunpack.c.h.b16 %v1097
    %v1805 = vunpack.c.l.b16 %v1098
    %v1806 = vunpack.c.h.b16 %v1098
    %v1807 = vunpack.c.l.b16 %v1099
    %v1808 = vunpack.c.h.b16 %v1099
    %v1809 = vunpack.c.l.b16 %v1100
    %v1810 = vunpack.c.h.b16 %v1100
    %v1811 = vunpack.c.l.b16 %v1101
    %v1812 = vunpack.c.h.b16 %v1101
    %v1813 = vunpack.c.l.b16 %v1102
    %v1814 = vunpack.c.h.b16 %v1102
    %v1815 = vunpack.c.l.b16 %v1103
    %v1816 = vunpack.c.h.b16 %v1103
    %v1817 = vunpack.c.l.b16 %v1104
    %v1818 = vunpack.c.h.b16 %v1104
    %v1819 = vunpack.c.l.b16 %v1105
    %v1820 = vunpack.c.h.b16 %v1105
    %v1821 = vunpack.c.l.b16 %v1106
    %v1822 = vunpack.c.h.b16 %v1106
    %v1823 = vunpack.c.l.b16 %v1107
    %v1824 = vunpack.c.h.b16 %v1107
    %v1825 = vunpack.c.l.b16 %v1108
    %v1826 = vunpack.c.h.b16 %v1108
    %v1827 = vunpack.c.l.b16 %v1109
    %v1828 = vunpack.c.h.b16 %v1109
    %v1829 = vunpack.c.l.b16 %v1110
    %v1830 = vunpack.c.h.b16 %v1110
    %v1831 = vunpack.c.l.b16 %v1111
    %v1832 = vunpack.c.h.b16 %v1111
    %v1833 = vunpack.c.l.b16 %v1112
    %v1834 = vunpack.c.h.b16 %v1112
    %v1835 = vunpack.c.l.b16 %v1113
    %v1836 = vunpack.c.h.b16 %v1113
    %v1837 = vunpack.c.l.b16 %v1114
    %v1838 = vunpack.c.h.b16 %v1114
    %v1839 = vunpack.c.l.b16 %v1115
    %v1840 = vunpack.c.h.b16 %v1115
    %v1841 = vunpack.c.l.b16 %v1116
    %v1842 = vunpack.c.h.b16 %v1116
    %v1843 = vunpack.c.l.b16 %v1117
    %v1844 = vunpack.c.h.b16 %v1117
    %v1845 = vunpack.c.l.b16 %v1118
    %v1846 = vunpack.c.h.b16 %v1118
    %v1847 = vunpack.c.l.b16 %v1119
    %v1848 = vunpack.c.h.b16 %v1119
    %v1849 = vunpack.c.l.b16 %v1120
    %v1850 = vunpack.c.h.b16 %v1120
    %v1851 = vunpack.c.l.b16 %v1121
    %v1852 = vunpack.c.h.b16 %v1121
    %v1853 = vunpack.c.l.b16 %v1122
    %v1854 = vunpack.c.h.b16 %v1122
    %v1855 = vunpack.c.l.b16 %v1123
    %v1856 = vunpack.c.h.b16 %v1123
    %v1857 = vunpack.c.l.b16 %v1124
    %v1858 = vunpack.c.h.b16 %v1124
    %v1859 = vunpack.c.l.b16 %v1125
    %v1860 = vunpack.c.h.b16 %v1125
    %v1861 = vunpack.c.l.b16 %v1126
    %v1862 = vunpack.c.h.b16 %v1126
    %v1863 = vunpack.c.l.b16 %v1127
    %v1864 = vunpack.c.h.b16 %v1127
    %v1865 = vunpack.c.l.b16 %v1128
    %v1866 = vunpack.c.h.b16 %v1128
    %v1867 = vunpack.c.l.b16 %v1129
    %v1868 = vunpack.c.h.b16 %v1129
    %v1869 = vunpack.c.l.b16 %v1130
    %v1870 = vunpack.c.h.b16 %v1130
    %v1871 = vunpack.c.l.b16 %v1131
    %v1872 = vunpack.c.h.b16 %v1131
    %v1873 = vunpack.c.l.b16 %v1132
    %v1874 = vunpack.c.h.b16 %v1132
    %v1875 = vunpack.c.l.b16 %v1133
    %v1876 = vunpack.c.h.b16 %v1133
    %v1877 = vunpack.c.l.b16 %v1134
    %v1878 = vunpack.c.h.b16 %v1134
    %v1879 = vunpack.c.l.b16 %v1135
    %v1880 = vunpack.c.h.b16 %v1135
    %v1881 = vunpack.c.l.b16 %v1136
    %v1882 = vunpack.c.h.b16 %v1136
    %v1883 = vunpack.c.l.b16 %v1137
    %v1884 = vunpack.c.h.b16 %v1137
    %v1885 = vunpack.c.l.b16 %v1138
    %v1886 = vunpack.c.h.b16 %v1138
    %v1887 = vunpack.c.l.b16 %v1139
    %v1888 = vunpack.c.h.b16 %v1139
    %v1889 = vunpack.c.l.b16 %v1140
    %v1890 = vunpack.c.h.b16 %v1140
    %v1891 = vunpack.c.l.b16 %v1141
    %v1892 = vunpack.c.h.b16 %v1141
    %v1893 = vunpack.c.l.b16 %v1142
    %v1894 = vunpack.c.h.b16 %v1142
    %v1895 = vunpack.c.l.b16 %v1143
    %v1896 = vunpack.c.h.b16 %v1143
    %v1897 = vunpack.c.l.b16 %v1144
    %v1898 = vunpack.c.h.b16 %v1144
    %v1899 = vunpack.c.l.b16 %v1145
    %v1900 = vunpack.c.h.b16 %v1145
    %v1901 = vunpack.c.l.b16 %v1146
    %v1902 = vunpack.c.h.b16 %v1146
    %v1903 = vunpack.c.l.b16 %v1147
    %v1904 = vunpack.c.h.b16 %v1147
    %v1905 = vunpack.c.l.b16 %v1148
    %v1906 = vunpack.c.h.b16 %v1148
    %v1907 = vunpack.c.l.b16 %v1149
    %v1908 = vunpack.c.h.b16 %v1149
    %v1909 = vunpack.c.l.b16 %v1150
    %v1910 = vunpack.c.h.b16 %v1150
    %v1911 = vunpack.c.l.b16 %v1151
    %v1912 = vunpack.c.h.b16 %v1151
    %v1913 = vunpack.c.l.b16 %v1152
    %v1914 = vunpack.c.h.b16 %v1152
    %v1915 = vunpack.c.l.b16 %v1153
    %v1916 = vunpack.c.h.b16 %v1153
    %v1917 = vunpack.c.l.b16 %v1154
    %v1918 = vunpack.c.h.b16 %v1154
    %v1919 = vunpack.c.l.b16 %v1155
    %v1920 = vunpack.c.h.b16 %v1155
    %v1921 = vunpack.c.l.b16 %v1156
    %v1922 = vunpack.c.h.b16 %v1156
    %v1923 = vunpack.c.l.b16 %v1157
    %v1924 = vunpack.c.h.b16 %v1157
    %v1925 = vunpack.c.l.b16 %v1158
    %v1926 = vunpack.c.h.b16 %v1158
    %v1927 = vunpack.c.l.b16 %v1159
    %v1928 = vunpack.c.h.b16 %v1159
    %v1929 = vunpack.c.l.b16 %v1160
    %v1930 = vunpack.c.h.b16 %v1160
    %v1931 = vunpack.c.l.b16 %v1161
    %v1932 = vunpack.c.h.b16 %v1161
    %v1933 = vunpack.c.l.b16 %v1162
    %v1934 = vunpack.c.h.b16 %v1162
    %v1935 = vunpack.c.l.b16 %v1163
    %v1936 = vunpack.c.h.b16 %v1163
    %v1937 = vunpack.c.l.b16 %v1164
    %v1938 = vunpack.c.h.b16 %v1164
    %v1939 = vunpack.c.l.b16 %v1165
    %v1940 = vunpack.c.h.b16 %v1165
    %v1941 = vunpack.c.l.b16 %v1166
    %v1942 = vunpack.c.h.b16 %v1166
    %v1943 = vunpack.c.l.b16 %v1167
    %v1944 = vunpack.c.h.b16 %v1167
    %v1945 = vunpack.c.l.b16 %v1168
    %v1946 = vunpack.c.h.b16 %v1168
    %v1947 = vunpack.c.l.b16 %v1169
    %v1948 = vunpack.c.h.b16 %v1169
    %v1949 = vunpack.c.l.b16 %v1170
    %v1950 = vunpack.c.h.b16 %v1170
    %v1951 = vunpack.c.l.b16 %v1171
    %v1952 = vunpack.c.h.b16 %v1171
    %v1953 = vunpack.c.l.b16 %v1172
    %v1954 = vunpack.c.h.b16 %v1172
    %v1955 = vunpack.c.l.b16 %v1173
    %v1956 = vunpack.c.h.b16 %v1173
    %v1957 = vunpack.c.l.b16 %v1174
    %v1958 = vunpack.c.h.b16 %v1174
    %v1959 = vunpack.c.l.b16 %v1175
    %v1960 = vunpack.c.h.b16 %v1175
    %v1961 = vunpack.c.l.b16 %v1176
    %v1962 = vunpack.c.h.b16 %v1176
    %v1963 = vunpack.c.l.b16 %v1177
    %v1964 = vunpack.c.h.b16 %v1177
    %v1965 = vunpack.c.l.b16 %v1178
    %v1966 = vunpack.c.h.b16 %v1178
    %v1967 = vunpack.c.l.b16 %v1179
    %v1968 = vunpack.c.h.b16 %v1179
    %v1969 = vunpack.c.l.b16 %v1180
    %v1970 = vunpack.c.h.b16 %v1180
    %v1971 = vunpack.c.l.b16 %v1181
    %v1972 = vunpack.c.h.b16 %v1181
    %v1973 = vunpack.c.l.b16 %v1182
    %v1974 = vunpack.c.h.b16 %v1182
    %v1975 = vunpack.c.l.b16 %v1183
    %v1976 = vunpack.c.h.b16 %v1183
    %v1977 = vunpack.c.l.b16 %v1184
    %v1978 = vunpack.c.h.b16 %v1184
    %v1979 = vunpack.c.l.b16 %v1185
    %v1980 = vunpack.c.h.b16 %v1185
    %v1981 = vunpack.c.l.b16 %v1186
    %v1982 = vunpack.c.h.b16 %v1186
    %v1983 = vunpack.c.l.b16 %v1187
    %v1984 = vunpack.c.h.b16 %v1187
    %v1985 = vunpack.c.l.b16 %v1188
    %v1986 = vunpack.c.h.b16 %v1188
    %v1987 = vunpack.c.l.b16 %v1189
    %v1988 = vunpack.c.h.b16 %v1189
    %v1989 = vunpack.c.l.b16 %v1190
    %v1990 = vunpack.c.h.b16 %v1190
    %v1991 = vunpack.c.l.b16 %v1191
    %v1992 = vunpack.c.h.b16 %v1191
    %v1993 = vunpack.c.l.b16 %v1192
    %v1994 = vunpack.c.h.b16 %v1192
    %v1995 = vunpack.c.l.b16 %v1193
    %v1996 = vunpack.c.h.b16 %v1193
    %v1997 = vunpack.c.l.b16 %v1194
    %v1998 = vunpack.c.h.b16 %v1194
    %v1999 = vunpack.c.l.b16 %v1195
    %v2000 = vunpack.c.h.b16 %v1195
    %v2001 = vunpack.c.l.b16 %v1196
    %v2002 = vunpack.c.h.b16 %v1196
    %v2003 = vunpack.c.l.b16 %v1197
    %v2004 = vunpack.c.h.b16 %v1197
    %v2005 = vunpack.c.l.b16 %v1198
    %v2006 = vunpack.c.h.b16 %v1198
    %v2007 = vunpack.c.l.b16 %v1199
    %v2008 = vunpack.c.h.b16 %v1199
    %v2009 = vunpack.c.l.b16 %v1200
    %v2010 = vunpack.c.h.b16 %v1200
    %v2011 = vunpack.c.l.b16 %v1201
    %v2012 = vunpack.c.h.b16 %v1201
    %v2013 = vunpack.c.l.b16 %v1202
    %v2014 = vunpack.c.h.b16 %v1202
    %v2015 = vunpack.c.l.b16 %v1203
    %v2016 = vunpack.c.h.b16 %v1203
    %v2017 = vunpack.c.l.b16 %v1204
    %v2018 = vunpack.c.h.b16 %v1204
    %v2019 = vunpack.c.l.b16 %v1205
    %v2020 = vunpack.c.h.b16 %v1205
    %v2021 = vunpack.c.l.b16 %v1206
    %v2022 = vunpack.c.h.b16 %v1206
    %v2023 = vunpack.c.l.b16 %v1207
    %v2024 = vunpack.c.h.b16 %v1207
    %v2025 = vunpack.c.l.b16 %v1208
    %v2026 = vunpack.c.h.b16 %v1208
    %v2027 = vunpack.c.l.b16 %v1209
    %v2028 = vunpack.c.h.b16 %v1209
    %v2029 = vunpack.c.l.b16 %v1210
    %v2030 = vunpack.c.h.b16 %v1210
    %v2031 = vunpack.c.l.b16 %v1211
    %v2032 = vunpack.c.h.b16 %v1211
    %v2033 = vunpack.c.l.b16 %v1212
    %v2034 = vunpack.c.h.b16 %v1212
    %v2035 = vunpack.c.l.b16 %v1213
    %v2036 = vunpack.c.h.b16 %v1213
    %v2037 = vunpack.c.l.b16 %v1214
    %v2038 = vunpack.c.h.b16 %v1214
    %v2039 = vunpack.c.l.b16 %v1215
    %v2040 = vunpack.c.h.b16 %v1215
    %v2041 = vunpack.c.l.b16 %v1216
    %v2042 = vunpack.c.h.b16 %v1216
    %v2043 = vunpack.c.l.b16 %v1217
    %v2044 = vunpack.c.h.b16 %v1217
    %v2045 = vunpack.c.l.b16 %v1218
    %v2046 = vunpack.c.h.b16 %v1218
    %v2047 = vunpack.c.l.b16 %v1219
    %v2048 = vunpack.c.h.b16 %v1219
    %v2049 = vunpack.c.l.b16 %v1220
    %v2050 = vunpack.c.h.b16 %v1220
    %v2051 = vunpack.c.l.b16 %v1221
    %v2052 = vunpack.c.h.b16 %v1221
    %v2053 = vunpack.c.l.b16 %v1222
    %v2054 = vunpack.c.h.b16 %v1222
    %v2055 = vunpack.c.l.b16 %v1223
    %v2056 = vunpack.c.h.b16 %v1223
    %v2057 = vunpack.c.l.b16 %v1224
    %v2058 = vunpack.c.h.b16 %v1224
    %v2059 = vunpack.c.l.b16 %v1225
    %v2060 = vunpack.c.h.b16 %v1225
    %v2061 = vunpack.c.l.b16 %v1226
    %v2062 = vunpack.c.h.b16 %v1226
    %v2063 = vunpack.c.l.b16 %v1227
    %v2064 = vunpack.c.h.b16 %v1227
    %v2065 = vunpack.c.l.b16 %v1228
    %v2066 = vunpack.c.h.b16 %v1228
    %v2067 = vunpack.c.l.b16 %v1229
    %v2068 = vunpack.c.h.b16 %v1229
    %v2069 = vunpack.c.l.b16 %v1230
    %v2070 = vunpack.c.h.b16 %v1230
    %v2071 = vunpack.c.l.b16 %v1231
    %v2072 = vunpack.c.h.b16 %v1231
    %v2073 = vunpack.c.l.b16 %v1232
    %v2074 = vunpack.c.h.b16 %v1232
    %v2075 = vunpack.c.l.b16 %v1233
    %v2076 = vunpack.c.h.b16 %v1233
    %v2077 = vunpack.c.l.b16 %v1234
    %v2078 = vunpack.c.h.b16 %v1234
    %v2079 = vunpack.c.l.b16 %v1235
    %v2080 = vunpack.c.h.b16 %v1235
    %v2081 = vunpack.c.l.b16 %v1236
    %v2082 = vunpack.c.h.b16 %v1236
    %v2083 = vunpack.c.l.b16 %v1237
    %v2084 = vunpack.c.h.b16 %v1237
    %v2085 = vunpack.c.l.b16 %v1238
    %v2086 = vunpack.c.h.b16 %v1238
    %v2087 = vunpack.c.l.b16 %v1239
    %v2088 = vunpack.c.h.b16 %v1239
    %v2089 = vunpack.c.l.b16 %v1240
    %v2090 = vunpack.c.h.b16 %v1240
    %v2091 = vunpack.c.l.b16 %v1241
    %v2092 = vunpack.c.h.b16 %v1241
    %v2093 = vunpack.c.l.b16 %v1242
    %v2094 = vunpack.c.h.b16 %v1242
    %v2095 = vunpack.c.l.b16 %v1243
    %v2096 = vunpack.c.h.b16 %v1243
    %v2097 = vunpack.c.l.b16 %v1244
    %v2098 = vunpack.c.h.b16 %v1244
    %v2099 = vunpack.c.l.b16 %v1245
    %v2100 = vunpack.c.h.b16 %v1245
    %v2101 = vunpack.c.l.b16 %v1246
    %v2102 = vunpack.c.h.b16 %v1246
    %v2103 = vunpack.c.l.b16 %v1247
    %v2104 = vunpack.c.h.b16 %v1247
    %v2105 = vunpack.c.l.b16 %v1248
    %v2106 = vunpack.c.h.b16 %v1248
    %v2107 = vunpack.c.l.b16 %v1249
    %v2108 = vunpack.c.h.b16 %v1249
    %v2109 = vunpack.c.l.b16 %v1250
    %v2110 = vunpack.c.h.b16 %v1250
    %v2111 = vunpack.c.l.b16 %v1251
    %v2112 = vunpack.c.h.b16 %v1251
    %v2113 = vunpack.c.l.b16 %v1252
    %v2114 = vunpack.c.h.b16 %v1252
    %v2115 = vunpack.c.l.b16 %v1253
    %v2116 = vunpack.c.h.b16 %v1253
    %v2117 = vunpack.c.l.b16 %v1254
    %v2118 = vunpack.c.h.b16 %v1254
    %v2119 = vunpack.c.l.b16 %v1255
    %v2120 = vunpack.c.h.b16 %v1255
    %v2121 = vunpack.c.l.b16 %v1256
    %v2122 = vunpack.c.h.b16 %v1256
    %v2123 = vunpack.c.l.b16 %v1257
    %v2124 = vunpack.c.h.b16 %v1257
    %v2125 = vunpack.c.l.b16 %v1258
    %v2126 = vunpack.c.h.b16 %v1258
    %v2127 = vunpack.c.l.b16 %v1259
    %v2128 = vunpack.c.h.b16 %v1259
    %v2129 = vunpack.c.l.b16 %v1260
    %v2130 = vunpack.c.h.b16 %v1260
    %v2131 = vunpack.c.l.b16 %v1261
    %v2132 = vunpack.c.h.b16 %v1261
    %v2133 = vunpack.c.l.b16 %v1262
    %v2134 = vunpack.c.h.b16 %v1262
    %v2135 = vunpack.c.l.b16 %v1263
    %v2136 = vunpack.c.h.b16 %v1263
    %v2137 = vunpack.c.l.b16 %v1264
    %v2138 = vunpack.c.h.b16 %v1264
    %v2139 = vunpack.c.l.b16 %v1265
    %v2140 = vunpack.c.h.b16 %v1265
    %v2141 = vunpack.c.l.b16 %v1266
    %v2142 = vunpack.c.h.b16 %v1266
    %v2143 = vunpack.c.l.b16 %v1267
    %v2144 = vunpack.c.h.b16 %v1267
    %v2145 = vunpack.c.l.b16 %v1268
    %v2146 = vunpack.c.h.b16 %v1268
    %v2147 = vunpack.c.l.b16 %v1269
    %v2148 = vunpack.c.h.b16 %v1269
    %v2149 = vunpack.c.l.b16 %v1270
    %v2150 = vunpack.c.h.b16 %v1270
    %v2151 = vunpack.c.l.b16 %v1271
    %v2152 = vunpack.c.h.b16 %v1271
    %v2153 = vunpack.c.l.b16 %v1272
    %v2154 = vunpack.c.h.b16 %v1272
    %v2155 = vunpack.c.l.b16 %v1273
    %v2156 = vunpack.c.h.b16 %v1273
    %v2157 = vunpack.c.l.b16 %v1274
    %v2158 = vunpack.c.h.b16 %v1274
    %v2159 = vunpack.c.l.b16 %v1275
    %v2160 = vunpack.c.h.b16 %v1275
    %v2161 = vunpack.c.l.b16 %v1276
    %v2162 = vunpack.c.h.b16 %v1276
    %v2163 = vunpack.c.l.b16 %v1277
    %v2164 = vunpack.c.h.b16 %v1277
    %v2165 = vunpack.c.l.b16 %v1278
    %v2166 = vunpack.c.h.b16 %v1278
    %v2167 = vunpack.c.l.b16 %v1279
    %v2168 = vunpack.c.h.b16 %v1279
    %v2169 = vunpack.c.l.b16 %v1280
    %v2170 = vunpack.c.h.b16 %v1280
    %v2171 = vunpack.c.l.b16 %v1281
    %v2172 = vunpack.c.h.b16 %v1281
    %v2173 = vunpack.c.l.b16 %v1282
    %v2174 = vunpack.c.h.b16 %v1282
    %v2175 = vunpack.c.l.b16 %v1283
    %v2176 = vunpack.c.h.b16 %v1283
    %v2177 = vunpack.c.l.b16 %v1284
    %v2178 = vunpack.c.h.b16 %v1284
    %v2179 = vunpack.c.l.b16 %v1285
    %v2180 = vunpack.c.h.b16 %v1285
    %v2181 = vunpack.c.l.b16 %v1286
    %v2182 = vunpack.c.h.b16 %v1286
    %v2183 = vpack.c.b16 %v1613, %v1607
    %v2184 = vpack.c.b16 %v1614, %v1608
    %v2185 = vpack.c.b16 %v1615, %v1609
    %v2186 = vpack.c.b16 %v1616, %v1610
    %v2187 = vpack.c.b16 %v1617, %v1611
    %v2188 = vpack.c.b16 %v1618, %v1612
    %v2189 = vpack.c.b16 %v1625, %v1619
    %v2190 = vpack.c.b16 %v1626, %v1620
    %v2191 = vpack.c.b16 %v1627, %v1621
    %v2192 = vpack.c.b16 %v1628, %v1622
    %v2193 = vpack.c.b16 %v1629, %v1623
    %v2194 = vpack.c.b16 %v1630, %v1624
    %v2195 = vpack.c.b16 %v1637, %v1631
    %v2196 = vpack.c.b16 %v1638, %v1632
    %v2197 = vpack.c.b16 %v1639, %v1633
    %v2198 = vpack.c.b16 %v1640, %v1634
    %v2199 = vpack.c.b16 %v1641, %v1635
    %v2200 = vpack.c.b16 %v1642, %v1636
    %v2201 = vpack.c.b16 %v1649, %v1643
    %v2202 = vpack.c.b16 %v1650, %v1644
    %v2203 = vpack.c.b16 %v1651, %v1645
    %v2204 = vpack.c.b16 %v1652, %v1646
    %v2205 = vpack.c.b16 %v1653, %v1647
    %v2206 = vpack.c.b16 %v1654, %v1648
    %v2207 = vpack.c.b16 %v1661, %v1655
    %v2208 = vpack.c.b16 %v1662, %v1656
    %v2209 = vpack.c.b16 %v1663, %v1657
    %v2210 = vpack.c.b16 %v1664, %v1658
    %v2211 = vpack.c.b16 %v1665, %v1659
    %v2212 = vpack.c.b16 %v1666, %v1660
    %v2213 = vpack.c.b16 %v1673, %v1667
    %v2214 = vpack.c.b16 %v1674, %v1668
    %v2215 = vpack.c.b16 %v1675, %v1669
    %v2216 = vpack.c.b16 %v1676, %v1670
    %v2217 = vpack.c.b16 %v1677, %v1671
    %v2218 = vpack.c.b16 %v1678, %v1672
    %v2219 = vpack.c.b16 %v1685, %v1679
    %v2220 = vpack.c.b16 %v1686, %v1680
    %v2221 = vpack.c.b16 %v1687, %v1681
    %v2222 = vpack.c.b16 %v1688, %v1682
    %v2223 = vpack.c.b16 %v1689, %v1683
    %v2224 = vpack.c.b16 %v1690, %v1684
    %v2225 = vpack.c.b16 %v1697, %v1691
    %v2226 = vpack.c.b16 %v1698, %v1692
    %v2227 = vpack.c.b16 %v1699, %v1693
    %v2228 = vpack.c.b16 %v1700, %v1694
    %v2229 = vpack.c.b16 %v1701, %v1695
    %v2230 = vpack.c.b16 %v1702, %v1696
    %v2231 = vpack.c.b16 %v1709, %v1703
    %v2232 = vpack.c.b16 %v1710, %v1704
    %v2233 = vpack.c.b16 %v1711, %v1705
    %v2234 = vpack.c.b16 %v1712, %v1706
    %v2235 = vpack.c.b16 %v1713, %v1707
    %v2236 = vpack.c.b16 %v1714, %v1708
    %v2237 = vpack.c.b16 %v1721, %v1715
    %v2238 = vpack.c.b16 %v1722, %v1716
    %v2239 = vpack.c.b16 %v1723, %v1717
    %v2240 = vpack.c.b16 %v1724, %v1718
    %v2241 = vpack.c.b16 %v1725, %v1719
    %v2242 = vpack.c.b16 %v1726, %v1720
    %v2243 = vpack.c.b16 %v1733, %v1727
    %v2244 = vpack.c.b16 %v1734, %v1728
    %v2245 = vpack.c.b16 %v1735, %v1729
    %v2246 = vpack.c.b16 %v1736, %v1730
    %v2247 = vpack.c.b16 %v1737, %v1731
    %v2248 = vpack.c.b16 %v1738, %v1732
    %v2249 = vpack.c.b16 %v1745, %v1739
    %v2250 = vpack.c.b16 %v1746, %v1740
    %v2251 = vpack.c.b16 %v1747, %v1741
    %v2252 = vpack.c.b16 %v1748, %v1742
    %v2253 = vpack.c.b16 %v1749, %v1743
    %v2254 = vpack.c.b16 %v1750, %v1744
    %v2255 = vpack.c.b16 %v1757, %v1751
    %v2256 = vpack.c.b16 %v1758, %v1752
    %v2257 = vpack.c.b16 %v1759, %v1753
    %v2258 = vpack.c.b16 %v1760, %v1754
    %v2259 = vpack.c.b16 %v1761, %v1755
    %v2260 = vpack.c.b16 %v1762, %v1756
    %v2261 = vpack.c.b16 %v1769, %v1763
    %v2262 = vpack.c.b16 %v1770, %v1764
    %v2263 = vpack.c.b16 %v1771, %v1765
    %v2264 = vpack.c.b16 %v1772, %v1766
    %v2265 = vpack.c.b16 %v1773, %v1767
    %v2266 = vpack.c.b16 %v1774, %v1768
    %v2267 = vpack.c.b16 %v1781, %v1775
    %v2268 = vpack.c.b16 %v1782, %v1776
    %v2269 = vpack.c.b16 %v1783, %v1777
    %v2270 = vpack.c.b16 %v1784, %v1778
    %v2271 = vpack.c.b16 %v1785, %v1779
    %v2272 = vpack.c.b16 %v1786, %v1780
    %v2273 = vpack.c.b16 %v1793, %v1787
    %v2274 = vpack.c.b16 %v1794, %v1788
    %v2275 = vpack.c.b16 %v1795, %v1789
    %v2276 = vpack.c.b16 %v1796, %v1790
    %v2277 = vpack.c.b16 %v1797, %v1791
    %v2278 = vpack.c.b16 %v1798, %v1792
    %v2279 = vpack.c.b16 %v1805, %v1799
    %v2280 = vpack.c.b16 %v1806, %v1800
    %v2281 = vpack.c.b16 %v1807, %v1801
    %v2282 = vpack.c.b16 %v1808, %v1802
    %v2283 = vpack.c.b16 %v1809, %v1803
    %v2284 = vpack.c.b16 %v1810, %v1804
    %v2285 = vpack.c.b16 %v1817, %v1811
    %v2286 = vpack.c.b16 %v1818, %v1812
    %v2287 = vpack.c.b16 %v1819, %v1813
    %v2288 = vpack.c.b16 %v1820, %v1814
    %v2289 = vpack.c.b16 %v1821, %v1815
    %v2290 = vpack.c.b16 %v1822, %v1816
    %v2291 = vpack.c.b16 %v1829, %v1823
    %v2292 = vpack.c.b16 %v1830, %v1824
    %v2293 = vpack.c.b16 %v1831, %v1825
    %v2294 = vpack.c.b16 %v1832, %v1826
    %v2295 = vpack.c.b16 %v1833, %v1827
    %v2296 = vpack.c.b16 %v1834, %v1828
    %v2297 = vpack.c.b16 %v1841, %v1835
    %v2298 = vpack.c.b16 %v1842, %v1836
    %v2299 = vpack.c.b16 %v1843, %v1837
    %v2300 = vpack.c.b16 %v1844, %v1838
    %v2301 = vpack.c.b16 %v1845, %v1839
    %v2302 = vpack.c.b16 %v1846, %v1840
    %v2303 = vpack.c.b16 %v1853, %v1847
    %v2304 = vpack.c.b16 %v1854, %v1848
    %v2305 = vpack.c.b16 %v1855, %v1849
    %v2306 = vpack.c.b16 %v1856, %v1850
    %v2307 = vpack.c.b16 %v1857, %v1851
    %v2308 = vpack.c.b16 %v1858, %v1852
    %v2309 = vpack.c.b16 %v1865, %v1859
    %v2310 = vpack.c.b16 %v1866, %v1860
    %v2311 = vpack.c.b16 %v1867, %v1861
    %v2312 = vpack.c.b16 %v1868, %v1862
    %v2313 = vpack.c.b16 %v1869, %v1863
    %v2314 = vpack.c.b16 %v1870, %v1864
    %v2315 = vpack.c.b16 %v1877, %v1871
    %v2316 = vpack.c.b16 %v1878, %v1872
    %v2317 = vpack.c.b16 %v1879, %v1873
    %v2318 = vpack.c.b16 %v1880, %v1874
    %v2319 = vpack.c.b16 %v1881, %v1875
    %v2320 = vpack.c.b16 %v1882, %v1876
    %v2321 = vpack.c.b16 %v1889, %v1883
    %v2322 = vpack.c.b16 %v1890, %v1884
    %v2323 = vpack.c.b16 %v1891, %v1885
    %v2324 = vpack.c.b16 %v1892, %v1886
    %v2325 = vpack.c.b16 %v1893, %v1887
    %v2326 = vpack.c.b16 %v1894, %v1888
    %v2327 = vpack.c.b16 %v1901, %v1895
    %v2328 = vpack.c.b16 %v1902, %v1896
    %v2329 = vpack.c.b16 %v1903, %v1897
    %v2330 = vpack.c.b16 %v1904, %v1898
    %v2331 = vpack.c.b16 %v1905, %v1899
    %v2332 = vpack.c.b16 %v1906, %v1900
    %v2333 = vpack.c.b16 %v1913, %v1907
    %v2334 = vpack.c.b16 %v1914, %v1908
    %v2335 = vpack.c.b16 %v1915, %v1909
    %v2336 = vpack.c.b16 %v1916, %v1910
    %v2337 = vpack.c.b16 %v1917, %v1911
    %v2338 = vpack.c.b16 %v1918, %v1912
    %v2339 = vpack.c.b16 %v1925, %v1919
    %v2340 = vpack.c.b16 %v1926, %v1920
    %v2341 = vpack.c.b16 %v1927, %v1921
    %v2342 = vpack.c.b16 %v1928, %v1922
    %v2343 = vpack.c.b16 %v1929, %v1923
    %v2344 = vpack.c.b16 %v1930, %v1924
    %v2345 = vpack.c.b16 %v1937, %v1931
    %v2346 = vpack.c.b16 %v1938, %v1932
    %v2347 = vpack.c.b16 %v1939, %v1933
    %v2348 = vpack.c.b16 %v1940, %v1934
    %v2349 = vpack.c.b16 %v1941, %v1935
    %v2350 = vpack.c.b16 %v1942, %v1936
    %v2351 = vpack.c.b16 %v1949, %v1943
    %v2352 = vpack.c.b16 %v1950, %v1944
    %v2353 = vpack.c.b16 %v1951, %v1945
    %v2354 = vpack.c.b16 %v1952, %v1946
    %v2355 = vpack.c.b16 %v1953, %v1947
    %v2356 = vpack.c.b16 %v1954, %v1948
    %v2357 = vpack.c.b16 %v1961, %v1955
    %v2358 = vpack.c.b16 %v1962, %v1956
    %v2359 = vpack.c.b16 %v1963, %v1957
    %v2360 = vpack.c.b16 %v1964, %v1958
    %v2361 = vpack.c.b16 %v1965, %v1959
    %v2362 = vpack.c.b16 %v1966, %v1960
    %v2363 = vpack.c.b16 %v1973, %v1967
    %v2364 = vpack.c.b16 %v1974, %v1968
    %v2365 = vpack.c.b16 %v1975, %v1969
    %v2366 = vpack.c.b16 %v1976, %v1970
    %v2367 = vpack.c.b16 %v1977, %v1971
    %v2368 = vpack.c.b16 %v1978, %v1972
    %v2369 = vpack.c.b16 %v1985, %v1979
    %v2370 = vpack.c.b16 %v1986, %v1980
    %v2371 = vpack.c.b16 %v1987, %v1981
    %v2372 = vpack.c.b16 %v1988, %v1982
    %v2373 = vpack.c.b16 %v1989, %v1983
    %v2374 = vpack.c.b16 %v1990, %v1984
    %v2375 = vpack.c.b16 %v1997, %v1991
    %v2376 = vpack.c.b16 %v1998, %v1992
    %v2377 = vpack.c.b16 %v1999, %v1993
    %v2378 = vpack.c.b16 %v2000, %v1994
    %v2379 = vpack.c.b16 %v2001, %v1995
    %v2380 = vpack.c.b16 %v2002, %v1996
    %v2381 = vpack.c.b16 %v2009, %v2003
    %v2382 = vpack.c.b16 %v2010, %v2004
    %v2383 = vpack.c.b16 %v2011, %v2005
    %v2384 = vpack.c.b16 %v2012, %v2006
    %v2385 = vpack.c.b16 %v2013, %v2007
    %v2386 = vpack.c.b16 %v2014, %v2008
    %v2387 = vpack.c.b16 %v2021, %v2015
    %v2388 = vpack.c.b16 %v2022, %v2016
    %v2389 = vpack.c.b16 %v2023, %v2017
    %v2390 = vpack.c.b16 %v2024, %v2018
    %v2391 = vpack.c.b16 %v2025, %v2019
    %v2392 = vpack.c.b16 %v2026, %v2020
    %v2393 = vpack.c.b16 %v2033, %v2027
    %v2394 = vpack.c.b16 %v2034, %v2028
    %v2395 = vpack.c.b16 %v2035, %v2029
    %v2396 = vpack.c.b16 %v2036, %v2030
    %v2397 = vpack.c.b16 %v2037, %v2031
    %v2398 = vpack.c.b16 %v2038, %v2032
    %v2399 = vpack.c.b16 %v2045, %v2039
    %v2400 = vpack.c.b16 %v2046, %v2040
    %v2401 = vpack.c.b16 %v2047, %v2041
    %v2402 = vpack.c.b16 %v2048, %v2042
    %v2403 = vpack.c.b16 %v2049, %v2043
    %v2404 = vpack.c.b16 %v2050, %v2044
    %v2405 = vpack.c.b16 %v2057, %v2051
    %v2406 = vpack.c.b16 %v2058, %v2052
    %v2407 = vpack.c.b16 %v2059, %v2053
    %v2408 = vpack.c.b16 %v2060, %v2054
    %v2409 = vpack.c.b16 %v2061, %v2055
    %v2410 = vpack.c.b16 %v2062, %v2056
    %v2411 = vpack.c.b16 %v2069, %v2063
    %v2412 = vpack.c.b16 %v2070, %v2064
    %v2413 = vpack.c.b16 %v2071, %v2065
    %v2414 = vpack.c.b16 %v2072, %v2066
    %v2415 = vpack.c.b16 %v2073, %v2067
    %v2416 = vpack.c.b16 %v2074, %v2068
    %v2417 = vpack.c.b16 %v2081, %v2075
    %v2418 = vpack.c.b16 %v2082, %v2076
    %v2419 = vpack.c.b16 %v2083, %v2077
    %v2420 = vpack.c.b16 %v2084, %v2078
    %v2421 = vpack.c.b16 %v2085, %v2079
    %v2422 = vpack.c.b16 %v2086, %v2080
    %v2423 = vpack.c.b16 %v2093, %v2087
    %v2424 = vpack.c.b16 %v2094, %v2088
    %v2425 = vpack.c.b16 %v2095, %v2089
    %v2426 = vpack.c.b16 %v2096, %v2090
    %v2427 = vpack.c.b16 %v2097, %v2091
    %v2428 = vpack.c.b16 %v2098, %v2092
    %v2429 = vpack.c.b16 %v2105, %v2099
    %v2430 = vpack.c.b16 %v2106, %v2100
    %v2431 = vpack.c.b16 %v2107, %v2101
    %v2432 = vpack.c.b16 %v2108, %v2102
    %v2433 = vpack.c.b16 %v2109, %v2103
    %v2434 = vpack.c.b16 %v2110, %v2104
    %v2435 = vpack.c.b16 %v2117, %v2111
    %v2436 = vpack.c.b16 %v2118, %v2112
    %v2437 = vpack.c.b16 %v2119, %v2113
    %v2438 = vpack.c.b16 %v2120, %v2114
    %v2439 = vpack.c.b16 %v2121, %v2115
    %v2440 = vpack.c.b16 %v2122, %v2116
    %v2441 = vpack.c.b16 %v2129, %v2123
    %v2442 = vpack.c.b16 %v2130, %v2124
    %v2443 = vpack.c.b16 %v2131, %v2125
    %v2444 = vpack.c.b16 %v2132, %v2126
    %v2445 = vpack.c.b16 %v2133, %v2127
    %v2446 = vpack.c.b16 %v2134, %v2128
    %v2447 = vpack.c.b16 %v2141, %v2135
    %v2448 = vpack.c.b16 %v2142, %v2136
    %v2449 = vpack.c.b16 %v2143, %v2137
    %v2450 = vpack.c.b16 %v2144, %v2138
    %v2451 = vpack.c.b16 %v2145, %v2139
    %v2452 = vpack.c.b16 %v2146, %v2140
    %v2453 = vpack.c.b16 %v2153, %v2147
    %v2454 = vpack.c.b16 %v2154, %v2148
    %v2455 = vpack.c.b16 %v2155, %v2149
    %v2456 = vpack.c.b16 %v2156, %v2150
    %v2457 = vpack.c.b16 %v2157, %v2151
    %v2458 = vpack.c.b16 %v2158, %v2152
    %v2459 = vpack.c.b16 %v2165, %v2159
    %v2460 = vpack.c.b16 %v2166, %v2160
    %v2461 = vpack.c.b16 %v2167, %v2161
    %v2462 = vpack.c.b16 %v2168, %v2162
    %v2463 = vpack.c.b16 %v2169, %v2163
    %v2464 = vpack.c.b16 %v2170, %v2164
    %v2465 = vpack.c.b16 %v2177, %v2171
    %v2466 = vpack.c.b16 %v2178, %v2172
    %v2467 = vpack.c.b16 %v2179, %v2173
    %v2468 = vpack.c.b16 %v2180, %v2174
    %v2469 = vpack.c.b16 %v2181, %v2175
    %v2470 = vpack.c.b16 %v2182, %v2176
    %2759 = vmatprep.subr.bf16.mxu0 %v2184
    %2760 = vmatpush1.bf16.msra.mxu0 %v2183
    %2761 = vmatprep.subr.bf16.mxu0 %v2190
    %2762 = vmatpush1.bf16.msra.mxu0 %v2189
    %2763 = vmatprep.subr.bf16.mxu0 %v2196
    %2764 = vmatpush1.bf16.msra.mxu0 %v2195
    %2765 = vmatprep.subr.bf16.mxu0 %v2202
    %2766 = vmatpush1.bf16.msra.mxu0 %v2201
    %2767 = vmatprep.subr.bf16.mxu0 %v2208
    %2768 = vmatpush1.bf16.msra.mxu0 %v2207
    %2769 = vmatprep.subr.bf16.mxu0 %v2214
    %2770 = vmatpush1.bf16.msra.mxu0 %v2213
    %2771 = vmatprep.subr.bf16.mxu0 %v2220
    %2772 = vmatpush1.bf16.msra.mxu0 %v2219
    %2773 = vmatprep.subr.bf16.mxu0 %v2226
    %2774 = vmatpush1.bf16.msra.mxu0 %v2225
    %2775 = vmatprep.subr.bf16.mxu0 %v2232
    %2776 = vmatpush1.bf16.msra.mxu0 %v2231
    %2777 = vmatprep.subr.bf16.mxu0 %v2238
    %2778 = vmatpush1.bf16.msra.mxu0 %v2237
    %2779 = vmatprep.subr.bf16.mxu0 %v2244
    %2780 = vmatpush1.bf16.msra.mxu0 %v2243
    %2781 = vmatprep.subr.bf16.mxu0 %v2250
    %2782 = vmatpush1.bf16.msra.mxu0 %v2249
    %2783 = vmatprep.subr.bf16.mxu0 %v2256
    %2784 = vmatpush1.bf16.msra.mxu0 %v2255
    %2785 = vmatprep.subr.bf16.mxu0 %v2262
    %2786 = vmatpush1.bf16.msra.mxu0 %v2261
    %2787 = vmatprep.subr.bf16.mxu0 %v2268
    %2788 = vmatpush1.bf16.msra.mxu0 %v2267
    %2789 = vmatprep.subr.bf16.mxu0 %v2274
    %2790 = vmatpush1.bf16.msra.mxu0 %v2273
    %2791 = vmatprep.mubr.bf16.mxu0 %v994
    %2792 = vmatmul.mubr.bf16.gmra.mrb[0].mxu0 %v993
    %v2793 = vpop.f32.mrb[0].mxu0
    %v2794 = vadd.f32 %v1292, %v2793
    %v2795 = vpop.f32.mrb[0].mxu0
    %v2796 = vadd.f32 %v1296, %v2795
    %v2797 = vpop.f32.mrb[0].mxu0
    %v2798 = vadd.f32 %v1292, %v2797
    %v2799 = vpop.f32.mrb[0].mxu0
    %v2800 = vadd.f32 %v1296, %v2799
    %2801 = vdwg.mxu0
    %2802 = vmatprep.subr.bf16.mxu0 %v2280
    %2803 = vmatpush1.bf16.msra.mxu0 %v2279
    %2804 = vmatprep.subr.bf16.mxu0 %v2286
    %2805 = vmatpush1.bf16.msra.mxu0 %v2285
    %2806 = vmatprep.subr.bf16.mxu0 %v2292
    %2807 = vmatpush1.bf16.msra.mxu0 %v2291
    %2808 = vmatprep.subr.bf16.mxu0 %v2298
    %2809 = vmatpush1.bf16.msra.mxu0 %v2297
    %2810 = vmatprep.subr.bf16.mxu0 %v2304
    %2811 = vmatpush1.bf16.msra.mxu0 %v2303
    %2812 = vmatprep.subr.bf16.mxu0 %v2310
    %2813 = vmatpush1.bf16.msra.mxu0 %v2309
    %2814 = vmatprep.subr.bf16.mxu0 %v2316
    %2815 = vmatpush1.bf16.msra.mxu0 %v2315
    %2816 = vmatprep.subr.bf16.mxu0 %v2322
    %2817 = vmatpush1.bf16.msra.mxu0 %v2321
    %2818 = vmatprep.subr.bf16.mxu0 %v2328
    %2819 = vmatpush1.bf16.msra.mxu0 %v2327
    %2820 = vmatprep.subr.bf16.mxu0 %v2334
    %2821 = vmatpush1.bf16.msra.mxu0 %v2333
    %2822 = vmatprep.subr.bf16.mxu0 %v2340
    %2823 = vmatpush1.bf16.msra.mxu0 %v2339
    %2824 = vmatprep.subr.bf16.mxu0 %v2346
    %2825 = vmatpush1.bf16.msra.mxu0 %v2345
    %2826 = vmatprep.subr.bf16.mxu0 %v2352
    %2827 = vmatpush1.bf16.msra.mxu0 %v2351
    %2828 = vmatprep.subr.bf16.mxu0 %v2358
    %2829 = vmatpush1.bf16.msra.mxu0 %v2357
    %2830 = vmatprep.subr.bf16.mxu0 %v2364
    %2831 = vmatpush1.bf16.msra.mxu0 %v2363
    %2832 = vmatprep.subr.bf16.mxu0 %v2370
    %2833 = vmatpush1.bf16.msra.mxu0 %v2369
    %2834 = vmatprep.mubr.bf16.mxu0 %v996
    %2835 = vmatmul.mubr.bf16.gmra.mrb[0].mxu0 %v995
    %v2836 = vpop.f32.mrb[0].mxu0
    %v2837 = vadd.f32 %v2794, %v2836
    %v2838 = vpop.f32.mrb[0].mxu0
    %v2839 = vadd.f32 %v2796, %v2838
    %v2840 = vpop.f32.mrb[0].mxu0
    %v2841 = vadd.f32 %v2798, %v2840
    %v2842 = vpop.f32.mrb[0].mxu0
    %v2843 = vadd.f32 %v2800, %v2842
    %2844 = vdwg.mxu0
    %2845 = vmatprep.subr.bf16.mxu0 %v2376
    %2846 = vmatpush1.bf16.msra.mxu0 %v2375
    %2847 = vmatprep.subr.bf16.mxu0 %v2382
    %2848 = vmatpush1.bf16.msra.mxu0 %v2381
    %2849 = vmatprep.subr.bf16.mxu0 %v2388
    %2850 = vmatpush1.bf16.msra.mxu0 %v2387
    %2851 = vmatprep.subr.bf16.mxu0 %v2394
    %2852 = vmatpush1.bf16.msra.mxu0 %v2393
    %2853 = vmatprep.subr.bf16.mxu0 %v2400
    %2854 = vmatpush1.bf16.msra.mxu0 %v2399
    %2855 = vmatprep.subr.bf16.mxu0 %v2406
    %2856 = vmatpush1.bf16.msra.mxu0 %v2405
    %2857 = vmatprep.subr.bf16.mxu0 %v2412
    %2858 = vmatpush1.bf16.msra.mxu0 %v2411
    %2859 = vmatprep.subr.bf16.mxu0 %v2418
    %2860 = vmatpush1.bf16.msra.mxu0 %v2417
    %2861 = vmatprep.subr.bf16.mxu0 %v2424
    %2862 = vmatpush1.bf16.msra.mxu0 %v2423
    %2863 = vmatprep.subr.bf16.mxu0 %v2430
    %2864 = vmatpush1.bf16.msra.mxu0 %v2429
    %2865 = vmatprep.subr.bf16.mxu0 %v2436
    %2866 = vmatpush1.bf16.msra.mxu0 %v2435
    %2867 = vmatprep.subr.bf16.mxu0 %v2442
    %2868 = vmatpush1.bf16.msra.mxu0 %v2441
    %2869 = vmatprep.subr.bf16.mxu0 %v2448
    %2870 = vmatpush1.bf16.msra.mxu0 %v2447
    %2871 = vmatprep.subr.bf16.mxu0 %v2454
    %2872 = vmatpush1.bf16.msra.mxu0 %v2453
    %2873 = vmatprep.subr.bf16.mxu0 %v2460
    %2874 = vmatpush1.bf16.msra.mxu0 %v2459
    %2875 = vmatprep.subr.bf16.mxu0 %v2466
    %2876 = vmatpush1.bf16.msra.mxu0 %v2465
    %2877 = vmatprep.mubr.bf16.mxu0 %v998
    %2878 = vmatmul.mubr.bf16.gmra.mrb[0].mxu0 %v997
    %v2879 = vpop.f32.mrb[0].mxu0
    %v2880 = vadd.f32 %v2837, %v2879
    %v2881 = vpop.f32.mrb[0].mxu0
    %v2882 = vadd.f32 %v2839, %v2881
    %v2883 = vpop.f32.mrb[0].mxu0
    %v2884 = vadd.f32 %v2841, %v2883
    %v2885 = vpop.f32.mrb[0].mxu0
    %v2886 = vadd.f32 %v2843, %v2885
    %2887 = vdwg.mxu0
    %2888 = vmatprep.subr.bf16.mxu0 %v2186
    %2889 = vmatpush1.bf16.msra.mxu0 %v2185
    %2890 = vmatprep.subr.bf16.mxu0 %v2192
    %2891 = vmatpush1.bf16.msra.mxu0 %v2191
    %2892 = vmatprep.subr.bf16.mxu0 %v2198
    %2893 = vmatpush1.bf16.msra.mxu0 %v2197
    %2894 = vmatprep.subr.bf16.mxu0 %v2204
    %2895 = vmatpush1.bf16.msra.mxu0 %v2203
    %2896 = vmatprep.subr.bf16.mxu0 %v2210
    %2897 = vmatpush1.bf16.msra.mxu0 %v2209
    %2898 = vmatprep.subr.bf16.mxu0 %v2216
    %2899 = vmatpush1.bf16.msra.mxu0 %v2215
    %2900 = vmatprep.subr.bf16.mxu0 %v2222
    %2901 = vmatpush1.bf16.msra.mxu0 %v2221
    %2902 = vmatprep.subr.bf16.mxu0 %v2228
    %2903 = vmatpush1.bf16.msra.mxu0 %v2227
    %2904 = vmatprep.subr.bf16.mxu0 %v2234
    %2905 = vmatpush1.bf16.msra.mxu0 %v2233
    %2906 = vmatprep.subr.bf16.mxu0 %v2240
    %2907 = vmatpush1.bf16.msra.mxu0 %v2239
    %2908 = vmatprep.subr.bf16.mxu0 %v2246
    %2909 = vmatpush1.bf16.msra.mxu0 %v2245
    %2910 = vmatprep.subr.bf16.mxu0 %v2252
    %2911 = vmatpush1.bf16.msra.mxu0 %v2251
    %2912 = vmatprep.subr.bf16.mxu0 %v2258
    %2913 = vmatpush1.bf16.msra.mxu0 %v2257
    %2914 = vmatprep.subr.bf16.mxu0 %v2264
    %2915 = vmatpush1.bf16.msra.mxu0 %v2263
    %2916 = vmatprep.subr.bf16.mxu0 %v2270
    %2917 = vmatpush1.bf16.msra.mxu0 %v2269
    %2918 = vmatprep.subr.bf16.mxu0 %v2276
    %2919 = vmatpush1.bf16.msra.mxu0 %v2275
    %2920 = vmatprep.mubr.bf16.mxu0 %v994
    %2921 = vmatmul.mubr.bf16.gmra.mrb[0].mxu0 %v993
    %v2922 = vpop.f32.mrb[0].mxu0
    %v2923 = vadd.f32 %v1300, %v2922
    %v2924 = vpop.f32.mrb[0].mxu0
    %v2925 = vadd.f32 %v1304, %v2924
    %v2926 = vpop.f32.mrb[0].mxu0
    %v2927 = vadd.f32 %v1300, %v2926
    %v2928 = vpop.f32.mrb[0].mxu0
    %v2929 = vadd.f32 %v1304, %v2928
    %2930 = vdwg.mxu0
    %2931 = vmatprep.subr.bf16.mxu0 %v2282
    %2932 = vmatpush1.bf16.msra.mxu0 %v2281
    %2933 = vmatprep.subr.bf16.mxu0 %v2288
    %2934 = vmatpush1.bf16.msra.mxu0 %v2287
    %2935 = vmatprep.subr.bf16.mxu0 %v2294
    %2936 = vmatpush1.bf16.msra.mxu0 %v2293
    %2937 = vmatprep.subr.bf16.mxu0 %v2300
    %2938 = vmatpush1.bf16.msra.mxu0 %v2299
    %2939 = vmatprep.subr.bf16.mxu0 %v2306
    %2940 = vmatpush1.bf16.msra.mxu0 %v2305
    %2941 = vmatprep.subr.bf16.mxu0 %v2312
    %2942 = vmatpush1.bf16.msra.mxu0 %v2311
    %2943 = vmatprep.subr.bf16.mxu0 %v2318
    %2944 = vmatpush1.bf16.msra.mxu0 %v2317
    %2945 = vmatprep.subr.bf16.mxu0 %v2324
    %2946 = vmatpush1.bf16.msra.mxu0 %v2323
    %2947 = vmatprep.subr.bf16.mxu0 %v2330
    %2948 = vmatpush1.bf16.msra.mxu0 %v2329
    %2949 = vmatprep.subr.bf16.mxu0 %v2336
    %2950 = vmatpush1.bf16.msra.mxu0 %v2335
    %2951 = vmatprep.subr.bf16.mxu0 %v2342
    %2952 = vmatpush1.bf16.msra.mxu0 %v2341
    %2953 = vmatprep.subr.bf16.mxu0 %v2348
    %2954 = vmatpush1.bf16.msra.mxu0 %v2347
    %2955 = vmatprep.subr.bf16.mxu0 %v2354
    %2956 = vmatpush1.bf16.msra.mxu0 %v2353
    %2957 = vmatprep.subr.bf16.mxu0 %v2360
    %2958 = vmatpush1.bf16.msra.mxu0 %v2359
    %2959 = vmatprep.subr.bf16.mxu0 %v2366
    %2960 = vmatpush1.bf16.msra.mxu0 %v2365
    %2961 = vmatprep.subr.bf16.mxu0 %v2372
    %2962 = vmatpush1.bf16.msra.mxu0 %v2371
    %2963 = vmatprep.mubr.bf16.mxu0 %v996
    %2964 = vmatmul.mubr.bf16.gmra.mrb[0].mxu0 %v995
    %v2965 = vpop.f32.mrb[0].mxu0
    %v2966 = vadd.f32 %v2923, %v2965
    %v2967 = vpop.f32.mrb[0].mxu0
    %v2968 = vadd.f32 %v2925, %v2967
    %v2969 = vpop.f32.mrb[0].mxu0
    %v2970 = vadd.f32 %v2927, %v2969
    %v2971 = vpop.f32.mrb[0].mxu0
    %v2972 = vadd.f32 %v2929, %v2971
    %2973 = vdwg.mxu0
    %2974 = vmatprep.subr.bf16.mxu0 %v2378
    %2975 = vmatpush1.bf16.msra.mxu0 %v2377
    %2976 = vmatprep.subr.bf16.mxu0 %v2384
    %2977 = vmatpush1.bf16.msra.mxu0 %v2383
    %2978 = vmatprep.subr.bf16.mxu0 %v2390
    %2979 = vmatpush1.bf16.msra.mxu0 %v2389
    %2980 = vmatprep.subr.bf16.mxu0 %v2396
    %2981 = vmatpush1.bf16.msra.mxu0 %v2395
    %2982 = vmatprep.subr.bf16.mxu0 %v2402
    %2983 = vmatpush1.bf16.msra.mxu0 %v2401
    %2984 = vmatprep.subr.bf16.mxu0 %v2408
    %2985 = vmatpush1.bf16.msra.mxu0 %v2407
    %2986 = vmatprep.subr.bf16.mxu0 %v2414
    %2987 = vmatpush1.bf16.msra.mxu0 %v2413
    %2988 = vmatprep.subr.bf16.mxu0 %v2420
    %2989 = vmatpush1.bf16.msra.mxu0 %v2419
    %2990 = vmatprep.subr.bf16.mxu0 %v2426
    %2991 = vmatpush1.bf16.msra.mxu0 %v2425
    %2992 = vmatprep.subr.bf16.mxu0 %v2432
    %2993 = vmatpush1.bf16.msra.mxu0 %v2431
    %2994 = vmatprep.subr.bf16.mxu0 %v2438
    %2995 = vmatpush1.bf16.msra.mxu0 %v2437
    %2996 = vmatprep.subr.bf16.mxu0 %v2444
    %2997 = vmatpush1.bf16.msra.mxu0 %v2443
    %2998 = vmatprep.subr.bf16.mxu0 %v2450
    %2999 = vmatpush1.bf16.msra.mxu0 %v2449
    %3000 = vmatprep.subr.bf16.mxu0 %v2456
    %3001 = vmatpush1.bf16.msra.mxu0 %v2455
    %3002 = vmatprep.subr.bf16.mxu0 %v2462
    %3003 = vmatpush1.bf16.msra.mxu0 %v2461
    %3004 = vmatprep.subr.bf16.mxu0 %v2468
    %3005 = vmatpush1.bf16.msra.mxu0 %v2467
    %3006 = vmatprep.mubr.bf16.mxu0 %v998
    %3007 = vmatmul.mubr.bf16.gmra.mrb[0].mxu0 %v997
    %v3008 = vpop.f32.mrb[0].mxu0
    %v3009 = vadd.f32 %v2966, %v3008
    %v3010 = vpop.f32.mrb[0].mxu0
    %v3011 = vadd.f32 %v2968, %v3010
    %v3012 = vpop.f32.mrb[0].mxu0
    %v3013 = vadd.f32 %v2970, %v3012
    %v3014 = vpop.f32.mrb[0].mxu0
    %v3015 = vadd.f32 %v2972, %v3014
    %3016 = vdwg.mxu0
    %3017 = vmatprep.subr.bf16.mxu0 %v2188
    %3018 = vmatpush1.bf16.msra.mxu0 %v2187
    %3019 = vmatprep.subr.bf16.mxu0 %v2194
    %3020 = vmatpush1.bf16.msra.mxu0 %v2193
    %3021 = vmatprep.subr.bf16.mxu0 %v2200
    %3022 = vmatpush1.bf16.msra.mxu0 %v2199
    %3023 = vmatprep.subr.bf16.mxu0 %v2206
    %3024 = vmatpush1.bf16.msra.mxu0 %v2205
    %3025 = vmatprep.subr.bf16.mxu0 %v2212
    %3026 = vmatpush1.bf16.msra.mxu0 %v2211
    %3027 = vmatprep.subr.bf16.mxu0 %v2218
    %3028 = vmatpush1.bf16.msra.mxu0 %v2217
    %3029 = vmatprep.subr.bf16.mxu0 %v2224
    %3030 = vmatpush1.bf16.msra.mxu0 %v2223
    %3031 = vmatprep.subr.bf16.mxu0 %v2230
    %3032 = vmatpush1.bf16.msra.mxu0 %v2229
    %3033 = vmatprep.subr.bf16.mxu0 %v2236
    %3034 = vmatpush1.bf16.msra.mxu0 %v2235
    %3035 = vmatprep.subr.bf16.mxu0 %v2242
    %3036 = vmatpush1.bf16.msra.mxu0 %v2241
    %3037 = vmatprep.subr.bf16.mxu0 %v2248
    %3038 = vmatpush1.bf16.msra.mxu0 %v2247
    %3039 = vmatprep.subr.bf16.mxu0 %v2254
    %3040 = vmatpush1.bf16.msra.mxu0 %v2253
    %3041 = vmatprep.subr.bf16.mxu0 %v2260
    %3042 = vmatpush1.bf16.msra.mxu0 %v2259
    %3043 = vmatprep.subr.bf16.mxu0 %v2266
    %3044 = vmatpush1.bf16.msra.mxu0 %v2265
    %3045 = vmatprep.subr.bf16.mxu0 %v2272
    %3046 = vmatpush1.bf16.msra.mxu0 %v2271
    %3047 = vmatprep.subr.bf16.mxu0 %v2278
    %3048 = vmatpush1.bf16.msra.mxu0 %v2277
    %3049 = vmatprep.mubr.bf16.mxu0 %v994
    %3050 = vmatmul.mubr.bf16.gmra.mrb[0].mxu0 %v993
    %v3051 = vpop.f32.mrb[0].mxu0
    %v3052 = vadd.f32 %v1308, %v3051
    %v3053 = vpop.f32.mrb[0].mxu0
    %v3054 = vadd.f32 %v1312, %v3053
    %v3055 = vpop.f32.mrb[0].mxu0
    %v3056 = vadd.f32 %v1308, %v3055
    %v3057 = vpop.f32.mrb[0].mxu0
    %v3058 = vadd.f32 %v1312, %v3057
    %3059 = vdwg.mxu0
    %3060 = vmatprep.subr.bf16.mxu0 %v2284
    %3061 = vmatpush1.bf16.msra.mxu0 %v2283
    %3062 = vmatprep.subr.bf16.mxu0 %v2290
    %3063 = vmatpush1.bf16.msra.mxu0 %v2289
    %3064 = vmatprep.subr.bf16.mxu0 %v2296
    %3065 = vmatpush1.bf16.msra.mxu0 %v2295
    %3066 = vmatprep.subr.bf16.mxu0 %v2302
    %3067 = vmatpush1.bf16.msra.mxu0 %v2301
    %3068 = vmatprep.subr.bf16.mxu0 %v2308
    %3069 = vmatpush1.bf16.msra.mxu0 %v2307
    %3070 = vmatprep.subr.bf16.mxu0 %v2314
    %3071 = vmatpush1.bf16.msra.mxu0 %v2313
    %3072 = vmatprep.subr.bf16.mxu0 %v2320
    %3073 = vmatpush1.bf16.msra.mxu0 %v2319
    %3074 = vmatprep.subr.bf16.mxu0 %v2326
    %3075 = vmatpush1.bf16.msra.mxu0 %v2325
    %3076 = vmatprep.subr.bf16.mxu0 %v2332
    %3077 = vmatpush1.bf16.msra.mxu0 %v2331
    %3078 = vmatprep.subr.bf16.mxu0 %v2338
    %3079 = vmatpush1.bf16.msra.mxu0 %v2337
    %3080 = vmatprep.subr.bf16.mxu0 %v2344
    %3081 = vmatpush1.bf16.msra.mxu0 %v2343
    %3082 = vmatprep.subr.bf16.mxu0 %v2350
    %3083 = vmatpush1.bf16.msra.mxu0 %v2349
    %3084 = vmatprep.subr.bf16.mxu0 %v2356
    %3085 = vmatpush1.bf16.msra.mxu0 %v2355
    %3086 = vmatprep.subr.bf16.mxu0 %v2362
    %3087 = vmatpush1.bf16.msra.mxu0 %v2361
    %3088 = vmatprep.subr.bf16.mxu0 %v2368
    %3089 = vmatpush1.bf16.msra.mxu0 %v2367
    %3090 = vmatprep.subr.bf16.mxu0 %v2374
    %3091 = vmatpush1.bf16.msra.mxu0 %v2373
    %3092 = vmatprep.mubr.bf16.mxu0 %v996
    %3093 = vmatmul.mubr.bf16.gmra.mrb[0].mxu0 %v995
    %v3094 = vpop.f32.mrb[0].mxu0
    %v3095 = vadd.f32 %v3052, %v3094
    %v3096 = vpop.f32.mrb[0].mxu0
    %v3097 = vadd.f32 %v3054, %v3096
    %v3098 = vpop.f32.mrb[0].mxu0
    %v3099 = vadd.f32 %v3056, %v3098
    %v3100 = vpop.f32.mrb[0].mxu0
    %v3101 = vadd.f32 %v3058, %v3100
    %3102 = vdwg.mxu0
    %3103 = vmatprep.subr.bf16.mxu0 %v2380
    %3104 = vmatpush1.bf16.msra.mxu0 %v2379
    %3105 = vmatprep.subr.bf16.mxu0 %v2386
    %3106 = vmatpush1.bf16.msra.mxu0 %v2385
    %3107 = vmatprep.subr.bf16.mxu0 %v2392
    %3108 = vmatpush1.bf16.msra.mxu0 %v2391
    %3109 = vmatprep.subr.bf16.mxu0 %v2398
    %3110 = vmatpush1.bf16.msra.mxu0 %v2397
    %3111 = vmatprep.subr.bf16.mxu0 %v2404
    %3112 = vmatpush1.bf16.msra.mxu0 %v2403
    %3113 = vmatprep.subr.bf16.mxu0 %v2410
    %3114 = vmatpush1.bf16.msra.mxu0 %v2409
    %3115 = vmatprep.subr.bf16.mxu0 %v2416
    %3116 = vmatpush1.bf16.msra.mxu0 %v2415
    %3117 = vmatprep.subr.bf16.mxu0 %v2422
    %3118 = vmatpush1.bf16.msra.mxu0 %v2421
    %3119 = vmatprep.subr.bf16.mxu0 %v2428
    %3120 = vmatpush1.bf16.msra.mxu0 %v2427
    %3121 = vmatprep.subr.bf16.mxu0 %v2434
    %3122 = vmatpush1.bf16.msra.mxu0 %v2433
    %3123 = vmatprep.subr.bf16.mxu0 %v2440
    %3124 = vmatpush1.bf16.msra.mxu0 %v2439
    %3125 = vmatprep.subr.bf16.mxu0 %v2446
    %3126 = vmatpush1.bf16.msra.mxu0 %v2445
    %3127 = vmatprep.subr.bf16.mxu0 %v2452
    %3128 = vmatpush1.bf16.msra.mxu0 %v2451
    %3129 = vmatprep.subr.bf16.mxu0 %v2458
    %3130 = vmatpush1.bf16.msra.mxu0 %v2457
    %3131 = vmatprep.subr.bf16.mxu0 %v2464
    %3132 = vmatpush1.bf16.msra.mxu0 %v2463
    %3133 = vmatprep.subr.bf16.mxu0 %v2470
    %3134 = vmatpush1.bf16.msra.mxu0 %v2469
    %3135 = vmatprep.mubr.bf16.mxu0 %v998
    %3136 = vmatmul.mubr.bf16.gmra.mrb[0].mxu0 %v997
    %v3137 = vpop.f32.mrb[0].mxu0
    %v3138 = vadd.f32 %v3095, %v3137
    %v3139 = vpop.f32.mrb[0].mxu0
    %v3140 = vadd.f32 %v3097, %v3139
    %v3141 = vpop.f32.mrb[0].mxu0
    %v3142 = vadd.f32 %v3099, %v3141
    %v3143 = vpop.f32.mrb[0].mxu0
    %v3144 = vadd.f32 %v3101, %v3143
    %3145 = vdwg.mxu0
    %v3146 = vmax.f32 %v2880, 0.0
    %v3147 = vmax.f32 %v2882, 0.0
    %v3148 = vmax.f32 %v3009, 0.0
    %v3149 = vmax.f32 %v3011, 0.0
    %v3150 = vmax.f32 %v3138, 0.0
    %v3151 = vmax.f32 %v3140, 0.0
    %v3152 = vmax.f32 %v2884, 0.0
    %v3153 = vmax.f32 %v2886, 0.0
    %v3154 = vmax.f32 %v3013, 0.0
    %v3155 = vmax.f32 %v3015, 0.0
    %v3156 = vmax.f32 %v3142, 0.0
    %v3157 = vmax.f32 %v3144, 0.0
    %v3158 = vpack.c.bf16 %v3152, %v3146
    %v3159 = vpack.c.bf16 %v3153, %v3147
    %v3160 = vpack.c.bf16 %v3154, %v3148
    %v3161 = vpack.c.bf16 %v3155, %v3149
    %v3162 = vpack.c.bf16 %v3156, %v3150
    %v3163 = vpack.c.bf16 %v3157, %v3151
    %v3164 = vld [vmem:[#allocation14] sm:$0xff]
    %v3165 = vld [vmem:[#allocation14 + $0x8] sm:$0xff]
    %v3166 = vld [vmem:[#allocation14 + $0x10] sm:$0xff]
    %v3167 = vld [vmem:[#allocation14 + $0x18] sm:$0xff]
    %v3168 = vld [vmem:[#allocation14 + $0x20] sm:$0xff]
    %v3169 = vld [vmem:[#allocation14 + $0x28] sm:$0xff]
    %v3170 = vld [vmem:[#allocation14 + $0x30] sm:$0xff]
    %v3171 = vld [vmem:[#allocation14 + $0x38] sm:$0xff]
    %v3172 = vld [vmem:[#allocation14 + $0x40] sm:$0xff]
    %v3173 = vld [vmem:[#allocation14 + $0x48] sm:$0xff]
    %v3174 = vld [vmem:[#allocation14 + $0x50] sm:$0xff]
    %v3175 = vld [vmem:[#allocation14 + $0x58] sm:$0xff]
    %v3176 = vld [vmem:[#allocation14 + $0x60] sm:$0xff]
    %v3177 = vld [vmem:[#allocation14 + $0x68] sm:$0xff]
    %v3178 = vld [vmem:[#allocation14 + $0x70] sm:$0xff]
    %v3179 = vld [vmem:[#allocation14 + $0x78] sm:$0xff]
    %v3180 = vld [vmem:[#allocation14 + $0x80] sm:$0xff]
    %v3181 = vld [vmem:[#allocation14 + $0x88] sm:$0xff]
    %v3182 = vld [vmem:[#allocation14 + $0x90] sm:$0xff]
    %v3183 = vld [vmem:[#allocation14 + $0x98] sm:$0xff]
    %v3184 = vld [vmem:[#allocation14 + $0xa0] sm:$0xff]
    %v3185 = vld [vmem:[#allocation14 + $0xa8] sm:$0xff]
    %v3186 = vld [vmem:[#allocation14 + $0xb0] sm:$0xff]
    %v3187 = vld [vmem:[#allocation14 + $0xb8] sm:$0xff]
    %v3188 = vld [vmem:[#allocation14 + $0xc0] sm:$0xff]
    %v3189 = vld [vmem:[#allocation14 + $0xc8] sm:$0xff]
    %v3190 = vld [vmem:[#allocation14 + $0xd0] sm:$0xff]
    %v3191 = vld [vmem:[#allocation14 + $0xd8] sm:$0xff]
    %v3192 = vld [vmem:[#allocation14 + $0xe0] sm:$0xff]
    %v3193 = vld [vmem:[#allocation14 + $0xe8] sm:$0xff]
    %v3194 = vld [vmem:[#allocation14 + $0xf0] sm:$0xff]
    %v3195 = vld [vmem:[#allocation14 + $0xf8] sm:$0xff]
    %v3196 = vld [vmem:[#allocation14 + $0x100] sm:$0xff]
    %v3197 = vld [vmem:[#allocation14 + $0x108] sm:$0xff]
    %v3198 = vld [vmem:[#allocation14 + $0x110] sm:$0xff]
    %v3199 = vld [vmem:[#allocation14 + $0x118] sm:$0xff]
    %v3200 = vld [vmem:[#allocation14 + $0x120] sm:$0xff]
    %v3201 = vld [vmem:[#allocation14 + $0x128] sm:$0xff]
    %v3202 = vld [vmem:[#allocation14 + $0x130] sm:$0xff]
    %v3203 = vld [vmem:[#allocation14 + $0x138] sm:$0xff]
    %v3204 = vld [vmem:[#allocation14 + $0x140] sm:$0xff]
    %v3205 = vld [vmem:[#allocation14 + $0x148] sm:$0xff]
    %v3206 = vld [vmem:[#allocation14 + $0x150] sm:$0xff]
    %v3207 = vld [vmem:[#allocation14 + $0x158] sm:$0xff]
    %v3208 = vld [vmem:[#allocation14 + $0x160] sm:$0xff]
    %v3209 = vld [vmem:[#allocation14 + $0x168] sm:$0xff]
    %v3210 = vld [vmem:[#allocation14 + $0x170] sm:$0xff]
    %v3211 = vld [vmem:[#allocation14 + $0x178] sm:$0xff]
    %v3212 = vld [vmem:[#allocation14 + $0x180] sm:$0xff]
    %v3213 = vld [vmem:[#allocation14 + $0x188] sm:$0xff]
    %v3214 = vld [vmem:[#allocation14 + $0x190] sm:$0xff]
    %v3215 = vld [vmem:[#allocation14 + $0x198] sm:$0xff]
    %v3216 = vld [vmem:[#allocation14 + $0x1a0] sm:$0xff]
    %v3217 = vld [vmem:[#allocation14 + $0x1a8] sm:$0xff]
    %v3218 = vld [vmem:[#allocation14 + $0x1b0] sm:$0xff]
    %v3219 = vld [vmem:[#allocation14 + $0x1b8] sm:$0xff]
    %v3220 = vld [vmem:[#allocation14 + $0x1c0] sm:$0xff]
    %v3221 = vld [vmem:[#allocation14 + $0x1c8] sm:$0xff]
    %v3222 = vld [vmem:[#allocation14 + $0x1d0] sm:$0xff]
    %v3223 = vld [vmem:[#allocation14 + $0x1d8] sm:$0xff]
    %v3224 = vld [vmem:[#allocation14 + $0x1e0] sm:$0xff]
    %v3225 = vld [vmem:[#allocation14 + $0x1e8] sm:$0xff]
    %v3226 = vld [vmem:[#allocation14 + $0x1f0] sm:$0xff]
    %v3227 = vld [vmem:[#allocation14 + $0x1f8] sm:$0xff]
    %v3228 = vld [vmem:[#allocation14 + $0x200] sm:$0xff]
    %v3229 = vld [vmem:[#allocation14 + $0x208] sm:$0xff]
    %v3230 = vld [vmem:[#allocation14 + $0x210] sm:$0xff]
    %v3231 = vld [vmem:[#allocation14 + $0x218] sm:$0xff]
    %v3232 = vld [vmem:[#allocation14 + $0x220] sm:$0xff]
    %v3233 = vld [vmem:[#allocation14 + $0x228] sm:$0xff]
    %v3234 = vld [vmem:[#allocation14 + $0x230] sm:$0xff]
    %v3235 = vld [vmem:[#allocation14 + $0x238] sm:$0xff]
    %v3236 = vld [vmem:[#allocation14 + $0x240] sm:$0xff]
    %v3237 = vld [vmem:[#allocation14 + $0x248] sm:$0xff]
    %v3238 = vld [vmem:[#allocation14 + $0x250] sm:$0xff]
    %v3239 = vld [vmem:[#allocation14 + $0x258] sm:$0xff]
    %v3240 = vld [vmem:[#allocation14 + $0x260] sm:$0xff]
    %v3241 = vld [vmem:[#allocation14 + $0x268] sm:$0xff]
    %v3242 = vld [vmem:[#allocation14 + $0x270] sm:$0xff]
    %v3243 = vld [vmem:[#allocation14 + $0x278] sm:$0xff]
    %v3244 = vld [vmem:[#allocation14 + $0x280] sm:$0xff]
    %v3245 = vld [vmem:[#allocation14 + $0x288] sm:$0xff]
    %v3246 = vld [vmem:[#allocation14 + $0x290] sm:$0xff]
    %v3247 = vld [vmem:[#allocation14 + $0x298] sm:$0xff]
    %v3248 = vld [vmem:[#allocation14 + $0x2a0] sm:$0xff]
    %v3249 = vld [vmem:[#allocation14 + $0x2a8] sm:$0xff]
    %v3250 = vld [vmem:[#allocation14 + $0x2b0] sm:$0xff]
    %v3251 = vld [vmem:[#allocation14 + $0x2b8] sm:$0xff]
    %v3252 = vld [vmem:[#allocation14 + $0x2c0] sm:$0xff]
    %v3253 = vld [vmem:[#allocation14 + $0x2c8] sm:$0xff]
    %v3254 = vld [vmem:[#allocation14 + $0x2d0] sm:$0xff]
    %v3255 = vld [vmem:[#allocation14 + $0x2d8] sm:$0xff]
    %v3256 = vld [vmem:[#allocation14 + $0x2e0] sm:$0xff]
    %v3257 = vld [vmem:[#allocation14 + $0x2e8] sm:$0xff]
    %v3258 = vld [vmem:[#allocation14 + $0x2f0] sm:$0xff]
    %v3259 = vld [vmem:[#allocation14 + $0x2f8] sm:$0xff]
    %v3260 = vld [vmem:[#allocation15] sm:$0x3]
    %v3262 = vlaneseq
    %v3263 = vshrl.u32 %v3262, 7
    %v3264 = vsub.s32 0, %v3263
    %v3265 = vrot.slane %v3260, %v3264
    %v3266 = vlaneseq
    %v3267 = vshrl.u32 %v3266, 7
    %v3268 = vsub.s32 1, %v3267
    %v3269 = vrot.slane %v3260, %v3268
    %v3368 = vunpack.c.l.b16 %v3164
    %v3369 = vunpack.c.h.b16 %v3164
    %v3370 = vunpack.c.l.b16 %v3165
    %v3371 = vunpack.c.h.b16 %v3165
    %v3372 = vunpack.c.l.b16 %v3166
    %v3373 = vunpack.c.h.b16 %v3166
    %v3374 = vunpack.c.l.b16 %v3167
    %v3375 = vunpack.c.h.b16 %v3167
    %v3376 = vunpack.c.l.b16 %v3168
    %v3377 = vunpack.c.h.b16 %v3168
    %v3378 = vunpack.c.l.b16 %v3169
    %v3379 = vunpack.c.h.b16 %v3169
    %v3380 = vunpack.c.l.b16 %v3170
    %v3381 = vunpack.c.h.b16 %v3170
    %v3382 = vunpack.c.l.b16 %v3171
    %v3383 = vunpack.c.h.b16 %v3171
    %v3384 = vunpack.c.l.b16 %v3172
    %v3385 = vunpack.c.h.b16 %v3172
    %v3386 = vunpack.c.l.b16 %v3173
    %v3387 = vunpack.c.h.b16 %v3173
    %v3388 = vunpack.c.l.b16 %v3174
    %v3389 = vunpack.c.h.b16 %v3174
    %v3390 = vunpack.c.l.b16 %v3175
    %v3391 = vunpack.c.h.b16 %v3175
    %v3392 = vunpack.c.l.b16 %v3176
    %v3393 = vunpack.c.h.b16 %v3176
    %v3394 = vunpack.c.l.b16 %v3177
    %v3395 = vunpack.c.h.b16 %v3177
    %v3396 = vunpack.c.l.b16 %v3178
    %v3397 = vunpack.c.h.b16 %v3178
    %v3398 = vunpack.c.l.b16 %v3179
    %v3399 = vunpack.c.h.b16 %v3179
    %v3400 = vunpack.c.l.b16 %v3180
    %v3401 = vunpack.c.h.b16 %v3180
    %v3402 = vunpack.c.l.b16 %v3181
    %v3403 = vunpack.c.h.b16 %v3181
    %v3404 = vunpack.c.l.b16 %v3182
    %v3405 = vunpack.c.h.b16 %v3182
    %v3406 = vunpack.c.l.b16 %v3183
    %v3407 = vunpack.c.h.b16 %v3183
    %v3408 = vunpack.c.l.b16 %v3184
    %v3409 = vunpack.c.h.b16 %v3184
    %v3410 = vunpack.c.l.b16 %v3185
    %v3411 = vunpack.c.h.b16 %v3185
    %v3412 = vunpack.c.l.b16 %v3186
    %v3413 = vunpack.c.h.b16 %v3186
    %v3414 = vunpack.c.l.b16 %v3187
    %v3415 = vunpack.c.h.b16 %v3187
    %v3416 = vunpack.c.l.b16 %v3188
    %v3417 = vunpack.c.h.b16 %v3188
    %v3418 = vunpack.c.l.b16 %v3189
    %v3419 = vunpack.c.h.b16 %v3189
    %v3420 = vunpack.c.l.b16 %v3190
    %v3421 = vunpack.c.h.b16 %v3190
    %v3422 = vunpack.c.l.b16 %v3191
    %v3423 = vunpack.c.h.b16 %v3191
    %v3424 = vunpack.c.l.b16 %v3192
    %v3425 = vunpack.c.h.b16 %v3192
    %v3426 = vunpack.c.l.b16 %v3193
    %v3427 = vunpack.c.h.b16 %v3193
    %v3428 = vunpack.c.l.b16 %v3194
    %v3429 = vunpack.c.h.b16 %v3194
    %v3430 = vunpack.c.l.b16 %v3195
    %v3431 = vunpack.c.h.b16 %v3195
    %v3432 = vunpack.c.l.b16 %v3196
    %v3433 = vunpack.c.h.b16 %v3196
    %v3434 = vunpack.c.l.b16 %v3197
    %v3435 = vunpack.c.h.b16 %v3197
    %v3436 = vunpack.c.l.b16 %v3198
    %v3437 = vunpack.c.h.b16 %v3198
    %v3438 = vunpack.c.l.b16 %v3199
    %v3439 = vunpack.c.h.b16 %v3199
    %v3440 = vunpack.c.l.b16 %v3200
    %v3441 = vunpack.c.h.b16 %v3200
    %v3442 = vunpack.c.l.b16 %v3201
    %v3443 = vunpack.c.h.b16 %v3201
    %v3444 = vunpack.c.l.b16 %v3202
    %v3445 = vunpack.c.h.b16 %v3202
    %v3446 = vunpack.c.l.b16 %v3203
    %v3447 = vunpack.c.h.b16 %v3203
    %v3448 = vunpack.c.l.b16 %v3204
    %v3449 = vunpack.c.h.b16 %v3204
    %v3450 = vunpack.c.l.b16 %v3205
    %v3451 = vunpack.c.h.b16 %v3205
    %v3452 = vunpack.c.l.b16 %v3206
    %v3453 = vunpack.c.h.b16 %v3206
    %v3454 = vunpack.c.l.b16 %v3207
    %v3455 = vunpack.c.h.b16 %v3207
    %v3456 = vunpack.c.l.b16 %v3208
    %v3457 = vunpack.c.h.b16 %v3208
    %v3458 = vunpack.c.l.b16 %v3209
    %v3459 = vunpack.c.h.b16 %v3209
    %v3460 = vunpack.c.l.b16 %v3210
    %v3461 = vunpack.c.h.b16 %v3210
    %v3462 = vunpack.c.l.b16 %v3211
    %v3463 = vunpack.c.h.b16 %v3211
    %v3464 = vunpack.c.l.b16 %v3212
    %v3465 = vunpack.c.h.b16 %v3212
    %v3466 = vunpack.c.l.b16 %v3213
    %v3467 = vunpack.c.h.b16 %v3213
    %v3468 = vunpack.c.l.b16 %v3214
    %v3469 = vunpack.c.h.b16 %v3214
    %v3470 = vunpack.c.l.b16 %v3215
    %v3471 = vunpack.c.h.b16 %v3215
    %v3472 = vunpack.c.l.b16 %v3216
    %v3473 = vunpack.c.h.b16 %v3216
    %v3474 = vunpack.c.l.b16 %v3217
    %v3475 = vunpack.c.h.b16 %v3217
    %v3476 = vunpack.c.l.b16 %v3218
    %v3477 = vunpack.c.h.b16 %v3218
    %v3478 = vunpack.c.l.b16 %v3219
    %v3479 = vunpack.c.h.b16 %v3219
    %v3480 = vunpack.c.l.b16 %v3220
    %v3481 = vunpack.c.h.b16 %v3220
    %v3482 = vunpack.c.l.b16 %v3221
    %v3483 = vunpack.c.h.b16 %v3221
    %v3484 = vunpack.c.l.b16 %v3222
    %v3485 = vunpack.c.h.b16 %v3222
    %v3486 = vunpack.c.l.b16 %v3223
    %v3487 = vunpack.c.h.b16 %v3223
    %v3488 = vunpack.c.l.b16 %v3224
    %v3489 = vunpack.c.h.b16 %v3224
    %v3490 = vunpack.c.l.b16 %v3225
    %v3491 = vunpack.c.h.b16 %v3225
    %v3492 = vunpack.c.l.b16 %v3226
    %v3493 = vunpack.c.h.b16 %v3226
    %v3494 = vunpack.c.l.b16 %v3227
    %v3495 = vunpack.c.h.b16 %v3227
    %v3496 = vunpack.c.l.b16 %v3228
    %v3497 = vunpack.c.h.b16 %v3228
    %v3498 = vunpack.c.l.b16 %v3229
    %v3499 = vunpack.c.h.b16 %v3229
    %v3500 = vunpack.c.l.b16 %v3230
    %v3501 = vunpack.c.h.b16 %v3230
    %v3502 = vunpack.c.l.b16 %v3231
    %v3503 = vunpack.c.h.b16 %v3231
    %v3504 = vunpack.c.l.b16 %v3232
    %v3505 = vunpack.c.h.b16 %v3232
    %v3506 = vunpack.c.l.b16 %v3233
    %v3507 = vunpack.c.h.b16 %v3233
    %v3508 = vunpack.c.l.b16 %v3234
    %v3509 = vunpack.c.h.b16 %v3234
    %v3510 = vunpack.c.l.b16 %v3235
    %v3511 = vunpack.c.h.b16 %v3235
    %v3512 = vunpack.c.l.b16 %v3236
    %v3513 = vunpack.c.h.b16 %v3236
    %v3514 = vunpack.c.l.b16 %v3237
    %v3515 = vunpack.c.h.b16 %v3237
    %v3516 = vunpack.c.l.b16 %v3238
    %v3517 = vunpack.c.h.b16 %v3238
    %v3518 = vunpack.c.l.b16 %v3239
    %v3519 = vunpack.c.h.b16 %v3239
    %v3520 = vunpack.c.l.b16 %v3240
    %v3521 = vunpack.c.h.b16 %v3240
    %v3522 = vunpack.c.l.b16 %v3241
    %v3523 = vunpack.c.h.b16 %v3241
    %v3524 = vunpack.c.l.b16 %v3242
    %v3525 = vunpack.c.h.b16 %v3242
    %v3526 = vunpack.c.l.b16 %v3243
    %v3527 = vunpack.c.h.b16 %v3243
    %v3528 = vunpack.c.l.b16 %v3244
    %v3529 = vunpack.c.h.b16 %v3244
    %v3530 = vunpack.c.l.b16 %v3245
    %v3531 = vunpack.c.h.b16 %v3245
    %v3532 = vunpack.c.l.b16 %v3246
    %v3533 = vunpack.c.h.b16 %v3246
    %v3534 = vunpack.c.l.b16 %v3247
    %v3535 = vunpack.c.h.b16 %v3247
    %v3536 = vunpack.c.l.b16 %v3248
    %v3537 = vunpack.c.h.b16 %v3248
    %v3538 = vunpack.c.l.b16 %v3249
    %v3539 = vunpack.c.h.b16 %v3249
    %v3540 = vunpack.c.l.b16 %v3250
    %v3541 = vunpack.c.h.b16 %v3250
    %v3542 = vunpack.c.l.b16 %v3251
    %v3543 = vunpack.c.h.b16 %v3251
    %v3544 = vunpack.c.l.b16 %v3252
    %v3545 = vunpack.c.h.b16 %v3252
    %v3546 = vunpack.c.l.b16 %v3253
    %v3547 = vunpack.c.h.b16 %v3253
    %v3548 = vunpack.c.l.b16 %v3254
    %v3549 = vunpack.c.h.b16 %v3254
    %v3550 = vunpack.c.l.b16 %v3255
    %v3551 = vunpack.c.h.b16 %v3255
    %v3552 = vunpack.c.l.b16 %v3256
    %v3553 = vunpack.c.h.b16 %v3256
    %v3554 = vunpack.c.l.b16 %v3257
    %v3555 = vunpack.c.h.b16 %v3257
    %v3556 = vunpack.c.l.b16 %v3258
    %v3557 = vunpack.c.h.b16 %v3258
    %v3558 = vunpack.c.l.b16 %v3259
    %v3559 = vunpack.c.h.b16 %v3259
    %v3560 = vpack.c.b16 %v3370, %v3368
    %v3561 = vpack.c.b16 %v3371, %v3369
    %v3562 = vpack.c.b16 %v3374, %v3372
    %v3563 = vpack.c.b16 %v3375, %v3373
    %v3564 = vpack.c.b16 %v3378, %v3376
    %v3565 = vpack.c.b16 %v3379, %v3377
    %v3566 = vpack.c.b16 %v3382, %v3380
    %v3567 = vpack.c.b16 %v3383, %v3381
    %v3568 = vpack.c.b16 %v3386, %v3384
    %v3569 = vpack.c.b16 %v3387, %v3385
    %v3570 = vpack.c.b16 %v3390, %v3388
    %v3571 = vpack.c.b16 %v3391, %v3389
    %v3572 = vpack.c.b16 %v3394, %v3392
    %v3573 = vpack.c.b16 %v3395, %v3393
    %v3574 = vpack.c.b16 %v3398, %v3396
    %v3575 = vpack.c.b16 %v3399, %v3397
    %v3576 = vpack.c.b16 %v3402, %v3400
    %v3577 = vpack.c.b16 %v3403, %v3401
    %v3578 = vpack.c.b16 %v3406, %v3404
    %v3579 = vpack.c.b16 %v3407, %v3405
    %v3580 = vpack.c.b16 %v3410, %v3408
    %v3581 = vpack.c.b16 %v3411, %v3409
    %v3582 = vpack.c.b16 %v3414, %v3412
    %v3583 = vpack.c.b16 %v3415, %v3413
    %v3584 = vpack.c.b16 %v3418, %v3416
    %v3585 = vpack.c.b16 %v3419, %v3417
    %v3586 = vpack.c.b16 %v3422, %v3420
    %v3587 = vpack.c.b16 %v3423, %v3421
    %v3588 = vpack.c.b16 %v3426, %v3424
    %v3589 = vpack.c.b16 %v3427, %v3425
    %v3590 = vpack.c.b16 %v3430, %v3428
    %v3591 = vpack.c.b16 %v3431, %v3429
    %v3592 = vpack.c.b16 %v3434, %v3432
    %v3593 = vpack.c.b16 %v3435, %v3433
    %v3594 = vpack.c.b16 %v3438, %v3436
    %v3595 = vpack.c.b16 %v3439, %v3437
    %v3596 = vpack.c.b16 %v3442, %v3440
    %v3597 = vpack.c.b16 %v3443, %v3441
    %v3598 = vpack.c.b16 %v3446, %v3444
    %v3599 = vpack.c.b16 %v3447, %v3445
    %v3600 = vpack.c.b16 %v3450, %v3448
    %v3601 = vpack.c.b16 %v3451, %v3449
    %v3602 = vpack.c.b16 %v3454, %v3452
    %v3603 = vpack.c.b16 %v3455, %v3453
    %v3604 = vpack.c.b16 %v3458, %v3456
    %v3605 = vpack.c.b16 %v3459, %v3457
    %v3606 = vpack.c.b16 %v3462, %v3460
    %v3607 = vpack.c.b16 %v3463, %v3461
    %v3608 = vpack.c.b16 %v3466, %v3464
    %v3609 = vpack.c.b16 %v3467, %v3465
    %v3610 = vpack.c.b16 %v3470, %v3468
    %v3611 = vpack.c.b16 %v3471, %v3469
    %v3612 = vpack.c.b16 %v3474, %v3472
    %v3613 = vpack.c.b16 %v3475, %v3473
    %v3614 = vpack.c.b16 %v3478, %v3476
    %v3615 = vpack.c.b16 %v3479, %v3477
    %v3616 = vpack.c.b16 %v3482, %v3480
    %v3617 = vpack.c.b16 %v3483, %v3481
    %v3618 = vpack.c.b16 %v3486, %v3484
    %v3619 = vpack.c.b16 %v3487, %v3485
    %v3620 = vpack.c.b16 %v3490, %v3488
    %v3621 = vpack.c.b16 %v3491, %v3489
    %v3622 = vpack.c.b16 %v3494, %v3492
    %v3623 = vpack.c.b16 %v3495, %v3493
    %v3624 = vpack.c.b16 %v3498, %v3496
    %v3625 = vpack.c.b16 %v3499, %v3497
    %v3626 = vpack.c.b16 %v3502, %v3500
    %v3627 = vpack.c.b16 %v3503, %v3501
    %v3628 = vpack.c.b16 %v3506, %v3504
    %v3629 = vpack.c.b16 %v3507, %v3505
    %v3630 = vpack.c.b16 %v3510, %v3508
    %v3631 = vpack.c.b16 %v3511, %v3509
    %v3632 = vpack.c.b16 %v3514, %v3512
    %v3633 = vpack.c.b16 %v3515, %v3513
    %v3634 = vpack.c.b16 %v3518, %v3516
    %v3635 = vpack.c.b16 %v3519, %v3517
    %v3636 = vpack.c.b16 %v3522, %v3520
    %v3637 = vpack.c.b16 %v3523, %v3521
    %v3638 = vpack.c.b16 %v3526, %v3524
    %v3639 = vpack.c.b16 %v3527, %v3525
    %v3640 = vpack.c.b16 %v3530, %v3528
    %v3641 = vpack.c.b16 %v3531, %v3529
    %v3642 = vpack.c.b16 %v3534, %v3532
    %v3643 = vpack.c.b16 %v3535, %v3533
    %v3644 = vpack.c.b16 %v3538, %v3536
    %v3645 = vpack.c.b16 %v3539, %v3537
    %v3646 = vpack.c.b16 %v3542, %v3540
    %v3647 = vpack.c.b16 %v3543, %v3541
    %v3648 = vpack.c.b16 %v3546, %v3544
    %v3649 = vpack.c.b16 %v3547, %v3545
    %v3650 = vpack.c.b16 %v3550, %v3548
    %v3651 = vpack.c.b16 %v3551, %v3549
    %v3652 = vpack.c.b16 %v3554, %v3552
    %v3653 = vpack.c.b16 %v3555, %v3553
    %v3654 = vpack.c.b16 %v3558, %v3556
    %v3655 = vpack.c.b16 %v3559, %v3557
    %3752 = vmatprep.subr.bf16.mxu0 %v3561
    %3753 = vmatpush1.bf16.msra.mxu0 %v3560
    %3754 = vmatprep.subr.bf16.mxu0 %v3563
    %3755 = vmatpush1.bf16.msra.mxu0 %v3562
    %3756 = vmatprep.subr.bf16.mxu0 %v3565
    %3757 = vmatpush1.bf16.msra.mxu0 %v3564
    %3758 = vmatprep.subr.bf16.mxu0 %v3567
    %3759 = vmatpush1.bf16.msra.mxu0 %v3566
    %3760 = vmatprep.subr.bf16.mxu0 %v3569
    %3761 = vmatpush1.bf16.msra.mxu0 %v3568
    %3762 = vmatprep.subr.bf16.mxu0 %v3571
    %3763 = vmatpush1.bf16.msra.mxu0 %v3570
    %3764 = vmatprep.subr.bf16.mxu0 %v3573
    %3765 = vmatpush1.bf16.msra.mxu0 %v3572
    %3766 = vmatprep.subr.bf16.mxu0 %v3575
    %3767 = vmatpush1.bf16.msra.mxu0 %v3574
    %3768 = vmatprep.subr.bf16.mxu0 %v3577
    %3769 = vmatpush1.bf16.msra.mxu0 %v3576
    %3770 = vmatprep.subr.bf16.mxu0 %v3579
    %3771 = vmatpush1.bf16.msra.mxu0 %v3578
    %3772 = vmatprep.subr.bf16.mxu0 %v3581
    %3773 = vmatpush1.bf16.msra.mxu0 %v3580
    %3774 = vmatprep.subr.bf16.mxu0 %v3583
    %3775 = vmatpush1.bf16.msra.mxu0 %v3582
    %3776 = vmatprep.subr.bf16.mxu0 %v3585
    %3777 = vmatpush1.bf16.msra.mxu0 %v3584
    %3778 = vmatprep.subr.bf16.mxu0 %v3587
    %3779 = vmatpush1.bf16.msra.mxu0 %v3586
    %3780 = vmatprep.subr.bf16.mxu0 %v3589
    %3781 = vmatpush1.bf16.msra.mxu0 %v3588
    %3782 = vmatprep.subr.bf16.mxu0 %v3591
    %3783 = vmatpush1.bf16.msra.mxu0 %v3590
    %3784 = vmatprep.mubr.bf16.mxu0 %v3159
    %3785 = vmatmul.mubr.bf16.gmra.mrb[0].mxu0 %v3158
    %v3786 = vpop.f32.mrb[0].mxu0
    %v3787 = vadd.f32 %v3265, %v3786
    %v3788 = vpop.f32.mrb[0].mxu0
    %v3789 = vadd.f32 %v3269, %v3788
    %v3790 = vpop.f32.mrb[0].mxu0
    %v3791 = vadd.f32 %v3265, %v3790
    %v3792 = vpop.f32.mrb[0].mxu0
    %v3793 = vadd.f32 %v3269, %v3792
    %3794 = vdwg.mxu0
    %3795 = vmatprep.subr.bf16.mxu0 %v3593
    %3796 = vmatpush1.bf16.msra.mxu0 %v3592
    %3797 = vmatprep.subr.bf16.mxu0 %v3595
    %3798 = vmatpush1.bf16.msra.mxu0 %v3594
    %3799 = vmatprep.subr.bf16.mxu0 %v3597
    %3800 = vmatpush1.bf16.msra.mxu0 %v3596
    %3801 = vmatprep.subr.bf16.mxu0 %v3599
    %3802 = vmatpush1.bf16.msra.mxu0 %v3598
    %3803 = vmatprep.subr.bf16.mxu0 %v3601
    %3804 = vmatpush1.bf16.msra.mxu0 %v3600
    %3805 = vmatprep.subr.bf16.mxu0 %v3603
    %3806 = vmatpush1.bf16.msra.mxu0 %v3602
    %3807 = vmatprep.subr.bf16.mxu0 %v3605
    %3808 = vmatpush1.bf16.msra.mxu0 %v3604
    %3809 = vmatprep.subr.bf16.mxu0 %v3607
    %3810 = vmatpush1.bf16.msra.mxu0 %v3606
    %3811 = vmatprep.subr.bf16.mxu0 %v3609
    %3812 = vmatpush1.bf16.msra.mxu0 %v3608
    %3813 = vmatprep.subr.bf16.mxu0 %v3611
    %3814 = vmatpush1.bf16.msra.mxu0 %v3610
    %3815 = vmatprep.subr.bf16.mxu0 %v3613
    %3816 = vmatpush1.bf16.msra.mxu0 %v3612
    %3817 = vmatprep.subr.bf16.mxu0 %v3615
    %3818 = vmatpush1.bf16.msra.mxu0 %v3614
    %3819 = vmatprep.subr.bf16.mxu0 %v3617
    %3820 = vmatpush1.bf16.msra.mxu0 %v3616
    %3821 = vmatprep.subr.bf16.mxu0 %v3619
    %3822 = vmatpush1.bf16.msra.mxu0 %v3618
    %3823 = vmatprep.subr.bf16.mxu0 %v3621
    %3824 = vmatpush1.bf16.msra.mxu0 %v3620
    %3825 = vmatprep.subr.bf16.mxu0 %v3623
    %3826 = vmatpush1.bf16.msra.mxu0 %v3622
    %3827 = vmatprep.mubr.bf16.mxu0 %v3161
    %3828 = vmatmul.mubr.bf16.gmra.mrb[0].mxu0 %v3160
    %v3829 = vpop.f32.mrb[0].mxu0
    %v3830 = vadd.f32 %v3787, %v3829
    %v3831 = vpop.f32.mrb[0].mxu0
    %v3832 = vadd.f32 %v3789, %v3831
    %v3833 = vpop.f32.mrb[0].mxu0
    %v3834 = vadd.f32 %v3791, %v3833
    %v3835 = vpop.f32.mrb[0].mxu0
    %v3836 = vadd.f32 %v3793, %v3835
    %3837 = vdwg.mxu0
    %3838 = vmatprep.subr.bf16.mxu0 %v3625
    %3839 = vmatpush1.bf16.msra.mxu0 %v3624
    %3840 = vmatprep.subr.bf16.mxu0 %v3627
    %3841 = vmatpush1.bf16.msra.mxu0 %v3626
    %3842 = vmatprep.subr.bf16.mxu0 %v3629
    %3843 = vmatpush1.bf16.msra.mxu0 %v3628
    %3844 = vmatprep.subr.bf16.mxu0 %v3631
    %3845 = vmatpush1.bf16.msra.mxu0 %v3630
    %3846 = vmatprep.subr.bf16.mxu0 %v3633
    %3847 = vmatpush1.bf16.msra.mxu0 %v3632
    %3848 = vmatprep.subr.bf16.mxu0 %v3635
    %3849 = vmatpush1.bf16.msra.mxu0 %v3634
    %3850 = vmatprep.subr.bf16.mxu0 %v3637
    %3851 = vmatpush1.bf16.msra.mxu0 %v3636
    %3852 = vmatprep.subr.bf16.mxu0 %v3639
    %3853 = vmatpush1.bf16.msra.mxu0 %v3638
    %3854 = vmatprep.subr.bf16.mxu0 %v3641
    %3855 = vmatpush1.bf16.msra.mxu0 %v3640
    %3856 = vmatprep.subr.bf16.mxu0 %v3643
    %3857 = vmatpush1.bf16.msra.mxu0 %v3642
    %3858 = vmatprep.subr.bf16.mxu0 %v3645
    %3859 = vmatpush1.bf16.msra.mxu0 %v3644
    %3860 = vmatprep.subr.bf16.mxu0 %v3647
    %3861 = vmatpush1.bf16.msra.mxu0 %v3646
    %3862 = vmatprep.subr.bf16.mxu0 %v3649
    %3863 = vmatpush1.bf16.msra.mxu0 %v3648
    %3864 = vmatprep.subr.bf16.mxu0 %v3651
    %3865 = vmatpush1.bf16.msra.mxu0 %v3650
    %3866 = vmatprep.subr.bf16.mxu0 %v3653
    %3867 = vmatpush1.bf16.msra.mxu0 %v3652
    %3868 = vmatprep.subr.bf16.mxu0 %v3655
    %3869 = vmatpush1.bf16.msra.mxu0 %v3654
    %3870 = vmatprep.mubr.bf16.mxu0 %v3163
    %3871 = vmatmul.mubr.bf16.gmra.mrb[0].mxu0 %v3162
    %v3872 = vpop.f32.mrb[0].mxu0
    %v3873 = vadd.f32 %v3830, %v3872
    %v3874 = vpop.f32.mrb[0].mxu0
    %v3875 = vadd.f32 %v3832, %v3874
    %v3876 = vpop.f32.mrb[0].mxu0
    %v3877 = vadd.f32 %v3834, %v3876
    %v3878 = vpop.f32.mrb[0].mxu0
    %v3879 = vadd.f32 %v3836, %v3878
    %3880 = vdwg.mxu0
    %v3881 = vmax.f32 %v3875, -4.0
    %v3882 = vmax.f32 %v3879, -4.0
    %v3883 = vmin.f32 %v3881, 15.0
    %v3884 = vmin.f32 %v3882, 15.0
    %v3885 = vmul.f32 %v3883, 1.442695
    %v3886 = vpow.pop %v3885
    %v3887 = vmul.f32 %v3884, 1.442695
    %v3888 = vpow.pop %v3887
    %v3889 = vmul.f32 %v3886, %v232
    %v3890 = vmul.f32 %v3888, %v233
    %v3891 = vadd.f32 %v3873, %v3889
    %v3892 = vadd.f32 %v3877, %v3890
    %v3893 = vpack.c.bf16 %v3892, %v3891
    %3894 = vst [vmem:[#allocation2] sm:$0xff] %v368
    %3895 = vst [vmem:[#allocation2 + $0x8] sm:$0xff] %v3893
    %v3896 = vld [vmem:[#allocation2] sm:$0xff]
    %v3897 = vld [vmem:[#allocation2 + $0x8] sm:$0xff]
    %v3898 = vld [vmem:[#allocation17] sm:$0xff]
    %v3899 = vld [vmem:[#allocation17 + $0x8] sm:$0xff]
    %v3900 = vld [vmem:[#allocation17 + $0x10] sm:$0xff]
    %v3901 = vld [vmem:[#allocation17 + $0x18] sm:$0xff]
    %v3902 = vld [vmem:[#allocation17 + $0x20] sm:$0xff]
    %v3903 = vld [vmem:[#allocation17 + $0x28] sm:$0xff]
    %v3904 = vld [vmem:[#allocation17 + $0x30] sm:$0xff]
    %v3905 = vld [vmem:[#allocation17 + $0x38] sm:$0xff]
    %v3906 = vld [vmem:[#allocation17 + $0x40] sm:$0xff]
    %v3907 = vld [vmem:[#allocation17 + $0x48] sm:$0xff]
    %v3908 = vld [vmem:[#allocation17 + $0x50] sm:$0xff]
    %v3909 = vld [vmem:[#allocation17 + $0x58] sm:$0xff]
    %v3910 = vld [vmem:[#allocation17 + $0x60] sm:$0xff]
    %v3911 = vld [vmem:[#allocation17 + $0x68] sm:$0xff]
    %v3912 = vld [vmem:[#allocation17 + $0x70] sm:$0xff]
    %v3913 = vld [vmem:[#allocation17 + $0x78] sm:$0xff]
    %v3914 = vld [vmem:[#allocation17 + $0x80] sm:$0xff]
    %v3915 = vld [vmem:[#allocation17 + $0x88] sm:$0xff]
    %v3916 = vld [vmem:[#allocation17 + $0x90] sm:$0xff]
    %v3917 = vld [vmem:[#allocation17 + $0x98] sm:$0xff]
    %v3918 = vld [vmem:[#allocation17 + $0xa0] sm:$0xff]
    %v3919 = vld [vmem:[#allocation17 + $0xa8] sm:$0xff]
    %v3920 = vld [vmem:[#allocation17 + $0xb0] sm:$0xff]
    %v3921 = vld [vmem:[#allocation17 + $0xb8] sm:$0xff]
    %v3922 = vld [vmem:[#allocation17 + $0xc0] sm:$0xff]
    %v3923 = vld [vmem:[#allocation17 + $0xc8] sm:$0xff]
    %v3924 = vld [vmem:[#allocation17 + $0xd0] sm:$0xff]
    %v3925 = vld [vmem:[#allocation17 + $0xd8] sm:$0xff]
    %v3926 = vld [vmem:[#allocation17 + $0xe0] sm:$0xff]
    %v3927 = vld [vmem:[#allocation17 + $0xe8] sm:$0xff]
    %v3928 = vld [vmem:[#allocation17 + $0xf0] sm:$0xff]
    %v3929 = vld [vmem:[#allocation17 + $0xf8] sm:$0xff]
    %v3930 = vld [vmem:[#allocation17 + $0x100] sm:$0xff]
    %v3931 = vld [vmem:[#allocation17 + $0x108] sm:$0xff]
    %v3932 = vld [vmem:[#allocation17 + $0x110] sm:$0xff]
    %v3933 = vld [vmem:[#allocation17 + $0x118] sm:$0xff]
    %v3934 = vld [vmem:[#allocation17 + $0x120] sm:$0xff]
    %v3935 = vld [vmem:[#allocation17 + $0x128] sm:$0xff]
    %v3936 = vld [vmem:[#allocation17 + $0x130] sm:$0xff]
    %v3937 = vld [vmem:[#allocation17 + $0x138] sm:$0xff]
    %v3938 = vld [vmem:[#allocation17 + $0x140] sm:$0xff]
    %v3939 = vld [vmem:[#allocation17 + $0x148] sm:$0xff]
    %v3940 = vld [vmem:[#allocation17 + $0x150] sm:$0xff]
    %v3941 = vld [vmem:[#allocation17 + $0x158] sm:$0xff]
    %v3942 = vld [vmem:[#allocation17 + $0x160] sm:$0xff]
    %v3943 = vld [vmem:[#allocation17 + $0x168] sm:$0xff]
    %v3944 = vld [vmem:[#allocation17 + $0x170] sm:$0xff]
    %v3945 = vld [vmem:[#allocation17 + $0x178] sm:$0xff]
    %v3946 = vld [vmem:[#allocation17 + $0x180] sm:$0xff]
    %v3947 = vld [vmem:[#allocation17 + $0x188] sm:$0xff]
    %v3948 = vld [vmem:[#allocation17 + $0x190] sm:$0xff]
    %v3949 = vld [vmem:[#allocation17 + $0x198] sm:$0xff]
    %v3950 = vld [vmem:[#allocation17 + $0x1a0] sm:$0xff]
    %v3951 = vld [vmem:[#allocation17 + $0x1a8] sm:$0xff]
    %v3952 = vld [vmem:[#allocation17 + $0x1b0] sm:$0xff]
    %v3953 = vld [vmem:[#allocation17 + $0x1b8] sm:$0xff]
    %v3954 = vld [vmem:[#allocation17 + $0x1c0] sm:$0xff]
    %v3955 = vld [vmem:[#allocation17 + $0x1c8] sm:$0xff]
    %v3956 = vld [vmem:[#allocation17 + $0x1d0] sm:$0xff]
    %v3957 = vld [vmem:[#allocation17 + $0x1d8] sm:$0xff]
    %v3958 = vld [vmem:[#allocation17 + $0x1e0] sm:$0xff]
    %v3959 = vld [vmem:[#allocation17 + $0x1e8] sm:$0xff]
    %v3960 = vld [vmem:[#allocation17 + $0x1f0] sm:$0xff]
    %v3961 = vld [vmem:[#allocation17 + $0x1f8] sm:$0xff]
    %v3962 = vld [vmem:[#allocation17 + $0x200] sm:$0xff]
    %v3963 = vld [vmem:[#allocation17 + $0x208] sm:$0xff]
    %v3964 = vld [vmem:[#allocation17 + $0x210] sm:$0xff]
    %v3965 = vld [vmem:[#allocation17 + $0x218] sm:$0xff]
    %v3966 = vld [vmem:[#allocation17 + $0x220] sm:$0xff]
    %v3967 = vld [vmem:[#allocation17 + $0x228] sm:$0xff]
    %v3968 = vld [vmem:[#allocation17 + $0x230] sm:$0xff]
    %v3969 = vld [vmem:[#allocation17 + $0x238] sm:$0xff]
    %v3970 = vld [vmem:[#allocation17 + $0x240] sm:$0xff]
    %v3971 = vld [vmem:[#allocation17 + $0x248] sm:$0xff]
    %v3972 = vld [vmem:[#allocation17 + $0x250] sm:$0xff]
    %v3973 = vld [vmem:[#allocation17 + $0x258] sm:$0xff]
    %v3974 = vld [vmem:[#allocation17 + $0x260] sm:$0xff]
    %v3975 = vld [vmem:[#allocation17 + $0x268] sm:$0xff]
    %v3976 = vld [vmem:[#allocation17 + $0x270] sm:$0xff]
    %v3977 = vld [vmem:[#allocation17 + $0x278] sm:$0xff]
    %v3978 = vld [vmem:[#allocation17 + $0x280] sm:$0xff]
    %v3979 = vld [vmem:[#allocation17 + $0x288] sm:$0xff]
    %v3980 = vld [vmem:[#allocation17 + $0x290] sm:$0xff]
    %v3981 = vld [vmem:[#allocation17 + $0x298] sm:$0xff]
    %v3982 = vld [vmem:[#allocation17 + $0x2a0] sm:$0xff]
    %v3983 = vld [vmem:[#allocation17 + $0x2a8] sm:$0xff]
    %v3984 = vld [vmem:[#allocation17 + $0x2b0] sm:$0xff]
    %v3985 = vld [vmem:[#allocation17 + $0x2b8] sm:$0xff]
    %v3986 = vld [vmem:[#allocation17 + $0x2c0] sm:$0xff]
    %v3987 = vld [vmem:[#allocation17 + $0x2c8] sm:$0xff]
    %v3988 = vld [vmem:[#allocation17 + $0x2d0] sm:$0xff]
    %v3989 = vld [vmem:[#allocation17 + $0x2d8] sm:$0xff]
    %v3990 = vld [vmem:[#allocation17 + $0x2e0] sm:$0xff]
    %v3991 = vld [vmem:[#allocation17 + $0x2e8] sm:$0xff]
    %v3992 = vld [vmem:[#allocation17 + $0x2f0] sm:$0xff]
    %v3993 = vld [vmem:[#allocation17 + $0x2f8] sm:$0xff]
    %v3994 = vld [vmem:[#allocation18] sm:$0x3f]
    %v3996 = vlaneseq
    %v3997 = vshrl.u32 %v3996, 7
    %v3998 = vsub.s32 0, %v3997
    %v3999 = vrot.slane %v3994, %v3998
    %v4000 = vlaneseq
    %v4001 = vshrl.u32 %v4000, 7
    %v4002 = vsub.s32 1, %v4001
    %v4003 = vrot.slane %v3994, %v4002
    %v4004 = vlaneseq
    %v4005 = vshrl.u32 %v4004, 7
    %v4006 = vsub.s32 2, %v4005
    %v4007 = vrot.slane %v3994, %v4006
    %v4008 = vlaneseq
    %v4009 = vshrl.u32 %v4008, 7
    %v4010 = vsub.s32 3, %v4009
    %v4011 = vrot.slane %v3994, %v4010
    %v4012 = vlaneseq
    %v4013 = vshrl.u32 %v4012, 7
    %v4014 = vsub.s32 4, %v4013
    %v4015 = vrot.slane %v3994, %v4014
    %v4016 = vlaneseq
    %v4017 = vshrl.u32 %v4016, 7
    %v4018 = vsub.s32 5, %v4017
    %v4019 = vrot.slane %v3994, %v4018
    %v4122 = vunpack.c.l.b16 %v3898
    %v4123 = vunpack.c.h.b16 %v3898
    %v4124 = vunpack.c.l.b16 %v3899
    %v4125 = vunpack.c.h.b16 %v3899
    %v4126 = vunpack.c.l.b16 %v3900
    %v4127 = vunpack.c.h.b16 %v3900
    %v4128 = vunpack.c.l.b16 %v3901
    %v4129 = vunpack.c.h.b16 %v3901
    %v4130 = vunpack.c.l.b16 %v3902
    %v4131 = vunpack.c.h.b16 %v3902
    %v4132 = vunpack.c.l.b16 %v3903
    %v4133 = vunpack.c.h.b16 %v3903
    %v4134 = vunpack.c.l.b16 %v3904
    %v4135 = vunpack.c.h.b16 %v3904
    %v4136 = vunpack.c.l.b16 %v3905
    %v4137 = vunpack.c.h.b16 %v3905
    %v4138 = vunpack.c.l.b16 %v3906
    %v4139 = vunpack.c.h.b16 %v3906
    %v4140 = vunpack.c.l.b16 %v3907
    %v4141 = vunpack.c.h.b16 %v3907
    %v4142 = vunpack.c.l.b16 %v3908
    %v4143 = vunpack.c.h.b16 %v3908
    %v4144 = vunpack.c.l.b16 %v3909
    %v4145 = vunpack.c.h.b16 %v3909
    %v4146 = vunpack.c.l.b16 %v3910
    %v4147 = vunpack.c.h.b16 %v3910
    %v4148 = vunpack.c.l.b16 %v3911
    %v4149 = vunpack.c.h.b16 %v3911
    %v4150 = vunpack.c.l.b16 %v3912
    %v4151 = vunpack.c.h.b16 %v3912
    %v4152 = vunpack.c.l.b16 %v3913
    %v4153 = vunpack.c.h.b16 %v3913
    %v4154 = vunpack.c.l.b16 %v3914
    %v4155 = vunpack.c.h.b16 %v3914
    %v4156 = vunpack.c.l.b16 %v3915
    %v4157 = vunpack.c.h.b16 %v3915
    %v4158 = vunpack.c.l.b16 %v3916
    %v4159 = vunpack.c.h.b16 %v3916
    %v4160 = vunpack.c.l.b16 %v3917
    %v4161 = vunpack.c.h.b16 %v3917
    %v4162 = vunpack.c.l.b16 %v3918
    %v4163 = vunpack.c.h.b16 %v3918
    %v4164 = vunpack.c.l.b16 %v3919
    %v4165 = vunpack.c.h.b16 %v3919
    %v4166 = vunpack.c.l.b16 %v3920
    %v4167 = vunpack.c.h.b16 %v3920
    %v4168 = vunpack.c.l.b16 %v3921
    %v4169 = vunpack.c.h.b16 %v3921
    %v4170 = vunpack.c.l.b16 %v3922
    %v4171 = vunpack.c.h.b16 %v3922
    %v4172 = vunpack.c.l.b16 %v3923
    %v4173 = vunpack.c.h.b16 %v3923
    %v4174 = vunpack.c.l.b16 %v3924
    %v4175 = vunpack.c.h.b16 %v3924
    %v4176 = vunpack.c.l.b16 %v3925
    %v4177 = vunpack.c.h.b16 %v3925
    %v4178 = vunpack.c.l.b16 %v3926
    %v4179 = vunpack.c.h.b16 %v3926
    %v4180 = vunpack.c.l.b16 %v3927
    %v4181 = vunpack.c.h.b16 %v3927
    %v4182 = vunpack.c.l.b16 %v3928
    %v4183 = vunpack.c.h.b16 %v3928
    %v4184 = vunpack.c.l.b16 %v3929
    %v4185 = vunpack.c.h.b16 %v3929
    %v4186 = vunpack.c.l.b16 %v3930
    %v4187 = vunpack.c.h.b16 %v3930
    %v4188 = vunpack.c.l.b16 %v3931
    %v4189 = vunpack.c.h.b16 %v3931
    %v4190 = vunpack.c.l.b16 %v3932
    %v4191 = vunpack.c.h.b16 %v3932
    %v4192 = vunpack.c.l.b16 %v3933
    %v4193 = vunpack.c.h.b16 %v3933
    %v4194 = vunpack.c.l.b16 %v3934
    %v4195 = vunpack.c.h.b16 %v3934
    %v4196 = vunpack.c.l.b16 %v3935
    %v4197 = vunpack.c.h.b16 %v3935
    %v4198 = vunpack.c.l.b16 %v3936
    %v4199 = vunpack.c.h.b16 %v3936
    %v4200 = vunpack.c.l.b16 %v3937
    %v4201 = vunpack.c.h.b16 %v3937
    %v4202 = vunpack.c.l.b16 %v3938
    %v4203 = vunpack.c.h.b16 %v3938
    %v4204 = vunpack.c.l.b16 %v3939
    %v4205 = vunpack.c.h.b16 %v3939
    %v4206 = vunpack.c.l.b16 %v3940
    %v4207 = vunpack.c.h.b16 %v3940
    %v4208 = vunpack.c.l.b16 %v3941
    %v4209 = vunpack.c.h.b16 %v3941
    %v4210 = vunpack.c.l.b16 %v3942
    %v4211 = vunpack.c.h.b16 %v3942
    %v4212 = vunpack.c.l.b16 %v3943
    %v4213 = vunpack.c.h.b16 %v3943
    %v4214 = vunpack.c.l.b16 %v3944
    %v4215 = vunpack.c.h.b16 %v3944
    %v4216 = vunpack.c.l.b16 %v3945
    %v4217 = vunpack.c.h.b16 %v3945
    %v4218 = vunpack.c.l.b16 %v3946
    %v4219 = vunpack.c.h.b16 %v3946
    %v4220 = vunpack.c.l.b16 %v3947
    %v4221 = vunpack.c.h.b16 %v3947
    %v4222 = vunpack.c.l.b16 %v3948
    %v4223 = vunpack.c.h.b16 %v3948
    %v4224 = vunpack.c.l.b16 %v3949
    %v4225 = vunpack.c.h.b16 %v3949
    %v4226 = vunpack.c.l.b16 %v3950
    %v4227 = vunpack.c.h.b16 %v3950
    %v4228 = vunpack.c.l.b16 %v3951
    %v4229 = vunpack.c.h.b16 %v3951
    %v4230 = vunpack.c.l.b16 %v3952
    %v4231 = vunpack.c.h.b16 %v3952
    %v4232 = vunpack.c.l.b16 %v3953
    %v4233 = vunpack.c.h.b16 %v3953
    %v4234 = vunpack.c.l.b16 %v3954
    %v4235 = vunpack.c.h.b16 %v3954
    %v4236 = vunpack.c.l.b16 %v3955
    %v4237 = vunpack.c.h.b16 %v3955
    %v4238 = vunpack.c.l.b16 %v3956
    %v4239 = vunpack.c.h.b16 %v3956
    %v4240 = vunpack.c.l.b16 %v3957
    %v4241 = vunpack.c.h.b16 %v3957
    %v4242 = vunpack.c.l.b16 %v3958
    %v4243 = vunpack.c.h.b16 %v3958
    %v4244 = vunpack.c.l.b16 %v3959
    %v4245 = vunpack.c.h.b16 %v3959
    %v4246 = vunpack.c.l.b16 %v3960
    %v4247 = vunpack.c.h.b16 %v3960
    %v4248 = vunpack.c.l.b16 %v3961
    %v4249 = vunpack.c.h.b16 %v3961
    %v4250 = vunpack.c.l.b16 %v3962
    %v4251 = vunpack.c.h.b16 %v3962
    %v4252 = vunpack.c.l.b16 %v3963
    %v4253 = vunpack.c.h.b16 %v3963
    %v4254 = vunpack.c.l.b16 %v3964
    %v4255 = vunpack.c.h.b16 %v3964
    %v4256 = vunpack.c.l.b16 %v3965
    %v4257 = vunpack.c.h.b16 %v3965
    %v4258 = vunpack.c.l.b16 %v3966
    %v4259 = vunpack.c.h.b16 %v3966
    %v4260 = vunpack.c.l.b16 %v3967
    %v4261 = vunpack.c.h.b16 %v3967
    %v4262 = vunpack.c.l.b16 %v3968
    %v4263 = vunpack.c.h.b16 %v3968
    %v4264 = vunpack.c.l.b16 %v3969
    %v4265 = vunpack.c.h.b16 %v3969
    %v4266 = vunpack.c.l.b16 %v3970
    %v4267 = vunpack.c.h.b16 %v3970
    %v4268 = vunpack.c.l.b16 %v3971
    %v4269 = vunpack.c.h.b16 %v3971
    %v4270 = vunpack.c.l.b16 %v3972
    %v4271 = vunpack.c.h.b16 %v3972
    %v4272 = vunpack.c.l.b16 %v3973
    %v4273 = vunpack.c.h.b16 %v3973
    %v4274 = vunpack.c.l.b16 %v3974
    %v4275 = vunpack.c.h.b16 %v3974
    %v4276 = vunpack.c.l.b16 %v3975
    %v4277 = vunpack.c.h.b16 %v3975
    %v4278 = vunpack.c.l.b16 %v3976
    %v4279 = vunpack.c.h.b16 %v3976
    %v4280 = vunpack.c.l.b16 %v3977
    %v4281 = vunpack.c.h.b16 %v3977
    %v4282 = vunpack.c.l.b16 %v3978
    %v4283 = vunpack.c.h.b16 %v3978
    %v4284 = vunpack.c.l.b16 %v3979
    %v4285 = vunpack.c.h.b16 %v3979
    %v4286 = vunpack.c.l.b16 %v3980
    %v4287 = vunpack.c.h.b16 %v3980
    %v4288 = vunpack.c.l.b16 %v3981
    %v4289 = vunpack.c.h.b16 %v3981
    %v4290 = vunpack.c.l.b16 %v3982
    %v4291 = vunpack.c.h.b16 %v3982
    %v4292 = vunpack.c.l.b16 %v3983
    %v4293 = vunpack.c.h.b16 %v3983
    %v4294 = vunpack.c.l.b16 %v3984
    %v4295 = vunpack.c.h.b16 %v3984
    %v4296 = vunpack.c.l.b16 %v3985
    %v4297 = vunpack.c.h.b16 %v3985
    %v4298 = vunpack.c.l.b16 %v3986
    %v4299 = vunpack.c.h.b16 %v3986
    %v4300 = vunpack.c.l.b16 %v3987
    %v4301 = vunpack.c.h.b16 %v3987
    %v4302 = vunpack.c.l.b16 %v3988
    %v4303 = vunpack.c.h.b16 %v3988
    %v4304 = vunpack.c.l.b16 %v3989
    %v4305 = vunpack.c.h.b16 %v3989
    %v4306 = vunpack.c.l.b16 %v3990
    %v4307 = vunpack.c.h.b16 %v3990
    %v4308 = vunpack.c.l.b16 %v3991
    %v4309 = vunpack.c.h.b16 %v3991
    %v4310 = vunpack.c.l.b16 %v3992
    %v4311 = vunpack.c.h.b16 %v3992
    %v4312 = vunpack.c.l.b16 %v3993
    %v4313 = vunpack.c.h.b16 %v3993
    %v4314 = vpack.c.b16 %v4128, %v4122
    %v4315 = vpack.c.b16 %v4129, %v4123
    %v4316 = vpack.c.b16 %v4130, %v4124
    %v4317 = vpack.c.b16 %v4131, %v4125
    %v4318 = vpack.c.b16 %v4132, %v4126
    %v4319 = vpack.c.b16 %v4133, %v4127
    %v4320 = vpack.c.b16 %v4140, %v4134
    %v4321 = vpack.c.b16 %v4141, %v4135
    %v4322 = vpack.c.b16 %v4142, %v4136
    %v4323 = vpack.c.b16 %v4143, %v4137
    %v4324 = vpack.c.b16 %v4144, %v4138
    %v4325 = vpack.c.b16 %v4145, %v4139
    %v4326 = vpack.c.b16 %v4152, %v4146
    %v4327 = vpack.c.b16 %v4153, %v4147
    %v4328 = vpack.c.b16 %v4154, %v4148
    %v4329 = vpack.c.b16 %v4155, %v4149
    %v4330 = vpack.c.b16 %v4156, %v4150
    %v4331 = vpack.c.b16 %v4157, %v4151
    %v4332 = vpack.c.b16 %v4164, %v4158
    %v4333 = vpack.c.b16 %v4165, %v4159
    %v4334 = vpack.c.b16 %v4166, %v4160
    %v4335 = vpack.c.b16 %v4167, %v4161
    %v4336 = vpack.c.b16 %v4168, %v4162
    %v4337 = vpack.c.b16 %v4169, %v4163
    %v4338 = vpack.c.b16 %v4176, %v4170
    %v4339 = vpack.c.b16 %v4177, %v4171
    %v4340 = vpack.c.b16 %v4178, %v4172
    %v4341 = vpack.c.b16 %v4179, %v4173
    %v4342 = vpack.c.b16 %v4180, %v4174
    %v4343 = vpack.c.b16 %v4181, %v4175
    %v4344 = vpack.c.b16 %v4188, %v4182
    %v4345 = vpack.c.b16 %v4189, %v4183
    %v4346 = vpack.c.b16 %v4190, %v4184
    %v4347 = vpack.c.b16 %v4191, %v4185
    %v4348 = vpack.c.b16 %v4192, %v4186
    %v4349 = vpack.c.b16 %v4193, %v4187
    %v4350 = vpack.c.b16 %v4200, %v4194
    %v4351 = vpack.c.b16 %v4201, %v4195
    %v4352 = vpack.c.b16 %v4202, %v4196
    %v4353 = vpack.c.b16 %v4203, %v4197
    %v4354 = vpack.c.b16 %v4204, %v4198
    %v4355 = vpack.c.b16 %v4205, %v4199
    %v4356 = vpack.c.b16 %v4212, %v4206
    %v4357 = vpack.c.b16 %v4213, %v4207
    %v4358 = vpack.c.b16 %v4214, %v4208
    %v4359 = vpack.c.b16 %v4215, %v4209
    %v4360 = vpack.c.b16 %v4216, %v4210
    %v4361 = vpack.c.b16 %v4217, %v4211
    %v4362 = vpack.c.b16 %v4224, %v4218
    %v4363 = vpack.c.b16 %v4225, %v4219
    %v4364 = vpack.c.b16 %v4226, %v4220
    %v4365 = vpack.c.b16 %v4227, %v4221
    %v4366 = vpack.c.b16 %v4228, %v4222
    %v4367 = vpack.c.b16 %v4229, %v4223
    %v4368 = vpack.c.b16 %v4236, %v4230
    %v4369 = vpack.c.b16 %v4237, %v4231
    %v4370 = vpack.c.b16 %v4238, %v4232
    %v4371 = vpack.c.b16 %v4239, %v4233
    %v4372 = vpack.c.b16 %v4240, %v4234
    %v4373 = vpack.c.b16 %v4241, %v4235
    %v4374 = vpack.c.b16 %v4248, %v4242
    %v4375 = vpack.c.b16 %v4249, %v4243
    %v4376 = vpack.c.b16 %v4250, %v4244
    %v4377 = vpack.c.b16 %v4251, %v4245
    %v4378 = vpack.c.b16 %v4252, %v4246
    %v4379 = vpack.c.b16 %v4253, %v4247
    %v4380 = vpack.c.b16 %v4260, %v4254
    %v4381 = vpack.c.b16 %v4261, %v4255
    %v4382 = vpack.c.b16 %v4262, %v4256
    %v4383 = vpack.c.b16 %v4263, %v4257
    %v4384 = vpack.c.b16 %v4264, %v4258
    %v4385 = vpack.c.b16 %v4265, %v4259
    %v4386 = vpack.c.b16 %v4272, %v4266
    %v4387 = vpack.c.b16 %v4273, %v4267
    %v4388 = vpack.c.b16 %v4274, %v4268
    %v4389 = vpack.c.b16 %v4275, %v4269
    %v4390 = vpack.c.b16 %v4276, %v4270
    %v4391 = vpack.c.b16 %v4277, %v4271
    %v4392 = vpack.c.b16 %v4284, %v4278
    %v4393 = vpack.c.b16 %v4285, %v4279
    %v4394 = vpack.c.b16 %v4286, %v4280
    %v4395 = vpack.c.b16 %v4287, %v4281
    %v4396 = vpack.c.b16 %v4288, %v4282
    %v4397 = vpack.c.b16 %v4289, %v4283
    %v4398 = vpack.c.b16 %v4296, %v4290
    %v4399 = vpack.c.b16 %v4297, %v4291
    %v4400 = vpack.c.b16 %v4298, %v4292
    %v4401 = vpack.c.b16 %v4299, %v4293
    %v4402 = vpack.c.b16 %v4300, %v4294
    %v4403 = vpack.c.b16 %v4301, %v4295
    %v4404 = vpack.c.b16 %v4308, %v4302
    %v4405 = vpack.c.b16 %v4309, %v4303
    %v4406 = vpack.c.b16 %v4310, %v4304
    %v4407 = vpack.c.b16 %v4311, %v4305
    %v4408 = vpack.c.b16 %v4312, %v4306
    %v4409 = vpack.c.b16 %v4313, %v4307
    %4506 = vmatprep.subr.bf16.mxu0 %v4315
    %4507 = vmatpush1.bf16.msra.mxu0 %v4314
    %4508 = vmatprep.subr.bf16.mxu0 %v4321
    %4509 = vmatpush1.bf16.msra.mxu0 %v4320
    %4510 = vmatprep.subr.bf16.mxu0 %v4327
    %4511 = vmatpush1.bf16.msra.mxu0 %v4326
    %4512 = vmatprep.subr.bf16.mxu0 %v4333
    %4513 = vmatpush1.bf16.msra.mxu0 %v4332
    %4514 = vmatprep.subr.bf16.mxu0 %v4339
    %4515 = vmatpush1.bf16.msra.mxu0 %v4338
    %4516 = vmatprep.subr.bf16.mxu0 %v4345
    %4517 = vmatpush1.bf16.msra.mxu0 %v4344
    %4518 = vmatprep.subr.bf16.mxu0 %v4351
    %4519 = vmatpush1.bf16.msra.mxu0 %v4350
    %4520 = vmatprep.subr.bf16.mxu0 %v4357
    %4521 = vmatpush1.bf16.msra.mxu0 %v4356
    %4522 = vmatprep.subr.bf16.mxu0 %v4363
    %4523 = vmatpush1.bf16.msra.mxu0 %v4362
    %4524 = vmatprep.subr.bf16.mxu0 %v4369
    %4525 = vmatpush1.bf16.msra.mxu0 %v4368
    %4526 = vmatprep.subr.bf16.mxu0 %v4375
    %4527 = vmatpush1.bf16.msra.mxu0 %v4374
    %4528 = vmatprep.subr.bf16.mxu0 %v4381
    %4529 = vmatpush1.bf16.msra.mxu0 %v4380
    %4530 = vmatprep.subr.bf16.mxu0 %v4387
    %4531 = vmatpush1.bf16.msra.mxu0 %v4386
    %4532 = vmatprep.subr.bf16.mxu0 %v4393
    %4533 = vmatpush1.bf16.msra.mxu0 %v4392
    %4534 = vmatprep.subr.bf16.mxu0 %v4399
    %4535 = vmatpush1.bf16.msra.mxu0 %v4398
    %4536 = vmatprep.subr.bf16.mxu0 %v4405
    %4537 = vmatpush1.bf16.msra.mxu0 %v4404
    %4538 = vmatprep.mubr.bf16.mxu0 %v3897
    %4539 = vmatmul.mubr.bf16.gmra.mrb[0].mxu0 %v3896
    %v4540 = vpop.f32.mrb[0].mxu0
    %v4541 = vadd.f32 %v3999, %v4540
    %v4542 = vpop.f32.mrb[0].mxu0
    %v4543 = vadd.f32 %v4003, %v4542
    %v4544 = vpop.f32.mrb[0].mxu0
    %v4545 = vadd.f32 %v3999, %v4544
    %v4546 = vpop.f32.mrb[0].mxu0
    %v4547 = vadd.f32 %v4003, %v4546
    %4548 = vdwg.mxu0
    %4549 = vmatprep.subr.bf16.mxu0 %v4317
    %4550 = vmatpush1.bf16.msra.mxu0 %v4316
    %4551 = vmatprep.subr.bf16.mxu0 %v4323
    %4552 = vmatpush1.bf16.msra.mxu0 %v4322
    %4553 = vmatprep.subr.bf16.mxu0 %v4329
    %4554 = vmatpush1.bf16.msra.mxu0 %v4328
    %4555 = vmatprep.subr.bf16.mxu0 %v4335
    %4556 = vmatpush1.bf16.msra.mxu0 %v4334
    %4557 = vmatprep.subr.bf16.mxu0 %v4341
    %4558 = vmatpush1.bf16.msra.mxu0 %v4340
    %4559 = vmatprep.subr.bf16.mxu0 %v4347
    %4560 = vmatpush1.bf16.msra.mxu0 %v4346
    %4561 = vmatprep.subr.bf16.mxu0 %v4353
    %4562 = vmatpush1.bf16.msra.mxu0 %v4352
    %4563 = vmatprep.subr.bf16.mxu0 %v4359
    %4564 = vmatpush1.bf16.msra.mxu0 %v4358
    %4565 = vmatprep.subr.bf16.mxu0 %v4365
    %4566 = vmatpush1.bf16.msra.mxu0 %v4364
    %4567 = vmatprep.subr.bf16.mxu0 %v4371
    %4568 = vmatpush1.bf16.msra.mxu0 %v4370
    %4569 = vmatprep.subr.bf16.mxu0 %v4377
    %4570 = vmatpush1.bf16.msra.mxu0 %v4376
    %4571 = vmatprep.subr.bf16.mxu0 %v4383
    %4572 = vmatpush1.bf16.msra.mxu0 %v4382
    %4573 = vmatprep.subr.bf16.mxu0 %v4389
    %4574 = vmatpush1.bf16.msra.mxu0 %v4388
    %4575 = vmatprep.subr.bf16.mxu0 %v4395
    %4576 = vmatpush1.bf16.msra.mxu0 %v4394
    %4577 = vmatprep.subr.bf16.mxu0 %v4401
    %4578 = vmatpush1.bf16.msra.mxu0 %v4400
    %4579 = vmatprep.subr.bf16.mxu0 %v4407
    %4580 = vmatpush1.bf16.msra.mxu0 %v4406
    %4581 = vmatprep.mubr.bf16.mxu0 %v3897
    %4582 = vmatmul.mubr.bf16.gmra.mrb[0].mxu0 %v3896
    %v4583 = vpop.f32.mrb[0].mxu0
    %v4584 = vadd.f32 %v4007, %v4583
    %v4585 = vpop.f32.mrb[0].mxu0
    %v4586 = vadd.f32 %v4011, %v4585
    %v4587 = vpop.f32.mrb[0].mxu0
    %v4588 = vadd.f32 %v4007, %v4587
    %v4589 = vpop.f32.mrb[0].mxu0
    %v4590 = vadd.f32 %v4011, %v4589
    %4591 = vdwg.mxu0
    %4592 = vmatprep.subr.bf16.mxu0 %v4319
    %4593 = vmatpush1.bf16.msra.mxu0 %v4318
    %4594 = vmatprep.subr.bf16.mxu0 %v4325
    %4595 = vmatpush1.bf16.msra.mxu0 %v4324
    %4596 = vmatprep.subr.bf16.mxu0 %v4331
    %4597 = vmatpush1.bf16.msra.mxu0 %v4330
    %4598 = vmatprep.subr.bf16.mxu0 %v4337
    %4599 = vmatpush1.bf16.msra.mxu0 %v4336
    %4600 = vmatprep.subr.bf16.mxu0 %v4343
    %4601 = vmatpush1.bf16.msra.mxu0 %v4342
    %4602 = vmatprep.subr.bf16.mxu0 %v4349
    %4603 = vmatpush1.bf16.msra.mxu0 %v4348
    %4604 = vmatprep.subr.bf16.mxu0 %v4355
    %4605 = vmatpush1.bf16.msra.mxu0 %v4354
    %4606 = vmatprep.subr.bf16.mxu0 %v4361
    %4607 = vmatpush1.bf16.msra.mxu0 %v4360
    %4608 = vmatprep.subr.bf16.mxu0 %v4367
    %4609 = vmatpush1.bf16.msra.mxu0 %v4366
    %4610 = vmatprep.subr.bf16.mxu0 %v4373
    %4611 = vmatpush1.bf16.msra.mxu0 %v4372
    %4612 = vmatprep.subr.bf16.mxu0 %v4379
    %4613 = vmatpush1.bf16.msra.mxu0 %v4378
    %4614 = vmatprep.subr.bf16.mxu0 %v4385
    %4615 = vmatpush1.bf16.msra.mxu0 %v4384
    %4616 = vmatprep.subr.bf16.mxu0 %v4391
    %4617 = vmatpush1.bf16.msra.mxu0 %v4390
    %4618 = vmatprep.subr.bf16.mxu0 %v4397
    %4619 = vmatpush1.bf16.msra.mxu0 %v4396
    %4620 = vmatprep.subr.bf16.mxu0 %v4403
    %4621 = vmatpush1.bf16.msra.mxu0 %v4402
    %4622 = vmatprep.subr.bf16.mxu0 %v4409
    %4623 = vmatpush1.bf16.msra.mxu0 %v4408
    %4624 = vmatprep.mubr.bf16.mxu0 %v3897
    %4625 = vmatmul.mubr.bf16.gmra.mrb[0].mxu0 %v3896
    %v4626 = vpop.f32.mrb[0].mxu0
    %v4627 = vadd.f32 %v4015, %v4626
    %v4628 = vpop.f32.mrb[0].mxu0
    %v4629 = vadd.f32 %v4019, %v4628
    %v4630 = vpop.f32.mrb[0].mxu0
    %v4631 = vadd.f32 %v4015, %v4630
    %v4632 = vpop.f32.mrb[0].mxu0
    %v4633 = vadd.f32 %v4019, %v4632
    %4634 = vdwg.mxu0
    %v4635 = vmax.f32 %v4541, 0.0
    %v4636 = vmax.f32 %v4543, 0.0
    %v4637 = vmax.f32 %v4584, 0.0
    %v4638 = vmax.f32 %v4586, 0.0
    %v4639 = vmax.f32 %v4627, 0.0
    %v4640 = vmax.f32 %v4629, 0.0
    %v4641 = vmax.f32 %v4545, 0.0
    %v4642 = vmax.f32 %v4547, 0.0
    %v4643 = vmax.f32 %v4588, 0.0
    %v4644 = vmax.f32 %v4590, 0.0
    %v4645 = vmax.f32 %v4631, 0.0
    %v4646 = vmax.f32 %v4633, 0.0
    %v4647 = vpack.c.bf16 %v4641, %v4635
    %v4648 = vpack.c.bf16 %v4642, %v4636
    %v4649 = vpack.c.bf16 %v4643, %v4637
    %v4650 = vpack.c.bf16 %v4644, %v4638
    %v4651 = vpack.c.bf16 %v4645, %v4639
    %v4652 = vpack.c.bf16 %v4646, %v4640
    %v4653 = vld [vmem:[#allocation20] sm:$0xff]
    %v4654 = vld [vmem:[#allocation20 + $0x8] sm:$0xff]
    %v4655 = vld [vmem:[#allocation20 + $0x10] sm:$0xff]
    %v4656 = vld [vmem:[#allocation20 + $0x18] sm:$0xff]
    %v4657 = vld [vmem:[#allocation20 + $0x20] sm:$0xff]
    %v4658 = vld [vmem:[#allocation20 + $0x28] sm:$0xff]
    %v4659 = vld [vmem:[#allocation20 + $0x30] sm:$0xff]
    %v4660 = vld [vmem:[#allocation20 + $0x38] sm:$0xff]
    %v4661 = vld [vmem:[#allocation20 + $0x40] sm:$0xff]
    %v4662 = vld [vmem:[#allocation20 + $0x48] sm:$0xff]
    %v4663 = vld [vmem:[#allocation20 + $0x50] sm:$0xff]
    %v4664 = vld [vmem:[#allocation20 + $0x58] sm:$0xff]
    %v4665 = vld [vmem:[#allocation20 + $0x60] sm:$0xff]
    %v4666 = vld [vmem:[#allocation20 + $0x68] sm:$0xff]
    %v4667 = vld [vmem:[#allocation20 + $0x70] sm:$0xff]
    %v4668 = vld [vmem:[#allocation20 + $0x78] sm:$0xff]
    %v4669 = vld [vmem:[#allocation20 + $0x80] sm:$0xff]
    %v4670 = vld [vmem:[#allocation20 + $0x88] sm:$0xff]
    %v4671 = vld [vmem:[#allocation20 + $0x90] sm:$0xff]
    %v4672 = vld [vmem:[#allocation20 + $0x98] sm:$0xff]
    %v4673 = vld [vmem:[#allocation20 + $0xa0] sm:$0xff]
    %v4674 = vld [vmem:[#allocation20 + $0xa8] sm:$0xff]
    %v4675 = vld [vmem:[#allocation20 + $0xb0] sm:$0xff]
    %v4676 = vld [vmem:[#allocation20 + $0xb8] sm:$0xff]
    %v4677 = vld [vmem:[#allocation20 + $0xc0] sm:$0xff]
    %v4678 = vld [vmem:[#allocation20 + $0xc8] sm:$0xff]
    %v4679 = vld [vmem:[#allocation20 + $0xd0] sm:$0xff]
    %v4680 = vld [vmem:[#allocation20 + $0xd8] sm:$0xff]
    %v4681 = vld [vmem:[#allocation20 + $0xe0] sm:$0xff]
    %v4682 = vld [vmem:[#allocation20 + $0xe8] sm:$0xff]
    %v4683 = vld [vmem:[#allocation20 + $0xf0] sm:$0xff]
    %v4684 = vld [vmem:[#allocation20 + $0xf8] sm:$0xff]
    %v4685 = vld [vmem:[#allocation20 + $0x100] sm:$0xff]
    %v4686 = vld [vmem:[#allocation20 + $0x108] sm:$0xff]
    %v4687 = vld [vmem:[#allocation20 + $0x110] sm:$0xff]
    %v4688 = vld [vmem:[#allocation20 + $0x118] sm:$0xff]
    %v4689 = vld [vmem:[#allocation20 + $0x120] sm:$0xff]
    %v4690 = vld [vmem:[#allocation20 + $0x128] sm:$0xff]
    %v4691 = vld [vmem:[#allocation20 + $0x130] sm:$0xff]
    %v4692 = vld [vmem:[#allocation20 + $0x138] sm:$0xff]
    %v4693 = vld [vmem:[#allocation20 + $0x140] sm:$0xff]
    %v4694 = vld [vmem:[#allocation20 + $0x148] sm:$0xff]
    %v4695 = vld [vmem:[#allocation20 + $0x150] sm:$0xff]
    %v4696 = vld [vmem:[#allocation20 + $0x158] sm:$0xff]
    %v4697 = vld [vmem:[#allocation20 + $0x160] sm:$0xff]
    %v4698 = vld [vmem:[#allocation20 + $0x168] sm:$0xff]
    %v4699 = vld [vmem:[#allocation20 + $0x170] sm:$0xff]
    %v4700 = vld [vmem:[#allocation20 + $0x178] sm:$0xff]
    %v4701 = vld [vmem:[#allocation20 + $0x180] sm:$0xff]
    %v4702 = vld [vmem:[#allocation20 + $0x188] sm:$0xff]
    %v4703 = vld [vmem:[#allocation20 + $0x190] sm:$0xff]
    %v4704 = vld [vmem:[#allocation20 + $0x198] sm:$0xff]
    %v4705 = vld [vmem:[#allocation20 + $0x1a0] sm:$0xff]
    %v4706 = vld [vmem:[#allocation20 + $0x1a8] sm:$0xff]
    %v4707 = vld [vmem:[#allocation20 + $0x1b0] sm:$0xff]
    %v4708 = vld [vmem:[#allocation20 + $0x1b8] sm:$0xff]
    %v4709 = vld [vmem:[#allocation20 + $0x1c0] sm:$0xff]
    %v4710 = vld [vmem:[#allocation20 + $0x1c8] sm:$0xff]
    %v4711 = vld [vmem:[#allocation20 + $0x1d0] sm:$0xff]
    %v4712 = vld [vmem:[#allocation20 + $0x1d8] sm:$0xff]
    %v4713 = vld [vmem:[#allocation20 + $0x1e0] sm:$0xff]
    %v4714 = vld [vmem:[#allocation20 + $0x1e8] sm:$0xff]
    %v4715 = vld [vmem:[#allocation20 + $0x1f0] sm:$0xff]
    %v4716 = vld [vmem:[#allocation20 + $0x1f8] sm:$0xff]
    %v4717 = vld [vmem:[#allocation20 + $0x200] sm:$0xff]
    %v4718 = vld [vmem:[#allocation20 + $0x208] sm:$0xff]
    %v4719 = vld [vmem:[#allocation20 + $0x210] sm:$0xff]
    %v4720 = vld [vmem:[#allocation20 + $0x218] sm:$0xff]
    %v4721 = vld [vmem:[#allocation20 + $0x220] sm:$0xff]
    %v4722 = vld [vmem:[#allocation20 + $0x228] sm:$0xff]
    %v4723 = vld [vmem:[#allocation20 + $0x230] sm:$0xff]
    %v4724 = vld [vmem:[#allocation20 + $0x238] sm:$0xff]
    %v4725 = vld [vmem:[#allocation20 + $0x240] sm:$0xff]
    %v4726 = vld [vmem:[#allocation20 + $0x248] sm:$0xff]
    %v4727 = vld [vmem:[#allocation20 + $0x250] sm:$0xff]
    %v4728 = vld [vmem:[#allocation20 + $0x258] sm:$0xff]
    %v4729 = vld [vmem:[#allocation20 + $0x260] sm:$0xff]
    %v4730 = vld [vmem:[#allocation20 + $0x268] sm:$0xff]
    %v4731 = vld [vmem:[#allocation20 + $0x270] sm:$0xff]
    %v4732 = vld [vmem:[#allocation20 + $0x278] sm:$0xff]
    %v4733 = vld [vmem:[#allocation20 + $0x280] sm:$0xff]
    %v4734 = vld [vmem:[#allocation20 + $0x288] sm:$0xff]
    %v4735 = vld [vmem:[#allocation20 + $0x290] sm:$0xff]
    %v4736 = vld [vmem:[#allocation20 + $0x298] sm:$0xff]
    %v4737 = vld [vmem:[#allocation20 + $0x2a0] sm:$0xff]
    %v4738 = vld [vmem:[#allocation20 + $0x2a8] sm:$0xff]
    %v4739 = vld [vmem:[#allocation20 + $0x2b0] sm:$0xff]
    %v4740 = vld [vmem:[#allocation20 + $0x2b8] sm:$0xff]
    %v4741 = vld [vmem:[#allocation20 + $0x2c0] sm:$0xff]
    %v4742 = vld [vmem:[#allocation20 + $0x2c8] sm:$0xff]
    %v4743 = vld [vmem:[#allocation20 + $0x2d0] sm:$0xff]
    %v4744 = vld [vmem:[#allocation20 + $0x2d8] sm:$0xff]
    %v4745 = vld [vmem:[#allocation20 + $0x2e0] sm:$0xff]
    %v4746 = vld [vmem:[#allocation20 + $0x2e8] sm:$0xff]
    %v4747 = vld [vmem:[#allocation20 + $0x2f0] sm:$0xff]
    %v4748 = vld [vmem:[#allocation20 + $0x2f8] sm:$0xff]
    %v4749 = vld [vmem:[#allocation20 + $0x300] sm:$0xff]
    %v4750 = vld [vmem:[#allocation20 + $0x308] sm:$0xff]
    %v4751 = vld [vmem:[#allocation20 + $0x310] sm:$0xff]
    %v4752 = vld [vmem:[#allocation20 + $0x318] sm:$0xff]
    %v4753 = vld [vmem:[#allocation20 + $0x320] sm:$0xff]
    %v4754 = vld [vmem:[#allocation20 + $0x328] sm:$0xff]
    %v4755 = vld [vmem:[#allocation20 + $0x330] sm:$0xff]
    %v4756 = vld [vmem:[#allocation20 + $0x338] sm:$0xff]
    %v4757 = vld [vmem:[#allocation20 + $0x340] sm:$0xff]
    %v4758 = vld [vmem:[#allocation20 + $0x348] sm:$0xff]
    %v4759 = vld [vmem:[#allocation20 + $0x350] sm:$0xff]
    %v4760 = vld [vmem:[#allocation20 + $0x358] sm:$0xff]
    %v4761 = vld [vmem:[#allocation20 + $0x360] sm:$0xff]
    %v4762 = vld [vmem:[#allocation20 + $0x368] sm:$0xff]
    %v4763 = vld [vmem:[#allocation20 + $0x370] sm:$0xff]
    %v4764 = vld [vmem:[#allocation20 + $0x378] sm:$0xff]
    %v4765 = vld [vmem:[#allocation20 + $0x380] sm:$0xff]
    %v4766 = vld [vmem:[#allocation20 + $0x388] sm:$0xff]
    %v4767 = vld [vmem:[#allocation20 + $0x390] sm:$0xff]
    %v4768 = vld [vmem:[#allocation20 + $0x398] sm:$0xff]
    %v4769 = vld [vmem:[#allocation20 + $0x3a0] sm:$0xff]
    %v4770 = vld [vmem:[#allocation20 + $0x3a8] sm:$0xff]
    %v4771 = vld [vmem:[#allocation20 + $0x3b0] sm:$0xff]
    %v4772 = vld [vmem:[#allocation20 + $0x3b8] sm:$0xff]
    %v4773 = vld [vmem:[#allocation20 + $0x3c0] sm:$0xff]
    %v4774 = vld [vmem:[#allocation20 + $0x3c8] sm:$0xff]
    %v4775 = vld [vmem:[#allocation20 + $0x3d0] sm:$0xff]
    %v4776 = vld [vmem:[#allocation20 + $0x3d8] sm:$0xff]
    %v4777 = vld [vmem:[#allocation20 + $0x3e0] sm:$0xff]
    %v4778 = vld [vmem:[#allocation20 + $0x3e8] sm:$0xff]
    %v4779 = vld [vmem:[#allocation20 + $0x3f0] sm:$0xff]
    %v4780 = vld [vmem:[#allocation20 + $0x3f8] sm:$0xff]
    %v4781 = vld [vmem:[#allocation20 + $0x400] sm:$0xff]
    %v4782 = vld [vmem:[#allocation20 + $0x408] sm:$0xff]
    %v4783 = vld [vmem:[#allocation20 + $0x410] sm:$0xff]
    %v4784 = vld [vmem:[#allocation20 + $0x418] sm:$0xff]
    %v4785 = vld [vmem:[#allocation20 + $0x420] sm:$0xff]
    %v4786 = vld [vmem:[#allocation20 + $0x428] sm:$0xff]
    %v4787 = vld [vmem:[#allocation20 + $0x430] sm:$0xff]
    %v4788 = vld [vmem:[#allocation20 + $0x438] sm:$0xff]
    %v4789 = vld [vmem:[#allocation20 + $0x440] sm:$0xff]
    %v4790 = vld [vmem:[#allocation20 + $0x448] sm:$0xff]
    %v4791 = vld [vmem:[#allocation20 + $0x450] sm:$0xff]
    %v4792 = vld [vmem:[#allocation20 + $0x458] sm:$0xff]
    %v4793 = vld [vmem:[#allocation20 + $0x460] sm:$0xff]
    %v4794 = vld [vmem:[#allocation20 + $0x468] sm:$0xff]
    %v4795 = vld [vmem:[#allocation20 + $0x470] sm:$0xff]
    %v4796 = vld [vmem:[#allocation20 + $0x478] sm:$0xff]
    %v4797 = vld [vmem:[#allocation20 + $0x480] sm:$0xff]
    %v4798 = vld [vmem:[#allocation20 + $0x488] sm:$0xff]
    %v4799 = vld [vmem:[#allocation20 + $0x490] sm:$0xff]
    %v4800 = vld [vmem:[#allocation20 + $0x498] sm:$0xff]
    %v4801 = vld [vmem:[#allocation20 + $0x4a0] sm:$0xff]
    %v4802 = vld [vmem:[#allocation20 + $0x4a8] sm:$0xff]
    %v4803 = vld [vmem:[#allocation20 + $0x4b0] sm:$0xff]
    %v4804 = vld [vmem:[#allocation20 + $0x4b8] sm:$0xff]
    %v4805 = vld [vmem:[#allocation20 + $0x4c0] sm:$0xff]
    %v4806 = vld [vmem:[#allocation20 + $0x4c8] sm:$0xff]
    %v4807 = vld [vmem:[#allocation20 + $0x4d0] sm:$0xff]
    %v4808 = vld [vmem:[#allocation20 + $0x4d8] sm:$0xff]
    %v4809 = vld [vmem:[#allocation20 + $0x4e0] sm:$0xff]
    %v4810 = vld [vmem:[#allocation20 + $0x4e8] sm:$0xff]
    %v4811 = vld [vmem:[#allocation20 + $0x4f0] sm:$0xff]
    %v4812 = vld [vmem:[#allocation20 + $0x4f8] sm:$0xff]
    %v4813 = vld [vmem:[#allocation20 + $0x500] sm:$0xff]
    %v4814 = vld [vmem:[#allocation20 + $0x508] sm:$0xff]
    %v4815 = vld [vmem:[#allocation20 + $0x510] sm:$0xff]
    %v4816 = vld [vmem:[#allocation20 + $0x518] sm:$0xff]
    %v4817 = vld [vmem:[#allocation20 + $0x520] sm:$0xff]
    %v4818 = vld [vmem:[#allocation20 + $0x528] sm:$0xff]
    %v4819 = vld [vmem:[#allocation20 + $0x530] sm:$0xff]
    %v4820 = vld [vmem:[#allocation20 + $0x538] sm:$0xff]
    %v4821 = vld [vmem:[#allocation20 + $0x540] sm:$0xff]
    %v4822 = vld [vmem:[#allocation20 + $0x548] sm:$0xff]
    %v4823 = vld [vmem:[#allocation20 + $0x550] sm:$0xff]
    %v4824 = vld [vmem:[#allocation20 + $0x558] sm:$0xff]
    %v4825 = vld [vmem:[#allocation20 + $0x560] sm:$0xff]
    %v4826 = vld [vmem:[#allocation20 + $0x568] sm:$0xff]
    %v4827 = vld [vmem:[#allocation20 + $0x570] sm:$0xff]
    %v4828 = vld [vmem:[#allocation20 + $0x578] sm:$0xff]
    %v4829 = vld [vmem:[#allocation20 + $0x580] sm:$0xff]
    %v4830 = vld [vmem:[#allocation20 + $0x588] sm:$0xff]
    %v4831 = vld [vmem:[#allocation20 + $0x590] sm:$0xff]
    %v4832 = vld [vmem:[#allocation20 + $0x598] sm:$0xff]
    %v4833 = vld [vmem:[#allocation20 + $0x5a0] sm:$0xff]
    %v4834 = vld [vmem:[#allocation20 + $0x5a8] sm:$0xff]
    %v4835 = vld [vmem:[#allocation20 + $0x5b0] sm:$0xff]
    %v4836 = vld [vmem:[#allocation20 + $0x5b8] sm:$0xff]
    %v4837 = vld [vmem:[#allocation20 + $0x5c0] sm:$0xff]
    %v4838 = vld [vmem:[#allocation20 + $0x5c8] sm:$0xff]
    %v4839 = vld [vmem:[#allocation20 + $0x5d0] sm:$0xff]
    %v4840 = vld [vmem:[#allocation20 + $0x5d8] sm:$0xff]
    %v4841 = vld [vmem:[#allocation20 + $0x5e0] sm:$0xff]
    %v4842 = vld [vmem:[#allocation20 + $0x5e8] sm:$0xff]
    %v4843 = vld [vmem:[#allocation20 + $0x5f0] sm:$0xff]
    %v4844 = vld [vmem:[#allocation20 + $0x5f8] sm:$0xff]
    %v4845 = vld [vmem:[#allocation20 + $0x600] sm:$0xff]
    %v4846 = vld [vmem:[#allocation20 + $0x608] sm:$0xff]
    %v4847 = vld [vmem:[#allocation20 + $0x610] sm:$0xff]
    %v4848 = vld [vmem:[#allocation20 + $0x618] sm:$0xff]
    %v4849 = vld [vmem:[#allocation20 + $0x620] sm:$0xff]
    %v4850 = vld [vmem:[#allocation20 + $0x628] sm:$0xff]
    %v4851 = vld [vmem:[#allocation20 + $0x630] sm:$0xff]
    %v4852 = vld [vmem:[#allocation20 + $0x638] sm:$0xff]
    %v4853 = vld [vmem:[#allocation20 + $0x640] sm:$0xff]
    %v4854 = vld [vmem:[#allocation20 + $0x648] sm:$0xff]
    %v4855 = vld [vmem:[#allocation20 + $0x650] sm:$0xff]
    %v4856 = vld [vmem:[#allocation20 + $0x658] sm:$0xff]
    %v4857 = vld [vmem:[#allocation20 + $0x660] sm:$0xff]
    %v4858 = vld [vmem:[#allocation20 + $0x668] sm:$0xff]
    %v4859 = vld [vmem:[#allocation20 + $0x670] sm:$0xff]
    %v4860 = vld [vmem:[#allocation20 + $0x678] sm:$0xff]
    %v4861 = vld [vmem:[#allocation20 + $0x680] sm:$0xff]
    %v4862 = vld [vmem:[#allocation20 + $0x688] sm:$0xff]
    %v4863 = vld [vmem:[#allocation20 + $0x690] sm:$0xff]
    %v4864 = vld [vmem:[#allocation20 + $0x698] sm:$0xff]
    %v4865 = vld [vmem:[#allocation20 + $0x6a0] sm:$0xff]
    %v4866 = vld [vmem:[#allocation20 + $0x6a8] sm:$0xff]
    %v4867 = vld [vmem:[#allocation20 + $0x6b0] sm:$0xff]
    %v4868 = vld [vmem:[#allocation20 + $0x6b8] sm:$0xff]
    %v4869 = vld [vmem:[#allocation20 + $0x6c0] sm:$0xff]
    %v4870 = vld [vmem:[#allocation20 + $0x6c8] sm:$0xff]
    %v4871 = vld [vmem:[#allocation20 + $0x6d0] sm:$0xff]
    %v4872 = vld [vmem:[#allocation20 + $0x6d8] sm:$0xff]
    %v4873 = vld [vmem:[#allocation20 + $0x6e0] sm:$0xff]
    %v4874 = vld [vmem:[#allocation20 + $0x6e8] sm:$0xff]
    %v4875 = vld [vmem:[#allocation20 + $0x6f0] sm:$0xff]
    %v4876 = vld [vmem:[#allocation20 + $0x6f8] sm:$0xff]
    %v4877 = vld [vmem:[#allocation20 + $0x700] sm:$0xff]
    %v4878 = vld [vmem:[#allocation20 + $0x708] sm:$0xff]
    %v4879 = vld [vmem:[#allocation20 + $0x710] sm:$0xff]
    %v4880 = vld [vmem:[#allocation20 + $0x718] sm:$0xff]
    %v4881 = vld [vmem:[#allocation20 + $0x720] sm:$0xff]
    %v4882 = vld [vmem:[#allocation20 + $0x728] sm:$0xff]
    %v4883 = vld [vmem:[#allocation20 + $0x730] sm:$0xff]
    %v4884 = vld [vmem:[#allocation20 + $0x738] sm:$0xff]
    %v4885 = vld [vmem:[#allocation20 + $0x740] sm:$0xff]
    %v4886 = vld [vmem:[#allocation20 + $0x748] sm:$0xff]
    %v4887 = vld [vmem:[#allocation20 + $0x750] sm:$0xff]
    %v4888 = vld [vmem:[#allocation20 + $0x758] sm:$0xff]
    %v4889 = vld [vmem:[#allocation20 + $0x760] sm:$0xff]
    %v4890 = vld [vmem:[#allocation20 + $0x768] sm:$0xff]
    %v4891 = vld [vmem:[#allocation20 + $0x770] sm:$0xff]
    %v4892 = vld [vmem:[#allocation20 + $0x778] sm:$0xff]
    %v4893 = vld [vmem:[#allocation20 + $0x780] sm:$0xff]
    %v4894 = vld [vmem:[#allocation20 + $0x788] sm:$0xff]
    %v4895 = vld [vmem:[#allocation20 + $0x790] sm:$0xff]
    %v4896 = vld [vmem:[#allocation20 + $0x798] sm:$0xff]
    %v4897 = vld [vmem:[#allocation20 + $0x7a0] sm:$0xff]
    %v4898 = vld [vmem:[#allocation20 + $0x7a8] sm:$0xff]
    %v4899 = vld [vmem:[#allocation20 + $0x7b0] sm:$0xff]
    %v4900 = vld [vmem:[#allocation20 + $0x7b8] sm:$0xff]
    %v4901 = vld [vmem:[#allocation20 + $0x7c0] sm:$0xff]
    %v4902 = vld [vmem:[#allocation20 + $0x7c8] sm:$0xff]
    %v4903 = vld [vmem:[#allocation20 + $0x7d0] sm:$0xff]
    %v4904 = vld [vmem:[#allocation20 + $0x7d8] sm:$0xff]
    %v4905 = vld [vmem:[#allocation20 + $0x7e0] sm:$0xff]
    %v4906 = vld [vmem:[#allocation20 + $0x7e8] sm:$0xff]
    %v4907 = vld [vmem:[#allocation20 + $0x7f0] sm:$0xff]
    %v4908 = vld [vmem:[#allocation20 + $0x7f8] sm:$0xff]
    %v4909 = vld [vmem:[#allocation20 + $0x800] sm:$0xff]
    %v4910 = vld [vmem:[#allocation20 + $0x808] sm:$0xff]
    %v4911 = vld [vmem:[#allocation20 + $0x810] sm:$0xff]
    %v4912 = vld [vmem:[#allocation20 + $0x818] sm:$0xff]
    %v4913 = vld [vmem:[#allocation20 + $0x820] sm:$0xff]
    %v4914 = vld [vmem:[#allocation20 + $0x828] sm:$0xff]
    %v4915 = vld [vmem:[#allocation20 + $0x830] sm:$0xff]
    %v4916 = vld [vmem:[#allocation20 + $0x838] sm:$0xff]
    %v4917 = vld [vmem:[#allocation20 + $0x840] sm:$0xff]
    %v4918 = vld [vmem:[#allocation20 + $0x848] sm:$0xff]
    %v4919 = vld [vmem:[#allocation20 + $0x850] sm:$0xff]
    %v4920 = vld [vmem:[#allocation20 + $0x858] sm:$0xff]
    %v4921 = vld [vmem:[#allocation20 + $0x860] sm:$0xff]
    %v4922 = vld [vmem:[#allocation20 + $0x868] sm:$0xff]
    %v4923 = vld [vmem:[#allocation20 + $0x870] sm:$0xff]
    %v4924 = vld [vmem:[#allocation20 + $0x878] sm:$0xff]
    %v4925 = vld [vmem:[#allocation20 + $0x880] sm:$0xff]
    %v4926 = vld [vmem:[#allocation20 + $0x888] sm:$0xff]
    %v4927 = vld [vmem:[#allocation20 + $0x890] sm:$0xff]
    %v4928 = vld [vmem:[#allocation20 + $0x898] sm:$0xff]
    %v4929 = vld [vmem:[#allocation20 + $0x8a0] sm:$0xff]
    %v4930 = vld [vmem:[#allocation20 + $0x8a8] sm:$0xff]
    %v4931 = vld [vmem:[#allocation20 + $0x8b0] sm:$0xff]
    %v4932 = vld [vmem:[#allocation20 + $0x8b8] sm:$0xff]
    %v4933 = vld [vmem:[#allocation20 + $0x8c0] sm:$0xff]
    %v4934 = vld [vmem:[#allocation20 + $0x8c8] sm:$0xff]
    %v4935 = vld [vmem:[#allocation20 + $0x8d0] sm:$0xff]
    %v4936 = vld [vmem:[#allocation20 + $0x8d8] sm:$0xff]
    %v4937 = vld [vmem:[#allocation20 + $0x8e0] sm:$0xff]
    %v4938 = vld [vmem:[#allocation20 + $0x8e8] sm:$0xff]
    %v4939 = vld [vmem:[#allocation20 + $0x8f0] sm:$0xff]
    %v4940 = vld [vmem:[#allocation20 + $0x8f8] sm:$0xff]
    %v4941 = vld [vmem:[#allocation21] sm:$0x3f]
    %v4943 = vlaneseq
    %v4944 = vshrl.u32 %v4943, 7
    %v4945 = vsub.s32 0, %v4944
    %v4946 = vrot.slane %v4941, %v4945
    %v4947 = vlaneseq
    %v4948 = vshrl.u32 %v4947, 7
    %v4949 = vsub.s32 1, %v4948
    %v4950 = vrot.slane %v4941, %v4949
    %v4951 = vlaneseq
    %v4952 = vshrl.u32 %v4951, 7
    %v4953 = vsub.s32 2, %v4952
    %v4954 = vrot.slane %v4941, %v4953
    %v4955 = vlaneseq
    %v4956 = vshrl.u32 %v4955, 7
    %v4957 = vsub.s32 3, %v4956
    %v4958 = vrot.slane %v4941, %v4957
    %v4959 = vlaneseq
    %v4960 = vshrl.u32 %v4959, 7
    %v4961 = vsub.s32 4, %v4960
    %v4962 = vrot.slane %v4941, %v4961
    %v4963 = vlaneseq
    %v4964 = vshrl.u32 %v4963, 7
    %v4965 = vsub.s32 5, %v4964
    %v4966 = vrot.slane %v4941, %v4965
    %v5261 = vunpack.c.l.b16 %v4653
    %v5262 = vunpack.c.h.b16 %v4653
    %v5263 = vunpack.c.l.b16 %v4654
    %v5264 = vunpack.c.h.b16 %v4654
    %v5265 = vunpack.c.l.b16 %v4655
    %v5266 = vunpack.c.h.b16 %v4655
    %v5267 = vunpack.c.l.b16 %v4656
    %v5268 = vunpack.c.h.b16 %v4656
    %v5269 = vunpack.c.l.b16 %v4657
    %v5270 = vunpack.c.h.b16 %v4657
    %v5271 = vunpack.c.l.b16 %v4658
    %v5272 = vunpack.c.h.b16 %v4658
    %v5273 = vunpack.c.l.b16 %v4659
    %v5274 = vunpack.c.h.b16 %v4659
    %v5275 = vunpack.c.l.b16 %v4660
    %v5276 = vunpack.c.h.b16 %v4660
    %v5277 = vunpack.c.l.b16 %v4661
    %v5278 = vunpack.c.h.b16 %v4661
    %v5279 = vunpack.c.l.b16 %v4662
    %v5280 = vunpack.c.h.b16 %v4662
    %v5281 = vunpack.c.l.b16 %v4663
    %v5282 = vunpack.c.h.b16 %v4663
    %v5283 = vunpack.c.l.b16 %v4664
    %v5284 = vunpack.c.h.b16 %v4664
    %v5285 = vunpack.c.l.b16 %v4665
    %v5286 = vunpack.c.h.b16 %v4665
    %v5287 = vunpack.c.l.b16 %v4666
    %v5288 = vunpack.c.h.b16 %v4666
    %v5289 = vunpack.c.l.b16 %v4667
    %v5290 = vunpack.c.h.b16 %v4667
    %v5291 = vunpack.c.l.b16 %v4668
    %v5292 = vunpack.c.h.b16 %v4668
    %v5293 = vunpack.c.l.b16 %v4669
    %v5294 = vunpack.c.h.b16 %v4669
    %v5295 = vunpack.c.l.b16 %v4670
    %v5296 = vunpack.c.h.b16 %v4670
    %v5297 = vunpack.c.l.b16 %v4671
    %v5298 = vunpack.c.h.b16 %v4671
    %v5299 = vunpack.c.l.b16 %v4672
    %v5300 = vunpack.c.h.b16 %v4672
    %v5301 = vunpack.c.l.b16 %v4673
    %v5302 = vunpack.c.h.b16 %v4673
    %v5303 = vunpack.c.l.b16 %v4674
    %v5304 = vunpack.c.h.b16 %v4674
    %v5305 = vunpack.c.l.b16 %v4675
    %v5306 = vunpack.c.h.b16 %v4675
    %v5307 = vunpack.c.l.b16 %v4676
    %v5308 = vunpack.c.h.b16 %v4676
    %v5309 = vunpack.c.l.b16 %v4677
    %v5310 = vunpack.c.h.b16 %v4677
    %v5311 = vunpack.c.l.b16 %v4678
    %v5312 = vunpack.c.h.b16 %v4678
    %v5313 = vunpack.c.l.b16 %v4679
    %v5314 = vunpack.c.h.b16 %v4679
    %v5315 = vunpack.c.l.b16 %v4680
    %v5316 = vunpack.c.h.b16 %v4680
    %v5317 = vunpack.c.l.b16 %v4681
    %v5318 = vunpack.c.h.b16 %v4681
    %v5319 = vunpack.c.l.b16 %v4682
    %v5320 = vunpack.c.h.b16 %v4682
    %v5321 = vunpack.c.l.b16 %v4683
    %v5322 = vunpack.c.h.b16 %v4683
    %v5323 = vunpack.c.l.b16 %v4684
    %v5324 = vunpack.c.h.b16 %v4684
    %v5325 = vunpack.c.l.b16 %v4685
    %v5326 = vunpack.c.h.b16 %v4685
    %v5327 = vunpack.c.l.b16 %v4686
    %v5328 = vunpack.c.h.b16 %v4686
    %v5329 = vunpack.c.l.b16 %v4687
    %v5330 = vunpack.c.h.b16 %v4687
    %v5331 = vunpack.c.l.b16 %v4688
    %v5332 = vunpack.c.h.b16 %v4688
    %v5333 = vunpack.c.l.b16 %v4689
    %v5334 = vunpack.c.h.b16 %v4689
    %v5335 = vunpack.c.l.b16 %v4690
    %v5336 = vunpack.c.h.b16 %v4690
    %v5337 = vunpack.c.l.b16 %v4691
    %v5338 = vunpack.c.h.b16 %v4691
    %v5339 = vunpack.c.l.b16 %v4692
    %v5340 = vunpack.c.h.b16 %v4692
    %v5341 = vunpack.c.l.b16 %v4693
    %v5342 = vunpack.c.h.b16 %v4693
    %v5343 = vunpack.c.l.b16 %v4694
    %v5344 = vunpack.c.h.b16 %v4694
    %v5345 = vunpack.c.l.b16 %v4695
    %v5346 = vunpack.c.h.b16 %v4695
    %v5347 = vunpack.c.l.b16 %v4696
    %v5348 = vunpack.c.h.b16 %v4696
    %v5349 = vunpack.c.l.b16 %v4697
    %v5350 = vunpack.c.h.b16 %v4697
    %v5351 = vunpack.c.l.b16 %v4698
    %v5352 = vunpack.c.h.b16 %v4698
    %v5353 = vunpack.c.l.b16 %v4699
    %v5354 = vunpack.c.h.b16 %v4699
    %v5355 = vunpack.c.l.b16 %v4700
    %v5356 = vunpack.c.h.b16 %v4700
    %v5357 = vunpack.c.l.b16 %v4701
    %v5358 = vunpack.c.h.b16 %v4701
    %v5359 = vunpack.c.l.b16 %v4702
    %v5360 = vunpack.c.h.b16 %v4702
    %v5361 = vunpack.c.l.b16 %v4703
    %v5362 = vunpack.c.h.b16 %v4703
    %v5363 = vunpack.c.l.b16 %v4704
    %v5364 = vunpack.c.h.b16 %v4704
    %v5365 = vunpack.c.l.b16 %v4705
    %v5366 = vunpack.c.h.b16 %v4705
    %v5367 = vunpack.c.l.b16 %v4706
    %v5368 = vunpack.c.h.b16 %v4706
    %v5369 = vunpack.c.l.b16 %v4707
    %v5370 = vunpack.c.h.b16 %v4707
    %v5371 = vunpack.c.l.b16 %v4708
    %v5372 = vunpack.c.h.b16 %v4708
    %v5373 = vunpack.c.l.b16 %v4709
    %v5374 = vunpack.c.h.b16 %v4709
    %v5375 = vunpack.c.l.b16 %v4710
    %v5376 = vunpack.c.h.b16 %v4710
    %v5377 = vunpack.c.l.b16 %v4711
    %v5378 = vunpack.c.h.b16 %v4711
    %v5379 = vunpack.c.l.b16 %v4712
    %v5380 = vunpack.c.h.b16 %v4712
    %v5381 = vunpack.c.l.b16 %v4713
    %v5382 = vunpack.c.h.b16 %v4713
    %v5383 = vunpack.c.l.b16 %v4714
    %v5384 = vunpack.c.h.b16 %v4714
    %v5385 = vunpack.c.l.b16 %v4715
    %v5386 = vunpack.c.h.b16 %v4715
    %v5387 = vunpack.c.l.b16 %v4716
    %v5388 = vunpack.c.h.b16 %v4716
    %v5389 = vunpack.c.l.b16 %v4717
    %v5390 = vunpack.c.h.b16 %v4717
    %v5391 = vunpack.c.l.b16 %v4718
    %v5392 = vunpack.c.h.b16 %v4718
    %v5393 = vunpack.c.l.b16 %v4719
    %v5394 = vunpack.c.h.b16 %v4719
    %v5395 = vunpack.c.l.b16 %v4720
    %v5396 = vunpack.c.h.b16 %v4720
    %v5397 = vunpack.c.l.b16 %v4721
    %v5398 = vunpack.c.h.b16 %v4721
    %v5399 = vunpack.c.l.b16 %v4722
    %v5400 = vunpack.c.h.b16 %v4722
    %v5401 = vunpack.c.l.b16 %v4723
    %v5402 = vunpack.c.h.b16 %v4723
    %v5403 = vunpack.c.l.b16 %v4724
    %v5404 = vunpack.c.h.b16 %v4724
    %v5405 = vunpack.c.l.b16 %v4725
    %v5406 = vunpack.c.h.b16 %v4725
    %v5407 = vunpack.c.l.b16 %v4726
    %v5408 = vunpack.c.h.b16 %v4726
    %v5409 = vunpack.c.l.b16 %v4727
    %v5410 = vunpack.c.h.b16 %v4727
    %v5411 = vunpack.c.l.b16 %v4728
    %v5412 = vunpack.c.h.b16 %v4728
    %v5413 = vunpack.c.l.b16 %v4729
    %v5414 = vunpack.c.h.b16 %v4729
    %v5415 = vunpack.c.l.b16 %v4730
    %v5416 = vunpack.c.h.b16 %v4730
    %v5417 = vunpack.c.l.b16 %v4731
    %v5418 = vunpack.c.h.b16 %v4731
    %v5419 = vunpack.c.l.b16 %v4732
    %v5420 = vunpack.c.h.b16 %v4732
    %v5421 = vunpack.c.l.b16 %v4733
    %v5422 = vunpack.c.h.b16 %v4733
    %v5423 = vunpack.c.l.b16 %v4734
    %v5424 = vunpack.c.h.b16 %v4734
    %v5425 = vunpack.c.l.b16 %v4735
    %v5426 = vunpack.c.h.b16 %v4735
    %v5427 = vunpack.c.l.b16 %v4736
    %v5428 = vunpack.c.h.b16 %v4736
    %v5429 = vunpack.c.l.b16 %v4737
    %v5430 = vunpack.c.h.b16 %v4737
    %v5431 = vunpack.c.l.b16 %v4738
    %v5432 = vunpack.c.h.b16 %v4738
    %v5433 = vunpack.c.l.b16 %v4739
    %v5434 = vunpack.c.h.b16 %v4739
    %v5435 = vunpack.c.l.b16 %v4740
    %v5436 = vunpack.c.h.b16 %v4740
    %v5437 = vunpack.c.l.b16 %v4741
    %v5438 = vunpack.c.h.b16 %v4741
    %v5439 = vunpack.c.l.b16 %v4742
    %v5440 = vunpack.c.h.b16 %v4742
    %v5441 = vunpack.c.l.b16 %v4743
    %v5442 = vunpack.c.h.b16 %v4743
    %v5443 = vunpack.c.l.b16 %v4744
    %v5444 = vunpack.c.h.b16 %v4744
    %v5445 = vunpack.c.l.b16 %v4745
    %v5446 = vunpack.c.h.b16 %v4745
    %v5447 = vunpack.c.l.b16 %v4746
    %v5448 = vunpack.c.h.b16 %v4746
    %v5449 = vunpack.c.l.b16 %v4747
    %v5450 = vunpack.c.h.b16 %v4747
    %v5451 = vunpack.c.l.b16 %v4748
    %v5452 = vunpack.c.h.b16 %v4748
    %v5453 = vunpack.c.l.b16 %v4749
    %v5454 = vunpack.c.h.b16 %v4749
    %v5455 = vunpack.c.l.b16 %v4750
    %v5456 = vunpack.c.h.b16 %v4750
    %v5457 = vunpack.c.l.b16 %v4751
    %v5458 = vunpack.c.h.b16 %v4751
    %v5459 = vunpack.c.l.b16 %v4752
    %v5460 = vunpack.c.h.b16 %v4752
    %v5461 = vunpack.c.l.b16 %v4753
    %v5462 = vunpack.c.h.b16 %v4753
    %v5463 = vunpack.c.l.b16 %v4754
    %v5464 = vunpack.c.h.b16 %v4754
    %v5465 = vunpack.c.l.b16 %v4755
    %v5466 = vunpack.c.h.b16 %v4755
    %v5467 = vunpack.c.l.b16 %v4756
    %v5468 = vunpack.c.h.b16 %v4756
    %v5469 = vunpack.c.l.b16 %v4757
    %v5470 = vunpack.c.h.b16 %v4757
    %v5471 = vunpack.c.l.b16 %v4758
    %v5472 = vunpack.c.h.b16 %v4758
    %v5473 = vunpack.c.l.b16 %v4759
    %v5474 = vunpack.c.h.b16 %v4759
    %v5475 = vunpack.c.l.b16 %v4760
    %v5476 = vunpack.c.h.b16 %v4760
    %v5477 = vunpack.c.l.b16 %v4761
    %v5478 = vunpack.c.h.b16 %v4761
    %v5479 = vunpack.c.l.b16 %v4762
    %v5480 = vunpack.c.h.b16 %v4762
    %v5481 = vunpack.c.l.b16 %v4763
    %v5482 = vunpack.c.h.b16 %v4763
    %v5483 = vunpack.c.l.b16 %v4764
    %v5484 = vunpack.c.h.b16 %v4764
    %v5485 = vunpack.c.l.b16 %v4765
    %v5486 = vunpack.c.h.b16 %v4765
    %v5487 = vunpack.c.l.b16 %v4766
    %v5488 = vunpack.c.h.b16 %v4766
    %v5489 = vunpack.c.l.b16 %v4767
    %v5490 = vunpack.c.h.b16 %v4767
    %v5491 = vunpack.c.l.b16 %v4768
    %v5492 = vunpack.c.h.b16 %v4768
    %v5493 = vunpack.c.l.b16 %v4769
    %v5494 = vunpack.c.h.b16 %v4769
    %v5495 = vunpack.c.l.b16 %v4770
    %v5496 = vunpack.c.h.b16 %v4770
    %v5497 = vunpack.c.l.b16 %v4771
    %v5498 = vunpack.c.h.b16 %v4771
    %v5499 = vunpack.c.l.b16 %v4772
    %v5500 = vunpack.c.h.b16 %v4772
    %v5501 = vunpack.c.l.b16 %v4773
    %v5502 = vunpack.c.h.b16 %v4773
    %v5503 = vunpack.c.l.b16 %v4774
    %v5504 = vunpack.c.h.b16 %v4774
    %v5505 = vunpack.c.l.b16 %v4775
    %v5506 = vunpack.c.h.b16 %v4775
    %v5507 = vunpack.c.l.b16 %v4776
    %v5508 = vunpack.c.h.b16 %v4776
    %v5509 = vunpack.c.l.b16 %v4777
    %v5510 = vunpack.c.h.b16 %v4777
    %v5511 = vunpack.c.l.b16 %v4778
    %v5512 = vunpack.c.h.b16 %v4778
    %v5513 = vunpack.c.l.b16 %v4779
    %v5514 = vunpack.c.h.b16 %v4779
    %v5515 = vunpack.c.l.b16 %v4780
    %v5516 = vunpack.c.h.b16 %v4780
    %v5517 = vunpack.c.l.b16 %v4781
    %v5518 = vunpack.c.h.b16 %v4781
    %v5519 = vunpack.c.l.b16 %v4782
    %v5520 = vunpack.c.h.b16 %v4782
    %v5521 = vunpack.c.l.b16 %v4783
    %v5522 = vunpack.c.h.b16 %v4783
    %v5523 = vunpack.c.l.b16 %v4784
    %v5524 = vunpack.c.h.b16 %v4784
    %v5525 = vunpack.c.l.b16 %v4785
    %v5526 = vunpack.c.h.b16 %v4785
    %v5527 = vunpack.c.l.b16 %v4786
    %v5528 = vunpack.c.h.b16 %v4786
    %v5529 = vunpack.c.l.b16 %v4787
    %v5530 = vunpack.c.h.b16 %v4787
    %v5531 = vunpack.c.l.b16 %v4788
    %v5532 = vunpack.c.h.b16 %v4788
    %v5533 = vunpack.c.l.b16 %v4789
    %v5534 = vunpack.c.h.b16 %v4789
    %v5535 = vunpack.c.l.b16 %v4790
    %v5536 = vunpack.c.h.b16 %v4790
    %v5537 = vunpack.c.l.b16 %v4791
    %v5538 = vunpack.c.h.b16 %v4791
    %v5539 = vunpack.c.l.b16 %v4792
    %v5540 = vunpack.c.h.b16 %v4792
    %v5541 = vunpack.c.l.b16 %v4793
    %v5542 = vunpack.c.h.b16 %v4793
    %v5543 = vunpack.c.l.b16 %v4794
    %v5544 = vunpack.c.h.b16 %v4794
    %v5545 = vunpack.c.l.b16 %v4795
    %v5546 = vunpack.c.h.b16 %v4795
    %v5547 = vunpack.c.l.b16 %v4796
    %v5548 = vunpack.c.h.b16 %v4796
    %v5549 = vunpack.c.l.b16 %v4797
    %v5550 = vunpack.c.h.b16 %v4797
    %v5551 = vunpack.c.l.b16 %v4798
    %v5552 = vunpack.c.h.b16 %v4798
    %v5553 = vunpack.c.l.b16 %v4799
    %v5554 = vunpack.c.h.b16 %v4799
    %v5555 = vunpack.c.l.b16 %v4800
    %v5556 = vunpack.c.h.b16 %v4800
    %v5557 = vunpack.c.l.b16 %v4801
    %v5558 = vunpack.c.h.b16 %v4801
    %v5559 = vunpack.c.l.b16 %v4802
    %v5560 = vunpack.c.h.b16 %v4802
    %v5561 = vunpack.c.l.b16 %v4803
    %v5562 = vunpack.c.h.b16 %v4803
    %v5563 = vunpack.c.l.b16 %v4804
    %v5564 = vunpack.c.h.b16 %v4804
    %v5565 = vunpack.c.l.b16 %v4805
    %v5566 = vunpack.c.h.b16 %v4805
    %v5567 = vunpack.c.l.b16 %v4806
    %v5568 = vunpack.c.h.b16 %v4806
    %v5569 = vunpack.c.l.b16 %v4807
    %v5570 = vunpack.c.h.b16 %v4807
    %v5571 = vunpack.c.l.b16 %v4808
    %v5572 = vunpack.c.h.b16 %v4808
    %v5573 = vunpack.c.l.b16 %v4809
    %v5574 = vunpack.c.h.b16 %v4809
    %v5575 = vunpack.c.l.b16 %v4810
    %v5576 = vunpack.c.h.b16 %v4810
    %v5577 = vunpack.c.l.b16 %v4811
    %v5578 = vunpack.c.h.b16 %v4811
    %v5579 = vunpack.c.l.b16 %v4812
    %v5580 = vunpack.c.h.b16 %v4812
    %v5581 = vunpack.c.l.b16 %v4813
    %v5582 = vunpack.c.h.b16 %v4813
    %v5583 = vunpack.c.l.b16 %v4814
    %v5584 = vunpack.c.h.b16 %v4814
    %v5585 = vunpack.c.l.b16 %v4815
    %v5586 = vunpack.c.h.b16 %v4815
    %v5587 = vunpack.c.l.b16 %v4816
    %v5588 = vunpack.c.h.b16 %v4816
    %v5589 = vunpack.c.l.b16 %v4817
    %v5590 = vunpack.c.h.b16 %v4817
    %v5591 = vunpack.c.l.b16 %v4818
    %v5592 = vunpack.c.h.b16 %v4818
    %v5593 = vunpack.c.l.b16 %v4819
    %v5594 = vunpack.c.h.b16 %v4819
    %v5595 = vunpack.c.l.b16 %v4820
    %v5596 = vunpack.c.h.b16 %v4820
    %v5597 = vunpack.c.l.b16 %v4821
    %v5598 = vunpack.c.h.b16 %v4821
    %v5599 = vunpack.c.l.b16 %v4822
    %v5600 = vunpack.c.h.b16 %v4822
    %v5601 = vunpack.c.l.b16 %v4823
    %v5602 = vunpack.c.h.b16 %v4823
    %v5603 = vunpack.c.l.b16 %v4824
    %v5604 = vunpack.c.h.b16 %v4824
    %v5605 = vunpack.c.l.b16 %v4825
    %v5606 = vunpack.c.h.b16 %v4825
    %v5607 = vunpack.c.l.b16 %v4826
    %v5608 = vunpack.c.h.b16 %v4826
    %v5609 = vunpack.c.l.b16 %v4827
    %v5610 = vunpack.c.h.b16 %v4827
    %v5611 = vunpack.c.l.b16 %v4828
    %v5612 = vunpack.c.h.b16 %v4828
    %v5613 = vunpack.c.l.b16 %v4829
    %v5614 = vunpack.c.h.b16 %v4829
    %v5615 = vunpack.c.l.b16 %v4830
    %v5616 = vunpack.c.h.b16 %v4830
    %v5617 = vunpack.c.l.b16 %v4831
    %v5618 = vunpack.c.h.b16 %v4831
    %v5619 = vunpack.c.l.b16 %v4832
    %v5620 = vunpack.c.h.b16 %v4832
    %v5621 = vunpack.c.l.b16 %v4833
    %v5622 = vunpack.c.h.b16 %v4833
    %v5623 = vunpack.c.l.b16 %v4834
    %v5624 = vunpack.c.h.b16 %v4834
    %v5625 = vunpack.c.l.b16 %v4835
    %v5626 = vunpack.c.h.b16 %v4835
    %v5627 = vunpack.c.l.b16 %v4836
    %v5628 = vunpack.c.h.b16 %v4836
    %v5629 = vunpack.c.l.b16 %v4837
    %v5630 = vunpack.c.h.b16 %v4837
    %v5631 = vunpack.c.l.b16 %v4838
    %v5632 = vunpack.c.h.b16 %v4838
    %v5633 = vunpack.c.l.b16 %v4839
    %v5634 = vunpack.c.h.b16 %v4839
    %v5635 = vunpack.c.l.b16 %v4840
    %v5636 = vunpack.c.h.b16 %v4840
    %v5637 = vunpack.c.l.b16 %v4841
    %v5638 = vunpack.c.h.b16 %v4841
    %v5639 = vunpack.c.l.b16 %v4842
    %v5640 = vunpack.c.h.b16 %v4842
    %v5641 = vunpack.c.l.b16 %v4843
    %v5642 = vunpack.c.h.b16 %v4843
    %v5643 = vunpack.c.l.b16 %v4844
    %v5644 = vunpack.c.h.b16 %v4844
    %v5645 = vunpack.c.l.b16 %v4845
    %v5646 = vunpack.c.h.b16 %v4845
    %v5647 = vunpack.c.l.b16 %v4846
    %v5648 = vunpack.c.h.b16 %v4846
    %v5649 = vunpack.c.l.b16 %v4847
    %v5650 = vunpack.c.h.b16 %v4847
    %v5651 = vunpack.c.l.b16 %v4848
    %v5652 = vunpack.c.h.b16 %v4848
    %v5653 = vunpack.c.l.b16 %v4849
    %v5654 = vunpack.c.h.b16 %v4849
    %v5655 = vunpack.c.l.b16 %v4850
    %v5656 = vunpack.c.h.b16 %v4850
    %v5657 = vunpack.c.l.b16 %v4851
    %v5658 = vunpack.c.h.b16 %v4851
    %v5659 = vunpack.c.l.b16 %v4852
    %v5660 = vunpack.c.h.b16 %v4852
    %v5661 = vunpack.c.l.b16 %v4853
    %v5662 = vunpack.c.h.b16 %v4853
    %v5663 = vunpack.c.l.b16 %v4854
    %v5664 = vunpack.c.h.b16 %v4854
    %v5665 = vunpack.c.l.b16 %v4855
    %v5666 = vunpack.c.h.b16 %v4855
    %v5667 = vunpack.c.l.b16 %v4856
    %v5668 = vunpack.c.h.b16 %v4856
    %v5669 = vunpack.c.l.b16 %v4857
    %v5670 = vunpack.c.h.b16 %v4857
    %v5671 = vunpack.c.l.b16 %v4858
    %v5672 = vunpack.c.h.b16 %v4858
    %v5673 = vunpack.c.l.b16 %v4859
    %v5674 = vunpack.c.h.b16 %v4859
    %v5675 = vunpack.c.l.b16 %v4860
    %v5676 = vunpack.c.h.b16 %v4860
    %v5677 = vunpack.c.l.b16 %v4861
    %v5678 = vunpack.c.h.b16 %v4861
    %v5679 = vunpack.c.l.b16 %v4862
    %v5680 = vunpack.c.h.b16 %v4862
    %v5681 = vunpack.c.l.b16 %v4863
    %v5682 = vunpack.c.h.b16 %v4863
    %v5683 = vunpack.c.l.b16 %v4864
    %v5684 = vunpack.c.h.b16 %v4864
    %v5685 = vunpack.c.l.b16 %v4865
    %v5686 = vunpack.c.h.b16 %v4865
    %v5687 = vunpack.c.l.b16 %v4866
    %v5688 = vunpack.c.h.b16 %v4866
    %v5689 = vunpack.c.l.b16 %v4867
    %v5690 = vunpack.c.h.b16 %v4867
    %v5691 = vunpack.c.l.b16 %v4868
    %v5692 = vunpack.c.h.b16 %v4868
    %v5693 = vunpack.c.l.b16 %v4869
    %v5694 = vunpack.c.h.b16 %v4869
    %v5695 = vunpack.c.l.b16 %v4870
    %v5696 = vunpack.c.h.b16 %v4870
    %v5697 = vunpack.c.l.b16 %v4871
    %v5698 = vunpack.c.h.b16 %v4871
    %v5699 = vunpack.c.l.b16 %v4872
    %v5700 = vunpack.c.h.b16 %v4872
    %v5701 = vunpack.c.l.b16 %v4873
    %v5702 = vunpack.c.h.b16 %v4873
    %v5703 = vunpack.c.l.b16 %v4874
    %v5704 = vunpack.c.h.b16 %v4874
    %v5705 = vunpack.c.l.b16 %v4875
    %v5706 = vunpack.c.h.b16 %v4875
    %v5707 = vunpack.c.l.b16 %v4876
    %v5708 = vunpack.c.h.b16 %v4876
    %v5709 = vunpack.c.l.b16 %v4877
    %v5710 = vunpack.c.h.b16 %v4877
    %v5711 = vunpack.c.l.b16 %v4878
    %v5712 = vunpack.c.h.b16 %v4878
    %v5713 = vunpack.c.l.b16 %v4879
    %v5714 = vunpack.c.h.b16 %v4879
    %v5715 = vunpack.c.l.b16 %v4880
    %v5716 = vunpack.c.h.b16 %v4880
    %v5717 = vunpack.c.l.b16 %v4881
    %v5718 = vunpack.c.h.b16 %v4881
    %v5719 = vunpack.c.l.b16 %v4882
    %v5720 = vunpack.c.h.b16 %v4882
    %v5721 = vunpack.c.l.b16 %v4883
    %v5722 = vunpack.c.h.b16 %v4883
    %v5723 = vunpack.c.l.b16 %v4884
    %v5724 = vunpack.c.h.b16 %v4884
    %v5725 = vunpack.c.l.b16 %v4885
    %v5726 = vunpack.c.h.b16 %v4885
    %v5727 = vunpack.c.l.b16 %v4886
    %v5728 = vunpack.c.h.b16 %v4886
    %v5729 = vunpack.c.l.b16 %v4887
    %v5730 = vunpack.c.h.b16 %v4887
    %v5731 = vunpack.c.l.b16 %v4888
    %v5732 = vunpack.c.h.b16 %v4888
    %v5733 = vunpack.c.l.b16 %v4889
    %v5734 = vunpack.c.h.b16 %v4889
    %v5735 = vunpack.c.l.b16 %v4890
    %v5736 = vunpack.c.h.b16 %v4890
    %v5737 = vunpack.c.l.b16 %v4891
    %v5738 = vunpack.c.h.b16 %v4891
    %v5739 = vunpack.c.l.b16 %v4892
    %v5740 = vunpack.c.h.b16 %v4892
    %v5741 = vunpack.c.l.b16 %v4893
    %v5742 = vunpack.c.h.b16 %v4893
    %v5743 = vunpack.c.l.b16 %v4894
    %v5744 = vunpack.c.h.b16 %v4894
    %v5745 = vunpack.c.l.b16 %v4895
    %v5746 = vunpack.c.h.b16 %v4895
    %v5747 = vunpack.c.l.b16 %v4896
    %v5748 = vunpack.c.h.b16 %v4896
    %v5749 = vunpack.c.l.b16 %v4897
    %v5750 = vunpack.c.h.b16 %v4897
    %v5751 = vunpack.c.l.b16 %v4898
    %v5752 = vunpack.c.h.b16 %v4898
    %v5753 = vunpack.c.l.b16 %v4899
    %v5754 = vunpack.c.h.b16 %v4899
    %v5755 = vunpack.c.l.b16 %v4900
    %v5756 = vunpack.c.h.b16 %v4900
    %v5757 = vunpack.c.l.b16 %v4901
    %v5758 = vunpack.c.h.b16 %v4901
    %v5759 = vunpack.c.l.b16 %v4902
    %v5760 = vunpack.c.h.b16 %v4902
    %v5761 = vunpack.c.l.b16 %v4903
    %v5762 = vunpack.c.h.b16 %v4903
    %v5763 = vunpack.c.l.b16 %v4904
    %v5764 = vunpack.c.h.b16 %v4904
    %v5765 = vunpack.c.l.b16 %v4905
    %v5766 = vunpack.c.h.b16 %v4905
    %v5767 = vunpack.c.l.b16 %v4906
    %v5768 = vunpack.c.h.b16 %v4906
    %v5769 = vunpack.c.l.b16 %v4907
    %v5770 = vunpack.c.h.b16 %v4907
    %v5771 = vunpack.c.l.b16 %v4908
    %v5772 = vunpack.c.h.b16 %v4908
    %v5773 = vunpack.c.l.b16 %v4909
    %v5774 = vunpack.c.h.b16 %v4909
    %v5775 = vunpack.c.l.b16 %v4910
    %v5776 = vunpack.c.h.b16 %v4910
    %v5777 = vunpack.c.l.b16 %v4911
    %v5778 = vunpack.c.h.b16 %v4911
    %v5779 = vunpack.c.l.b16 %v4912
    %v5780 = vunpack.c.h.b16 %v4912
    %v5781 = vunpack.c.l.b16 %v4913
    %v5782 = vunpack.c.h.b16 %v4913
    %v5783 = vunpack.c.l.b16 %v4914
    %v5784 = vunpack.c.h.b16 %v4914
    %v5785 = vunpack.c.l.b16 %v4915
    %v5786 = vunpack.c.h.b16 %v4915
    %v5787 = vunpack.c.l.b16 %v4916
    %v5788 = vunpack.c.h.b16 %v4916
    %v5789 = vunpack.c.l.b16 %v4917
    %v5790 = vunpack.c.h.b16 %v4917
    %v5791 = vunpack.c.l.b16 %v4918
    %v5792 = vunpack.c.h.b16 %v4918
    %v5793 = vunpack.c.l.b16 %v4919
    %v5794 = vunpack.c.h.b16 %v4919
    %v5795 = vunpack.c.l.b16 %v4920
    %v5796 = vunpack.c.h.b16 %v4920
    %v5797 = vunpack.c.l.b16 %v4921
    %v5798 = vunpack.c.h.b16 %v4921
    %v5799 = vunpack.c.l.b16 %v4922
    %v5800 = vunpack.c.h.b16 %v4922
    %v5801 = vunpack.c.l.b16 %v4923
    %v5802 = vunpack.c.h.b16 %v4923
    %v5803 = vunpack.c.l.b16 %v4924
    %v5804 = vunpack.c.h.b16 %v4924
    %v5805 = vunpack.c.l.b16 %v4925
    %v5806 = vunpack.c.h.b16 %v4925
    %v5807 = vunpack.c.l.b16 %v4926
    %v5808 = vunpack.c.h.b16 %v4926
    %v5809 = vunpack.c.l.b16 %v4927
    %v5810 = vunpack.c.h.b16 %v4927
    %v5811 = vunpack.c.l.b16 %v4928
    %v5812 = vunpack.c.h.b16 %v4928
    %v5813 = vunpack.c.l.b16 %v4929
    %v5814 = vunpack.c.h.b16 %v4929
    %v5815 = vunpack.c.l.b16 %v4930
    %v5816 = vunpack.c.h.b16 %v4930
    %v5817 = vunpack.c.l.b16 %v4931
    %v5818 = vunpack.c.h.b16 %v4931
    %v5819 = vunpack.c.l.b16 %v4932
    %v5820 = vunpack.c.h.b16 %v4932
    %v5821 = vunpack.c.l.b16 %v4933
    %v5822 = vunpack.c.h.b16 %v4933
    %v5823 = vunpack.c.l.b16 %v4934
    %v5824 = vunpack.c.h.b16 %v4934
    %v5825 = vunpack.c.l.b16 %v4935
    %v5826 = vunpack.c.h.b16 %v4935
    %v5827 = vunpack.c.l.b16 %v4936
    %v5828 = vunpack.c.h.b16 %v4936
    %v5829 = vunpack.c.l.b16 %v4937
    %v5830 = vunpack.c.h.b16 %v4937
    %v5831 = vunpack.c.l.b16 %v4938
    %v5832 = vunpack.c.h.b16 %v4938
    %v5833 = vunpack.c.l.b16 %v4939
    %v5834 = vunpack.c.h.b16 %v4939
    %v5835 = vunpack.c.l.b16 %v4940
    %v5836 = vunpack.c.h.b16 %v4940
    %v5837 = vpack.c.b16 %v5267, %v5261
    %v5838 = vpack.c.b16 %v5268, %v5262
    %v5839 = vpack.c.b16 %v5269, %v5263
    %v5840 = vpack.c.b16 %v5270, %v5264
    %v5841 = vpack.c.b16 %v5271, %v5265
    %v5842 = vpack.c.b16 %v5272, %v5266
    %v5843 = vpack.c.b16 %v5279, %v5273
    %v5844 = vpack.c.b16 %v5280, %v5274
    %v5845 = vpack.c.b16 %v5281, %v5275
    %v5846 = vpack.c.b16 %v5282, %v5276
    %v5847 = vpack.c.b16 %v5283, %v5277
    %v5848 = vpack.c.b16 %v5284, %v5278
    %v5849 = vpack.c.b16 %v5291, %v5285
    %v5850 = vpack.c.b16 %v5292, %v5286
    %v5851 = vpack.c.b16 %v5293, %v5287
    %v5852 = vpack.c.b16 %v5294, %v5288
    %v5853 = vpack.c.b16 %v5295, %v5289
    %v5854 = vpack.c.b16 %v5296, %v5290
    %v5855 = vpack.c.b16 %v5303, %v5297
    %v5856 = vpack.c.b16 %v5304, %v5298
    %v5857 = vpack.c.b16 %v5305, %v5299
    %v5858 = vpack.c.b16 %v5306, %v5300
    %v5859 = vpack.c.b16 %v5307, %v5301
    %v5860 = vpack.c.b16 %v5308, %v5302
    %v5861 = vpack.c.b16 %v5315, %v5309
    %v5862 = vpack.c.b16 %v5316, %v5310
    %v5863 = vpack.c.b16 %v5317, %v5311
    %v5864 = vpack.c.b16 %v5318, %v5312
    %v5865 = vpack.c.b16 %v5319, %v5313
    %v5866 = vpack.c.b16 %v5320, %v5314
    %v5867 = vpack.c.b16 %v5327, %v5321
    %v5868 = vpack.c.b16 %v5328, %v5322
    %v5869 = vpack.c.b16 %v5329, %v5323
    %v5870 = vpack.c.b16 %v5330, %v5324
    %v5871 = vpack.c.b16 %v5331, %v5325
    %v5872 = vpack.c.b16 %v5332, %v5326
    %v5873 = vpack.c.b16 %v5339, %v5333
    %v5874 = vpack.c.b16 %v5340, %v5334
    %v5875 = vpack.c.b16 %v5341, %v5335
    %v5876 = vpack.c.b16 %v5342, %v5336
    %v5877 = vpack.c.b16 %v5343, %v5337
    %v5878 = vpack.c.b16 %v5344, %v5338
    %v5879 = vpack.c.b16 %v5351, %v5345
    %v5880 = vpack.c.b16 %v5352, %v5346
    %v5881 = vpack.c.b16 %v5353, %v5347
    %v5882 = vpack.c.b16 %v5354, %v5348
    %v5883 = vpack.c.b16 %v5355, %v5349
    %v5884 = vpack.c.b16 %v5356, %v5350
    %v5885 = vpack.c.b16 %v5363, %v5357
    %v5886 = vpack.c.b16 %v5364, %v5358
    %v5887 = vpack.c.b16 %v5365, %v5359
    %v5888 = vpack.c.b16 %v5366, %v5360
    %v5889 = vpack.c.b16 %v5367, %v5361
    %v5890 = vpack.c.b16 %v5368, %v5362
    %v5891 = vpack.c.b16 %v5375, %v5369
    %v5892 = vpack.c.b16 %v5376, %v5370
    %v5893 = vpack.c.b16 %v5377, %v5371
    %v5894 = vpack.c.b16 %v5378, %v5372
    %v5895 = vpack.c.b16 %v5379, %v5373
    %v5896 = vpack.c.b16 %v5380, %v5374
    %v5897 = vpack.c.b16 %v5387, %v5381
    %v5898 = vpack.c.b16 %v5388, %v5382
    %v5899 = vpack.c.b16 %v5389, %v5383
    %v5900 = vpack.c.b16 %v5390, %v5384
    %v5901 = vpack.c.b16 %v5391, %v5385
    %v5902 = vpack.c.b16 %v5392, %v5386
    %v5903 = vpack.c.b16 %v5399, %v5393
    %v5904 = vpack.c.b16 %v5400, %v5394
    %v5905 = vpack.c.b16 %v5401, %v5395
    %v5906 = vpack.c.b16 %v5402, %v5396
    %v5907 = vpack.c.b16 %v5403, %v5397
    %v5908 = vpack.c.b16 %v5404, %v5398
    %v5909 = vpack.c.b16 %v5411, %v5405
    %v5910 = vpack.c.b16 %v5412, %v5406
    %v5911 = vpack.c.b16 %v5413, %v5407
    %v5912 = vpack.c.b16 %v5414, %v5408
    %v5913 = vpack.c.b16 %v5415, %v5409
    %v5914 = vpack.c.b16 %v5416, %v5410
    %v5915 = vpack.c.b16 %v5423, %v5417
    %v5916 = vpack.c.b16 %v5424, %v5418
    %v5917 = vpack.c.b16 %v5425, %v5419
    %v5918 = vpack.c.b16 %v5426, %v5420
    %v5919 = vpack.c.b16 %v5427, %v5421
    %v5920 = vpack.c.b16 %v5428, %v5422
    %v5921 = vpack.c.b16 %v5435, %v5429
    %v5922 = vpack.c.b16 %v5436, %v5430
    %v5923 = vpack.c.b16 %v5437, %v5431
    %v5924 = vpack.c.b16 %v5438, %v5432
    %v5925 = vpack.c.b16 %v5439, %v5433
    %v5926 = vpack.c.b16 %v5440, %v5434
    %v5927 = vpack.c.b16 %v5447, %v5441
    %v5928 = vpack.c.b16 %v5448, %v5442
    %v5929 = vpack.c.b16 %v5449, %v5443
    %v5930 = vpack.c.b16 %v5450, %v5444
    %v5931 = vpack.c.b16 %v5451, %v5445
    %v5932 = vpack.c.b16 %v5452, %v5446
    %v5933 = vpack.c.b16 %v5459, %v5453
    %v5934 = vpack.c.b16 %v5460, %v5454
    %v5935 = vpack.c.b16 %v5461, %v5455
    %v5936 = vpack.c.b16 %v5462, %v5456
    %v5937 = vpack.c.b16 %v5463, %v5457
    %v5938 = vpack.c.b16 %v5464, %v5458
    %v5939 = vpack.c.b16 %v5471, %v5465
    %v5940 = vpack.c.b16 %v5472, %v5466
    %v5941 = vpack.c.b16 %v5473, %v5467
    %v5942 = vpack.c.b16 %v5474, %v5468
    %v5943 = vpack.c.b16 %v5475, %v5469
    %v5944 = vpack.c.b16 %v5476, %v5470
    %v5945 = vpack.c.b16 %v5483, %v5477
    %v5946 = vpack.c.b16 %v5484, %v5478
    %v5947 = vpack.c.b16 %v5485, %v5479
    %v5948 = vpack.c.b16 %v5486, %v5480
    %v5949 = vpack.c.b16 %v5487, %v5481
    %v5950 = vpack.c.b16 %v5488, %v5482
    %v5951 = vpack.c.b16 %v5495, %v5489
    %v5952 = vpack.c.b16 %v5496, %v5490
    %v5953 = vpack.c.b16 %v5497, %v5491
    %v5954 = vpack.c.b16 %v5498, %v5492
    %v5955 = vpack.c.b16 %v5499, %v5493
    %v5956 = vpack.c.b16 %v5500, %v5494
    %v5957 = vpack.c.b16 %v5507, %v5501
    %v5958 = vpack.c.b16 %v5508, %v5502
    %v5959 = vpack.c.b16 %v5509, %v5503
    %v5960 = vpack.c.b16 %v5510, %v5504
    %v5961 = vpack.c.b16 %v5511, %v5505
    %v5962 = vpack.c.b16 %v5512, %v5506
    %v5963 = vpack.c.b16 %v5519, %v5513
    %v5964 = vpack.c.b16 %v5520, %v5514
    %v5965 = vpack.c.b16 %v5521, %v5515
    %v5966 = vpack.c.b16 %v5522, %v5516
    %v5967 = vpack.c.b16 %v5523, %v5517
    %v5968 = vpack.c.b16 %v5524, %v5518
    %v5969 = vpack.c.b16 %v5531, %v5525
    %v5970 = vpack.c.b16 %v5532, %v5526
    %v5971 = vpack.c.b16 %v5533, %v5527
    %v5972 = vpack.c.b16 %v5534, %v5528
    %v5973 = vpack.c.b16 %v5535, %v5529
    %v5974 = vpack.c.b16 %v5536, %v5530
    %v5975 = vpack.c.b16 %v5543, %v5537
    %v5976 = vpack.c.b16 %v5544, %v5538
    %v5977 = vpack.c.b16 %v5545, %v5539
    %v5978 = vpack.c.b16 %v5546, %v5540
    %v5979 = vpack.c.b16 %v5547, %v5541
    %v5980 = vpack.c.b16 %v5548, %v5542
    %v5981 = vpack.c.b16 %v5555, %v5549
    %v5982 = vpack.c.b16 %v5556, %v5550
    %v5983 = vpack.c.b16 %v5557, %v5551
    %v5984 = vpack.c.b16 %v5558, %v5552
    %v5985 = vpack.c.b16 %v5559, %v5553
    %v5986 = vpack.c.b16 %v5560, %v5554
    %v5987 = vpack.c.b16 %v5567, %v5561
    %v5988 = vpack.c.b16 %v5568, %v5562
    %v5989 = vpack.c.b16 %v5569, %v5563
    %v5990 = vpack.c.b16 %v5570, %v5564
    %v5991 = vpack.c.b16 %v5571, %v5565
    %v5992 = vpack.c.b16 %v5572, %v5566
    %v5993 = vpack.c.b16 %v5579, %v5573
    %v5994 = vpack.c.b16 %v5580, %v5574
    %v5995 = vpack.c.b16 %v5581, %v5575
    %v5996 = vpack.c.b16 %v5582, %v5576
    %v5997 = vpack.c.b16 %v5583, %v5577
    %v5998 = vpack.c.b16 %v5584, %v5578
    %v5999 = vpack.c.b16 %v5591, %v5585
    %v6000 = vpack.c.b16 %v5592, %v5586
    %v6001 = vpack.c.b16 %v5593, %v5587
    %v6002 = vpack.c.b16 %v5594, %v5588
    %v6003 = vpack.c.b16 %v5595, %v5589
    %v6004 = vpack.c.b16 %v5596, %v5590
    %v6005 = vpack.c.b16 %v5603, %v5597
    %v6006 = vpack.c.b16 %v5604, %v5598
    %v6007 = vpack.c.b16 %v5605, %v5599
    %v6008 = vpack.c.b16 %v5606, %v5600
    %v6009 = vpack.c.b16 %v5607, %v5601
    %v6010 = vpack.c.b16 %v5608, %v5602
    %v6011 = vpack.c.b16 %v5615, %v5609
    %v6012 = vpack.c.b16 %v5616, %v5610
    %v6013 = vpack.c.b16 %v5617, %v5611
    %v6014 = vpack.c.b16 %v5618, %v5612
    %v6015 = vpack.c.b16 %v5619, %v5613
    %v6016 = vpack.c.b16 %v5620, %v5614
    %v6017 = vpack.c.b16 %v5627, %v5621
    %v6018 = vpack.c.b16 %v5628, %v5622
    %v6019 = vpack.c.b16 %v5629, %v5623
    %v6020 = vpack.c.b16 %v5630, %v5624
    %v6021 = vpack.c.b16 %v5631, %v5625
    %v6022 = vpack.c.b16 %v5632, %v5626
    %v6023 = vpack.c.b16 %v5639, %v5633
    %v6024 = vpack.c.b16 %v5640, %v5634
    %v6025 = vpack.c.b16 %v5641, %v5635
    %v6026 = vpack.c.b16 %v5642, %v5636
    %v6027 = vpack.c.b16 %v5643, %v5637
    %v6028 = vpack.c.b16 %v5644, %v5638
    %v6029 = vpack.c.b16 %v5651, %v5645
    %v6030 = vpack.c.b16 %v5652, %v5646
    %v6031 = vpack.c.b16 %v5653, %v5647
    %v6032 = vpack.c.b16 %v5654, %v5648
    %v6033 = vpack.c.b16 %v5655, %v5649
    %v6034 = vpack.c.b16 %v5656, %v5650
    %v6035 = vpack.c.b16 %v5663, %v5657
    %v6036 = vpack.c.b16 %v5664, %v5658
    %v6037 = vpack.c.b16 %v5665, %v5659
    %v6038 = vpack.c.b16 %v5666, %v5660
    %v6039 = vpack.c.b16 %v5667, %v5661
    %v6040 = vpack.c.b16 %v5668, %v5662
    %v6041 = vpack.c.b16 %v5675, %v5669
    %v6042 = vpack.c.b16 %v5676, %v5670
    %v6043 = vpack.c.b16 %v5677, %v5671
    %v6044 = vpack.c.b16 %v5678, %v5672
    %v6045 = vpack.c.b16 %v5679, %v5673
    %v6046 = vpack.c.b16 %v5680, %v5674
    %v6047 = vpack.c.b16 %v5687, %v5681
    %v6048 = vpack.c.b16 %v5688, %v5682
    %v6049 = vpack.c.b16 %v5689, %v5683
    %v6050 = vpack.c.b16 %v5690, %v5684
    %v6051 = vpack.c.b16 %v5691, %v5685
    %v6052 = vpack.c.b16 %v5692, %v5686
    %v6053 = vpack.c.b16 %v5699, %v5693
    %v6054 = vpack.c.b16 %v5700, %v5694
    %v6055 = vpack.c.b16 %v5701, %v5695
    %v6056 = vpack.c.b16 %v5702, %v5696
    %v6057 = vpack.c.b16 %v5703, %v5697
    %v6058 = vpack.c.b16 %v5704, %v5698
    %v6059 = vpack.c.b16 %v5711, %v5705
    %v6060 = vpack.c.b16 %v5712, %v5706
    %v6061 = vpack.c.b16 %v5713, %v5707
    %v6062 = vpack.c.b16 %v5714, %v5708
    %v6063 = vpack.c.b16 %v5715, %v5709
    %v6064 = vpack.c.b16 %v5716, %v5710
    %v6065 = vpack.c.b16 %v5723, %v5717
    %v6066 = vpack.c.b16 %v5724, %v5718
    %v6067 = vpack.c.b16 %v5725, %v5719
    %v6068 = vpack.c.b16 %v5726, %v5720
    %v6069 = vpack.c.b16 %v5727, %v5721
    %v6070 = vpack.c.b16 %v5728, %v5722
    %v6071 = vpack.c.b16 %v5735, %v5729
    %v6072 = vpack.c.b16 %v5736, %v5730
    %v6073 = vpack.c.b16 %v5737, %v5731
    %v6074 = vpack.c.b16 %v5738, %v5732
    %v6075 = vpack.c.b16 %v5739, %v5733
    %v6076 = vpack.c.b16 %v5740, %v5734
    %v6077 = vpack.c.b16 %v5747, %v5741
    %v6078 = vpack.c.b16 %v5748, %v5742
    %v6079 = vpack.c.b16 %v5749, %v5743
    %v6080 = vpack.c.b16 %v5750, %v5744
    %v6081 = vpack.c.b16 %v5751, %v5745
    %v6082 = vpack.c.b16 %v5752, %v5746
    %v6083 = vpack.c.b16 %v5759, %v5753
    %v6084 = vpack.c.b16 %v5760, %v5754
    %v6085 = vpack.c.b16 %v5761, %v5755
    %v6086 = vpack.c.b16 %v5762, %v5756
    %v6087 = vpack.c.b16 %v5763, %v5757
    %v6088 = vpack.c.b16 %v5764, %v5758
    %v6089 = vpack.c.b16 %v5771, %v5765
    %v6090 = vpack.c.b16 %v5772, %v5766
    %v6091 = vpack.c.b16 %v5773, %v5767
    %v6092 = vpack.c.b16 %v5774, %v5768
    %v6093 = vpack.c.b16 %v5775, %v5769
    %v6094 = vpack.c.b16 %v5776, %v5770
    %v6095 = vpack.c.b16 %v5783, %v5777
    %v6096 = vpack.c.b16 %v5784, %v5778
    %v6097 = vpack.c.b16 %v5785, %v5779
    %v6098 = vpack.c.b16 %v5786, %v5780
    %v6099 = vpack.c.b16 %v5787, %v5781
    %v6100 = vpack.c.b16 %v5788, %v5782
    %v6101 = vpack.c.b16 %v5795, %v5789
    %v6102 = vpack.c.b16 %v5796, %v5790
    %v6103 = vpack.c.b16 %v5797, %v5791
    %v6104 = vpack.c.b16 %v5798, %v5792
    %v6105 = vpack.c.b16 %v5799, %v5793
    %v6106 = vpack.c.b16 %v5800, %v5794
    %v6107 = vpack.c.b16 %v5807, %v5801
    %v6108 = vpack.c.b16 %v5808, %v5802
    %v6109 = vpack.c.b16 %v5809, %v5803
    %v6110 = vpack.c.b16 %v5810, %v5804
    %v6111 = vpack.c.b16 %v5811, %v5805
    %v6112 = vpack.c.b16 %v5812, %v5806
    %v6113 = vpack.c.b16 %v5819, %v5813
    %v6114 = vpack.c.b16 %v5820, %v5814
    %v6115 = vpack.c.b16 %v5821, %v5815
    %v6116 = vpack.c.b16 %v5822, %v5816
    %v6117 = vpack.c.b16 %v5823, %v5817
    %v6118 = vpack.c.b16 %v5824, %v5818
    %v6119 = vpack.c.b16 %v5831, %v5825
    %v6120 = vpack.c.b16 %v5832, %v5826
    %v6121 = vpack.c.b16 %v5833, %v5827
    %v6122 = vpack.c.b16 %v5834, %v5828
    %v6123 = vpack.c.b16 %v5835, %v5829
    %v6124 = vpack.c.b16 %v5836, %v5830
    %6413 = vmatprep.subr.bf16.mxu0 %v5838
    %6414 = vmatpush1.bf16.msra.mxu0 %v5837
    %6415 = vmatprep.subr.bf16.mxu0 %v5844
    %6416 = vmatpush1.bf16.msra.mxu0 %v5843
    %6417 = vmatprep.subr.bf16.mxu0 %v5850
    %6418 = vmatpush1.bf16.msra.mxu0 %v5849
    %6419 = vmatprep.subr.bf16.mxu0 %v5856
    %6420 = vmatpush1.bf16.msra.mxu0 %v5855
    %6421 = vmatprep.subr.bf16.mxu0 %v5862
    %6422 = vmatpush1.bf16.msra.mxu0 %v5861
    %6423 = vmatprep.subr.bf16.mxu0 %v5868
    %6424 = vmatpush1.bf16.msra.mxu0 %v5867
    %6425 = vmatprep.subr.bf16.mxu0 %v5874
    %6426 = vmatpush1.bf16.msra.mxu0 %v5873
    %6427 = vmatprep.subr.bf16.mxu0 %v5880
    %6428 = vmatpush1.bf16.msra.mxu0 %v5879
    %6429 = vmatprep.subr.bf16.mxu0 %v5886
    %6430 = vmatpush1.bf16.msra.mxu0 %v5885
    %6431 = vmatprep.subr.bf16.mxu0 %v5892
    %6432 = vmatpush1.bf16.msra.mxu0 %v5891
    %6433 = vmatprep.subr.bf16.mxu0 %v5898
    %6434 = vmatpush1.bf16.msra.mxu0 %v5897
    %6435 = vmatprep.subr.bf16.mxu0 %v5904
    %6436 = vmatpush1.bf16.msra.mxu0 %v5903
    %6437 = vmatprep.subr.bf16.mxu0 %v5910
    %6438 = vmatpush1.bf16.msra.mxu0 %v5909
    %6439 = vmatprep.subr.bf16.mxu0 %v5916
    %6440 = vmatpush1.bf16.msra.mxu0 %v5915
    %6441 = vmatprep.subr.bf16.mxu0 %v5922
    %6442 = vmatpush1.bf16.msra.mxu0 %v5921
    %6443 = vmatprep.subr.bf16.mxu0 %v5928
    %6444 = vmatpush1.bf16.msra.mxu0 %v5927
    %6445 = vmatprep.mubr.bf16.mxu0 %v4648
    %6446 = vmatmul.mubr.bf16.gmra.mrb[0].mxu0 %v4647
    %v6447 = vpop.f32.mrb[0].mxu0
    %v6448 = vadd.f32 %v4946, %v6447
    %v6449 = vpop.f32.mrb[0].mxu0
    %v6450 = vadd.f32 %v4950, %v6449
    %v6451 = vpop.f32.mrb[0].mxu0
    %v6452 = vadd.f32 %v4946, %v6451
    %v6453 = vpop.f32.mrb[0].mxu0
    %v6454 = vadd.f32 %v4950, %v6453
    %6455 = vdwg.mxu0
    %6456 = vmatprep.subr.bf16.mxu0 %v5934
    %6457 = vmatpush1.bf16.msra.mxu0 %v5933
    %6458 = vmatprep.subr.bf16.mxu0 %v5940
    %6459 = vmatpush1.bf16.msra.mxu0 %v5939
    %6460 = vmatprep.subr.bf16.mxu0 %v5946
    %6461 = vmatpush1.bf16.msra.mxu0 %v5945
    %6462 = vmatprep.subr.bf16.mxu0 %v5952
    %6463 = vmatpush1.bf16.msra.mxu0 %v5951
    %6464 = vmatprep.subr.bf16.mxu0 %v5958
    %6465 = vmatpush1.bf16.msra.mxu0 %v5957
    %6466 = vmatprep.subr.bf16.mxu0 %v5964
    %6467 = vmatpush1.bf16.msra.mxu0 %v5963
    %6468 = vmatprep.subr.bf16.mxu0 %v5970
    %6469 = vmatpush1.bf16.msra.mxu0 %v5969
    %6470 = vmatprep.subr.bf16.mxu0 %v5976
    %6471 = vmatpush1.bf16.msra.mxu0 %v5975
    %6472 = vmatprep.subr.bf16.mxu0 %v5982
    %6473 = vmatpush1.bf16.msra.mxu0 %v5981
    %6474 = vmatprep.subr.bf16.mxu0 %v5988
    %6475 = vmatpush1.bf16.msra.mxu0 %v5987
    %6476 = vmatprep.subr.bf16.mxu0 %v5994
    %6477 = vmatpush1.bf16.msra.mxu0 %v5993
    %6478 = vmatprep.subr.bf16.mxu0 %v6000
    %6479 = vmatpush1.bf16.msra.mxu0 %v5999
    %6480 = vmatprep.subr.bf16.mxu0 %v6006
    %6481 = vmatpush1.bf16.msra.mxu0 %v6005
    %6482 = vmatprep.subr.bf16.mxu0 %v6012
    %6483 = vmatpush1.bf16.msra.mxu0 %v6011
    %6484 = vmatprep.subr.bf16.mxu0 %v6018
    %6485 = vmatpush1.bf16.msra.mxu0 %v6017
    %6486 = vmatprep.subr.bf16.mxu0 %v6024
    %6487 = vmatpush1.bf16.msra.mxu0 %v6023
    %6488 = vmatprep.mubr.bf16.mxu0 %v4650
    %6489 = vmatmul.mubr.bf16.gmra.mrb[0].mxu0 %v4649
    %v6490 = vpop.f32.mrb[0].mxu0
    %v6491 = vadd.f32 %v6448, %v6490
    %v6492 = vpop.f32.mrb[0].mxu0
    %v6493 = vadd.f32 %v6450, %v6492
    %v6494 = vpop.f32.mrb[0].mxu0
    %v6495 = vadd.f32 %v6452, %v6494
    %v6496 = vpop.f32.mrb[0].mxu0
    %v6497 = vadd.f32 %v6454, %v6496
    %6498 = vdwg.mxu0
    %6499 = vmatprep.subr.bf16.mxu0 %v6030
    %6500 = vmatpush1.bf16.msra.mxu0 %v6029
    %6501 = vmatprep.subr.bf16.mxu0 %v6036
    %6502 = vmatpush1.bf16.msra.mxu0 %v6035
    %6503 = vmatprep.subr.bf16.mxu0 %v6042
    %6504 = vmatpush1.bf16.msra.mxu0 %v6041
    %6505 = vmatprep.subr.bf16.mxu0 %v6048
    %6506 = vmatpush1.bf16.msra.mxu0 %v6047
    %6507 = vmatprep.subr.bf16.mxu0 %v6054
    %6508 = vmatpush1.bf16.msra.mxu0 %v6053
    %6509 = vmatprep.subr.bf16.mxu0 %v6060
    %6510 = vmatpush1.bf16.msra.mxu0 %v6059
    %6511 = vmatprep.subr.bf16.mxu0 %v6066
    %6512 = vmatpush1.bf16.msra.mxu0 %v6065
    %6513 = vmatprep.subr.bf16.mxu0 %v6072
    %6514 = vmatpush1.bf16.msra.mxu0 %v6071
    %6515 = vmatprep.subr.bf16.mxu0 %v6078
    %6516 = vmatpush1.bf16.msra.mxu0 %v6077
    %6517 = vmatprep.subr.bf16.mxu0 %v6084
    %6518 = vmatpush1.bf16.msra.mxu0 %v6083
    %6519 = vmatprep.subr.bf16.mxu0 %v6090
    %6520 = vmatpush1.bf16.msra.mxu0 %v6089
    %6521 = vmatprep.subr.bf16.mxu0 %v6096
    %6522 = vmatpush1.bf16.msra.mxu0 %v6095
    %6523 = vmatprep.subr.bf16.mxu0 %v6102
    %6524 = vmatpush1.bf16.msra.mxu0 %v6101
    %6525 = vmatprep.subr.bf16.mxu0 %v6108
    %6526 = vmatpush1.bf16.msra.mxu0 %v6107
    %6527 = vmatprep.subr.bf16.mxu0 %v6114
    %6528 = vmatpush1.bf16.msra.mxu0 %v6113
    %6529 = vmatprep.subr.bf16.mxu0 %v6120
    %6530 = vmatpush1.bf16.msra.mxu0 %v6119
    %6531 = vmatprep.mubr.bf16.mxu0 %v4652
    %6532 = vmatmul.mubr.bf16.gmra.mrb[0].mxu0 %v4651
    %v6533 = vpop.f32.mrb[0].mxu0
    %v6534 = vadd.f32 %v6491, %v6533
    %v6535 = vpop.f32.mrb[0].mxu0
    %v6536 = vadd.f32 %v6493, %v6535
    %v6537 = vpop.f32.mrb[0].mxu0
    %v6538 = vadd.f32 %v6495, %v6537
    %v6539 = vpop.f32.mrb[0].mxu0
    %v6540 = vadd.f32 %v6497, %v6539
    %6541 = vdwg.mxu0
    %6542 = vmatprep.subr.bf16.mxu0 %v5840
    %6543 = vmatpush1.bf16.msra.mxu0 %v5839
    %6544 = vmatprep.subr.bf16.mxu0 %v5846
    %6545 = vmatpush1.bf16.msra.mxu0 %v5845
    %6546 = vmatprep.subr.bf16.mxu0 %v5852
    %6547 = vmatpush1.bf16.msra.mxu0 %v5851
    %6548 = vmatprep.subr.bf16.mxu0 %v5858
    %6549 = vmatpush1.bf16.msra.mxu0 %v5857
    %6550 = vmatprep.subr.bf16.mxu0 %v5864
    %6551 = vmatpush1.bf16.msra.mxu0 %v5863
    %6552 = vmatprep.subr.bf16.mxu0 %v5870
    %6553 = vmatpush1.bf16.msra.mxu0 %v5869
    %6554 = vmatprep.subr.bf16.mxu0 %v5876
    %6555 = vmatpush1.bf16.msra.mxu0 %v5875
    %6556 = vmatprep.subr.bf16.mxu0 %v5882
    %6557 = vmatpush1.bf16.msra.mxu0 %v5881
    %6558 = vmatprep.subr.bf16.mxu0 %v5888
    %6559 = vmatpush1.bf16.msra.mxu0 %v5887
    %6560 = vmatprep.subr.bf16.mxu0 %v5894
    %6561 = vmatpush1.bf16.msra.mxu0 %v5893
    %6562 = vmatprep.subr.bf16.mxu0 %v5900
    %6563 = vmatpush1.bf16.msra.mxu0 %v5899
    %6564 = vmatprep.subr.bf16.mxu0 %v5906
    %6565 = vmatpush1.bf16.msra.mxu0 %v5905
    %6566 = vmatprep.subr.bf16.mxu0 %v5912
    %6567 = vmatpush1.bf16.msra.mxu0 %v5911
    %6568 = vmatprep.subr.bf16.mxu0 %v5918
    %6569 = vmatpush1.bf16.msra.mxu0 %v5917
    %6570 = vmatprep.subr.bf16.mxu0 %v5924
    %6571 = vmatpush1.bf16.msra.mxu0 %v5923
    %6572 = vmatprep.subr.bf16.mxu0 %v5930
    %6573 = vmatpush1.bf16.msra.mxu0 %v5929
    %6574 = vmatprep.mubr.bf16.mxu0 %v4648
    %6575 = vmatmul.mubr.bf16.gmra.mrb[0].mxu0 %v4647
    %v6576 = vpop.f32.mrb[0].mxu0
    %v6577 = vadd.f32 %v4954, %v6576
    %v6578 = vpop.f32.mrb[0].mxu0
    %v6579 = vadd.f32 %v4958, %v6578
    %v6580 = vpop.f32.mrb[0].mxu0
    %v6581 = vadd.f32 %v4954, %v6580
    %v6582 = vpop.f32.mrb[0].mxu0
    %v6583 = vadd.f32 %v4958, %v6582
    %6584 = vdwg.mxu0
    %6585 = vmatprep.subr.bf16.mxu0 %v5936
    %6586 = vmatpush1.bf16.msra.mxu0 %v5935
    %6587 = vmatprep.subr.bf16.mxu0 %v5942
    %6588 = vmatpush1.bf16.msra.mxu0 %v5941
    %6589 = vmatprep.subr.bf16.mxu0 %v5948
    %6590 = vmatpush1.bf16.msra.mxu0 %v5947
    %6591 = vmatprep.subr.bf16.mxu0 %v5954
    %6592 = vmatpush1.bf16.msra.mxu0 %v5953
    %6593 = vmatprep.subr.bf16.mxu0 %v5960
    %6594 = vmatpush1.bf16.msra.mxu0 %v5959
    %6595 = vmatprep.subr.bf16.mxu0 %v5966
    %6596 = vmatpush1.bf16.msra.mxu0 %v5965
    %6597 = vmatprep.subr.bf16.mxu0 %v5972
    %6598 = vmatpush1.bf16.msra.mxu0 %v5971
    %6599 = vmatprep.subr.bf16.mxu0 %v5978
    %6600 = vmatpush1.bf16.msra.mxu0 %v5977
    %6601 = vmatprep.subr.bf16.mxu0 %v5984
    %6602 = vmatpush1.bf16.msra.mxu0 %v5983
    %6603 = vmatprep.subr.bf16.mxu0 %v5990
    %6604 = vmatpush1.bf16.msra.mxu0 %v5989
    %6605 = vmatprep.subr.bf16.mxu0 %v5996
    %6606 = vmatpush1.bf16.msra.mxu0 %v5995
    %6607 = vmatprep.subr.bf16.mxu0 %v6002
    %6608 = vmatpush1.bf16.msra.mxu0 %v6001
    %6609 = vmatprep.subr.bf16.mxu0 %v6008
    %6610 = vmatpush1.bf16.msra.mxu0 %v6007
    %6611 = vmatprep.subr.bf16.mxu0 %v6014
    %6612 = vmatpush1.bf16.msra.mxu0 %v6013
    %6613 = vmatprep.subr.bf16.mxu0 %v6020
    %6614 = vmatpush1.bf16.msra.mxu0 %v6019
    %6615 = vmatprep.subr.bf16.mxu0 %v6026
    %6616 = vmatpush1.bf16.msra.mxu0 %v6025
    %6617 = vmatprep.mubr.bf16.mxu0 %v4650
    %6618 = vmatmul.mubr.bf16.gmra.mrb[0].mxu0 %v4649
    %v6619 = vpop.f32.mrb[0].mxu0
    %v6620 = vadd.f32 %v6577, %v6619
    %v6621 = vpop.f32.mrb[0].mxu0
    %v6622 = vadd.f32 %v6579, %v6621
    %v6623 = vpop.f32.mrb[0].mxu0
    %v6624 = vadd.f32 %v6581, %v6623
    %v6625 = vpop.f32.mrb[0].mxu0
    %v6626 = vadd.f32 %v6583, %v6625
    %6627 = vdwg.mxu0
    %6628 = vmatprep.subr.bf16.mxu0 %v6032
    %6629 = vmatpush1.bf16.msra.mxu0 %v6031
    %6630 = vmatprep.subr.bf16.mxu0 %v6038
    %6631 = vmatpush1.bf16.msra.mxu0 %v6037
    %6632 = vmatprep.subr.bf16.mxu0 %v6044
    %6633 = vmatpush1.bf16.msra.mxu0 %v6043
    %6634 = vmatprep.subr.bf16.mxu0 %v6050
    %6635 = vmatpush1.bf16.msra.mxu0 %v6049
    %6636 = vmatprep.subr.bf16.mxu0 %v6056
    %6637 = vmatpush1.bf16.msra.mxu0 %v6055
    %6638 = vmatprep.subr.bf16.mxu0 %v6062
    %6639 = vmatpush1.bf16.msra.mxu0 %v6061
    %6640 = vmatprep.subr.bf16.mxu0 %v6068
    %6641 = vmatpush1.bf16.msra.mxu0 %v6067
    %6642 = vmatprep.subr.bf16.mxu0 %v6074
    %6643 = vmatpush1.bf16.msra.mxu0 %v6073
    %6644 = vmatprep.subr.bf16.mxu0 %v6080
    %6645 = vmatpush1.bf16.msra.mxu0 %v6079
    %6646 = vmatprep.subr.bf16.mxu0 %v6086
    %6647 = vmatpush1.bf16.msra.mxu0 %v6085
    %6648 = vmatprep.subr.bf16.mxu0 %v6092
    %6649 = vmatpush1.bf16.msra.mxu0 %v6091
    %6650 = vmatprep.subr.bf16.mxu0 %v6098
    %6651 = vmatpush1.bf16.msra.mxu0 %v6097
    %6652 = vmatprep.subr.bf16.mxu0 %v6104
    %6653 = vmatpush1.bf16.msra.mxu0 %v6103
    %6654 = vmatprep.subr.bf16.mxu0 %v6110
    %6655 = vmatpush1.bf16.msra.mxu0 %v6109
    %6656 = vmatprep.subr.bf16.mxu0 %v6116
    %6657 = vmatpush1.bf16.msra.mxu0 %v6115
    %6658 = vmatprep.subr.bf16.mxu0 %v6122
    %6659 = vmatpush1.bf16.msra.mxu0 %v6121
    %6660 = vmatprep.mubr.bf16.mxu0 %v4652
    %6661 = vmatmul.mubr.bf16.gmra.mrb[0].mxu0 %v4651
    %v6662 = vpop.f32.mrb[0].mxu0
    %v6663 = vadd.f32 %v6620, %v6662
    %v6664 = vpop.f32.mrb[0].mxu0
    %v6665 = vadd.f32 %v6622, %v6664
    %v6666 = vpop.f32.mrb[0].mxu0
    %v6667 = vadd.f32 %v6624, %v6666
    %v6668 = vpop.f32.mrb[0].mxu0
    %v6669 = vadd.f32 %v6626, %v6668
    %6670 = vdwg.mxu0
    %6671 = vmatprep.subr.bf16.mxu0 %v5842
    %6672 = vmatpush1.bf16.msra.mxu0 %v5841
    %6673 = vmatprep.subr.bf16.mxu0 %v5848
    %6674 = vmatpush1.bf16.msra.mxu0 %v5847
    %6675 = vmatprep.subr.bf16.mxu0 %v5854
    %6676 = vmatpush1.bf16.msra.mxu0 %v5853
    %6677 = vmatprep.subr.bf16.mxu0 %v5860
    %6678 = vmatpush1.bf16.msra.mxu0 %v5859
    %6679 = vmatprep.subr.bf16.mxu0 %v5866
    %6680 = vmatpush1.bf16.msra.mxu0 %v5865
    %6681 = vmatprep.subr.bf16.mxu0 %v5872
    %6682 = vmatpush1.bf16.msra.mxu0 %v5871
    %6683 = vmatprep.subr.bf16.mxu0 %v5878
    %6684 = vmatpush1.bf16.msra.mxu0 %v5877
    %6685 = vmatprep.subr.bf16.mxu0 %v5884
    %6686 = vmatpush1.bf16.msra.mxu0 %v5883
    %6687 = vmatprep.subr.bf16.mxu0 %v5890
    %6688 = vmatpush1.bf16.msra.mxu0 %v5889
    %6689 = vmatprep.subr.bf16.mxu0 %v5896
    %6690 = vmatpush1.bf16.msra.mxu0 %v5895
    %6691 = vmatprep.subr.bf16.mxu0 %v5902
    %6692 = vmatpush1.bf16.msra.mxu0 %v5901
    %6693 = vmatprep.subr.bf16.mxu0 %v5908
    %6694 = vmatpush1.bf16.msra.mxu0 %v5907
    %6695 = vmatprep.subr.bf16.mxu0 %v5914
    %6696 = vmatpush1.bf16.msra.mxu0 %v5913
    %6697 = vmatprep.subr.bf16.mxu0 %v5920
    %6698 = vmatpush1.bf16.msra.mxu0 %v5919
    %6699 = vmatprep.subr.bf16.mxu0 %v5926
    %6700 = vmatpush1.bf16.msra.mxu0 %v5925
    %6701 = vmatprep.subr.bf16.mxu0 %v5932
    %6702 = vmatpush1.bf16.msra.mxu0 %v5931
    %6703 = vmatprep.mubr.bf16.mxu0 %v4648
    %6704 = vmatmul.mubr.bf16.gmra.mrb[0].mxu0 %v4647
    %v6705 = vpop.f32.mrb[0].mxu0
    %v6706 = vadd.f32 %v4962, %v6705
    %v6707 = vpop.f32.mrb[0].mxu0
    %v6708 = vadd.f32 %v4966, %v6707
    %v6709 = vpop.f32.mrb[0].mxu0
    %v6710 = vadd.f32 %v4962, %v6709
    %v6711 = vpop.f32.mrb[0].mxu0
    %v6712 = vadd.f32 %v4966, %v6711
    %6713 = vdwg.mxu0
    %6714 = vmatprep.subr.bf16.mxu0 %v5938
    %6715 = vmatpush1.bf16.msra.mxu0 %v5937
    %6716 = vmatprep.subr.bf16.mxu0 %v5944
    %6717 = vmatpush1.bf16.msra.mxu0 %v5943
    %6718 = vmatprep.subr.bf16.mxu0 %v5950
    %6719 = vmatpush1.bf16.msra.mxu0 %v5949
    %6720 = vmatprep.subr.bf16.mxu0 %v5956
    %6721 = vmatpush1.bf16.msra.mxu0 %v5955
    %6722 = vmatprep.subr.bf16.mxu0 %v5962
    %6723 = vmatpush1.bf16.msra.mxu0 %v5961
    %6724 = vmatprep.subr.bf16.mxu0 %v5968
    %6725 = vmatpush1.bf16.msra.mxu0 %v5967
    %6726 = vmatprep.subr.bf16.mxu0 %v5974
    %6727 = vmatpush1.bf16.msra.mxu0 %v5973
    %6728 = vmatprep.subr.bf16.mxu0 %v5980
    %6729 = vmatpush1.bf16.msra.mxu0 %v5979
    %6730 = vmatprep.subr.bf16.mxu0 %v5986
    %6731 = vmatpush1.bf16.msra.mxu0 %v5985
    %6732 = vmatprep.subr.bf16.mxu0 %v5992
    %6733 = vmatpush1.bf16.msra.mxu0 %v5991
    %6734 = vmatprep.subr.bf16.mxu0 %v5998
    %6735 = vmatpush1.bf16.msra.mxu0 %v5997
    %6736 = vmatprep.subr.bf16.mxu0 %v6004
    %6737 = vmatpush1.bf16.msra.mxu0 %v6003
    %6738 = vmatprep.subr.bf16.mxu0 %v6010
    %6739 = vmatpush1.bf16.msra.mxu0 %v6009
    %6740 = vmatprep.subr.bf16.mxu0 %v6016
    %6741 = vmatpush1.bf16.msra.mxu0 %v6015
    %6742 = vmatprep.subr.bf16.mxu0 %v6022
    %6743 = vmatpush1.bf16.msra.mxu0 %v6021
    %6744 = vmatprep.subr.bf16.mxu0 %v6028
    %6745 = vmatpush1.bf16.msra.mxu0 %v6027
    %6746 = vmatprep.mubr.bf16.mxu0 %v4650
    %6747 = vmatmul.mubr.bf16.gmra.mrb[0].mxu0 %v4649
    %v6748 = vpop.f32.mrb[0].mxu0
    %v6749 = vadd.f32 %v6706, %v6748
    %v6750 = vpop.f32.mrb[0].mxu0
    %v6751 = vadd.f32 %v6708, %v6750
    %v6752 = vpop.f32.mrb[0].mxu0
    %v6753 = vadd.f32 %v6710, %v6752
    %v6754 = vpop.f32.mrb[0].mxu0
    %v6755 = vadd.f32 %v6712, %v6754
    %6756 = vdwg.mxu0
    %6757 = vmatprep.subr.bf16.mxu0 %v6034
    %6758 = vmatpush1.bf16.msra.mxu0 %v6033
    %6759 = vmatprep.subr.bf16.mxu0 %v6040
    %6760 = vmatpush1.bf16.msra.mxu0 %v6039
    %6761 = vmatprep.subr.bf16.mxu0 %v6046
    %6762 = vmatpush1.bf16.msra.mxu0 %v6045
    %6763 = vmatprep.subr.bf16.mxu0 %v6052
    %6764 = vmatpush1.bf16.msra.mxu0 %v6051
    %6765 = vmatprep.subr.bf16.mxu0 %v6058
    %6766 = vmatpush1.bf16.msra.mxu0 %v6057
    %6767 = vmatprep.subr.bf16.mxu0 %v6064
    %6768 = vmatpush1.bf16.msra.mxu0 %v6063
    %6769 = vmatprep.subr.bf16.mxu0 %v6070
    %6770 = vmatpush1.bf16.msra.mxu0 %v6069
    %6771 = vmatprep.subr.bf16.mxu0 %v6076
    %6772 = vmatpush1.bf16.msra.mxu0 %v6075
    %6773 = vmatprep.subr.bf16.mxu0 %v6082
    %6774 = vmatpush1.bf16.msra.mxu0 %v6081
    %6775 = vmatprep.subr.bf16.mxu0 %v6088
    %6776 = vmatpush1.bf16.msra.mxu0 %v6087
    %6777 = vmatprep.subr.bf16.mxu0 %v6094
    %6778 = vmatpush1.bf16.msra.mxu0 %v6093
    %6779 = vmatprep.subr.bf16.mxu0 %v6100
    %6780 = vmatpush1.bf16.msra.mxu0 %v6099
    %6781 = vmatprep.subr.bf16.mxu0 %v6106
    %6782 = vmatpush1.bf16.msra.mxu0 %v6105
    %6783 = vmatprep.subr.bf16.mxu0 %v6112
    %6784 = vmatpush1.bf16.msra.mxu0 %v6111
    %6785 = vmatprep.subr.bf16.mxu0 %v6118
    %6786 = vmatpush1.bf16.msra.mxu0 %v6117
    %6787 = vmatprep.subr.bf16.mxu0 %v6124
    %6788 = vmatpush1.bf16.msra.mxu0 %v6123
    %6789 = vmatprep.mubr.bf16.mxu0 %v4652
    %6790 = vmatmul.mubr.bf16.gmra.mrb[0].mxu0 %v4651
    %v6791 = vpop.f32.mrb[0].mxu0
    %v6792 = vadd.f32 %v6749, %v6791
    %v6793 = vpop.f32.mrb[0].mxu0
    %v6794 = vadd.f32 %v6751, %v6793
    %v6795 = vpop.f32.mrb[0].mxu0
    %v6796 = vadd.f32 %v6753, %v6795
    %v6797 = vpop.f32.mrb[0].mxu0
    %v6798 = vadd.f32 %v6755, %v6797
    %6799 = vdwg.mxu0
    %v6800 = vmax.f32 %v6534, 0.0
    %v6801 = vmax.f32 %v6536, 0.0
    %v6802 = vmax.f32 %v6663, 0.0
    %v6803 = vmax.f32 %v6665, 0.0
    %v6804 = vmax.f32 %v6792, 0.0
    %v6805 = vmax.f32 %v6794, 0.0
    %v6806 = vmax.f32 %v6538, 0.0
    %v6807 = vmax.f32 %v6540, 0.0
    %v6808 = vmax.f32 %v6667, 0.0
    %v6809 = vmax.f32 %v6669, 0.0
    %v6810 = vmax.f32 %v6796, 0.0
    %v6811 = vmax.f32 %v6798, 0.0
    %v6812 = vpack.c.bf16 %v6806, %v6800
    %v6813 = vpack.c.bf16 %v6807, %v6801
    %v6814 = vpack.c.bf16 %v6808, %v6802
    %v6815 = vpack.c.bf16 %v6809, %v6803
    %v6816 = vpack.c.bf16 %v6810, %v6804
    %v6817 = vpack.c.bf16 %v6811, %v6805
    %v6818 = vld [vmem:[#allocation23] sm:$0xf]
    %v6819 = vld [vmem:[#allocation23 + $0x4] sm:$0xf]
    %v6820 = vld [vmem:[#allocation23 + $0x8] sm:$0xf]
    %v6821 = vld [vmem:[#allocation23 + $0xc] sm:$0xf]
    %v6822 = vld [vmem:[#allocation23 + $0x10] sm:$0xf]
    %v6823 = vld [vmem:[#allocation23 + $0x14] sm:$0xf]
    %v6824 = vld [vmem:[#allocation23 + $0x18] sm:$0xf]
    %v6825 = vld [vmem:[#allocation23 + $0x1c] sm:$0xf]
    %v6826 = vld [vmem:[#allocation23 + $0x20] sm:$0xf]
    %v6827 = vld [vmem:[#allocation23 + $0x24] sm:$0xf]
    %v6828 = vld [vmem:[#allocation23 + $0x28] sm:$0xf]
    %v6829 = vld [vmem:[#allocation23 + $0x2c] sm:$0xf]
    %v6830 = vld [vmem:[#allocation23 + $0x30] sm:$0xf]
    %v6831 = vld [vmem:[#allocation23 + $0x34] sm:$0xf]
    %v6832 = vld [vmem:[#allocation23 + $0x38] sm:$0xf]
    %v6833 = vld [vmem:[#allocation23 + $0x3c] sm:$0xf]
    %v6834 = vld [vmem:[#allocation23 + $0x40] sm:$0xf]
    %v6835 = vld [vmem:[#allocation23 + $0x44] sm:$0xf]
    %v6836 = vld [vmem:[#allocation23 + $0x48] sm:$0xf]
    %v6837 = vld [vmem:[#allocation23 + $0x4c] sm:$0xf]
    %v6838 = vld [vmem:[#allocation23 + $0x50] sm:$0xf]
    %v6839 = vld [vmem:[#allocation23 + $0x54] sm:$0xf]
    %v6840 = vld [vmem:[#allocation23 + $0x58] sm:$0xf]
    %v6841 = vld [vmem:[#allocation23 + $0x5c] sm:$0xf]
    %v6842 = vld [vmem:[#allocation23 + $0x60] sm:$0xf]
    %v6843 = vld [vmem:[#allocation23 + $0x64] sm:$0xf]
    %v6844 = vld [vmem:[#allocation23 + $0x68] sm:$0xf]
    %v6845 = vld [vmem:[#allocation23 + $0x6c] sm:$0xf]
    %v6846 = vld [vmem:[#allocation23 + $0x70] sm:$0xf]
    %v6847 = vld [vmem:[#allocation23 + $0x74] sm:$0xf]
    %v6848 = vld [vmem:[#allocation23 + $0x78] sm:$0xf]
    %v6849 = vld [vmem:[#allocation23 + $0x7c] sm:$0xf]
    %v6850 = vld [vmem:[#allocation23 + $0x80] sm:$0xf]
    %v6851 = vld [vmem:[#allocation23 + $0x84] sm:$0xf]
    %v6852 = vld [vmem:[#allocation23 + $0x88] sm:$0xf]
    %v6853 = vld [vmem:[#allocation23 + $0x8c] sm:$0xf]
    %v6854 = vld [vmem:[#allocation23 + $0x90] sm:$0xf]
    %v6855 = vld [vmem:[#allocation23 + $0x94] sm:$0xf]
    %v6856 = vld [vmem:[#allocation23 + $0x98] sm:$0xf]
    %v6857 = vld [vmem:[#allocation23 + $0x9c] sm:$0xf]
    %v6858 = vld [vmem:[#allocation23 + $0xa0] sm:$0xf]
    %v6859 = vld [vmem:[#allocation23 + $0xa4] sm:$0xf]
    %v6860 = vld [vmem:[#allocation23 + $0xa8] sm:$0xf]
    %v6861 = vld [vmem:[#allocation23 + $0xac] sm:$0xf]
    %v6862 = vld [vmem:[#allocation23 + $0xb0] sm:$0xf]
    %v6863 = vld [vmem:[#allocation23 + $0xb4] sm:$0xf]
    %v6864 = vld [vmem:[#allocation23 + $0xb8] sm:$0xf]
    %v6865 = vld [vmem:[#allocation23 + $0xbc] sm:$0xf]
    %v6866 = vld [vmem:[#allocation23 + $0xc0] sm:$0xf]
    %v6867 = vld [vmem:[#allocation23 + $0xc4] sm:$0xf]
    %v6868 = vld [vmem:[#allocation23 + $0xc8] sm:$0xf]
    %v6869 = vld [vmem:[#allocation23 + $0xcc] sm:$0xf]
    %v6870 = vld [vmem:[#allocation23 + $0xd0] sm:$0xf]
    %v6871 = vld [vmem:[#allocation23 + $0xd4] sm:$0xf]
    %v6872 = vld [vmem:[#allocation23 + $0xd8] sm:$0xf]
    %v6873 = vld [vmem:[#allocation23 + $0xdc] sm:$0xf]
    %v6874 = vld [vmem:[#allocation23 + $0xe0] sm:$0xf]
    %v6875 = vld [vmem:[#allocation23 + $0xe4] sm:$0xf]
    %v6876 = vld [vmem:[#allocation23 + $0xe8] sm:$0xf]
    %v6877 = vld [vmem:[#allocation23 + $0xec] sm:$0xf]
    %v6878 = vld [vmem:[#allocation23 + $0xf0] sm:$0xf]
    %v6879 = vld [vmem:[#allocation23 + $0xf4] sm:$0xf]
    %v6880 = vld [vmem:[#allocation23 + $0xf8] sm:$0xf]
    %v6881 = vld [vmem:[#allocation23 + $0xfc] sm:$0xf]
    %v6882 = vld [vmem:[#allocation23 + $0x100] sm:$0xf]
    %v6883 = vld [vmem:[#allocation23 + $0x104] sm:$0xf]
    %v6884 = vld [vmem:[#allocation23 + $0x108] sm:$0xf]
    %v6885 = vld [vmem:[#allocation23 + $0x10c] sm:$0xf]
    %v6886 = vld [vmem:[#allocation23 + $0x110] sm:$0xf]
    %v6887 = vld [vmem:[#allocation23 + $0x114] sm:$0xf]
    %v6888 = vld [vmem:[#allocation23 + $0x118] sm:$0xf]
    %v6889 = vld [vmem:[#allocation23 + $0x11c] sm:$0xf]
    %v6890 = vld [vmem:[#allocation23 + $0x120] sm:$0xf]
    %v6891 = vld [vmem:[#allocation23 + $0x124] sm:$0xf]
    %v6892 = vld [vmem:[#allocation23 + $0x128] sm:$0xf]
    %v6893 = vld [vmem:[#allocation23 + $0x12c] sm:$0xf]
    %v6894 = vld [vmem:[#allocation23 + $0x130] sm:$0xf]
    %v6895 = vld [vmem:[#allocation23 + $0x134] sm:$0xf]
    %v6896 = vld [vmem:[#allocation23 + $0x138] sm:$0xf]
    %v6897 = vld [vmem:[#allocation23 + $0x13c] sm:$0xf]
    %v6898 = vld [vmem:[#allocation23 + $0x140] sm:$0xf]
    %v6899 = vld [vmem:[#allocation23 + $0x144] sm:$0xf]
    %v6900 = vld [vmem:[#allocation23 + $0x148] sm:$0xf]
    %v6901 = vld [vmem:[#allocation23 + $0x14c] sm:$0xf]
    %v6902 = vld [vmem:[#allocation23 + $0x150] sm:$0xf]
    %v6903 = vld [vmem:[#allocation23 + $0x154] sm:$0xf]
    %v6904 = vld [vmem:[#allocation23 + $0x158] sm:$0xf]
    %v6905 = vld [vmem:[#allocation23 + $0x15c] sm:$0xf]
    %v6906 = vld [vmem:[#allocation23 + $0x160] sm:$0xf]
    %v6907 = vld [vmem:[#allocation23 + $0x164] sm:$0xf]
    %v6908 = vld [vmem:[#allocation23 + $0x168] sm:$0xf]
    %v6909 = vld [vmem:[#allocation23 + $0x16c] sm:$0xf]
    %v6910 = vld [vmem:[#allocation23 + $0x170] sm:$0xf]
    %v6911 = vld [vmem:[#allocation23 + $0x174] sm:$0xf]
    %v6912 = vld [vmem:[#allocation23 + $0x178] sm:$0xf]
    %v6913 = vld [vmem:[#allocation23 + $0x17c] sm:$0xf]
    %v6914 = vld [vmem:[#allocation24] sm:$0x1]
    %v6916 = vlaneseq
    %v6917 = vshrl.u32 %v6916, 7
    %v6918 = vsub.s32 0, %v6917
    %v6919 = vrot.slane %v6914, %v6918
    %v7017 = vunpack.c.l.b16 %v6818
    %v7018 = vunpack.c.l.b16 %v6819
    %v7019 = vunpack.c.l.b16 %v6820
    %v7020 = vunpack.c.l.b16 %v6821
    %v7021 = vunpack.c.l.b16 %v6822
    %v7022 = vunpack.c.l.b16 %v6823
    %v7023 = vunpack.c.l.b16 %v6824
    %v7024 = vunpack.c.l.b16 %v6825
    %v7025 = vunpack.c.l.b16 %v6826
    %v7026 = vunpack.c.l.b16 %v6827
    %v7027 = vunpack.c.l.b16 %v6828
    %v7028 = vunpack.c.l.b16 %v6829
    %v7029 = vunpack.c.l.b16 %v6830
    %v7030 = vunpack.c.l.b16 %v6831
    %v7031 = vunpack.c.l.b16 %v6832
    %v7032 = vunpack.c.l.b16 %v6833
    %v7033 = vunpack.c.l.b16 %v6834
    %v7034 = vunpack.c.l.b16 %v6835
    %v7035 = vunpack.c.l.b16 %v6836
    %v7036 = vunpack.c.l.b16 %v6837
    %v7037 = vunpack.c.l.b16 %v6838
    %v7038 = vunpack.c.l.b16 %v6839
    %v7039 = vunpack.c.l.b16 %v6840
    %v7040 = vunpack.c.l.b16 %v6841
    %v7041 = vunpack.c.l.b16 %v6842
    %v7042 = vunpack.c.l.b16 %v6843
    %v7043 = vunpack.c.l.b16 %v6844
    %v7044 = vunpack.c.l.b16 %v6845
    %v7045 = vunpack.c.l.b16 %v6846
    %v7046 = vunpack.c.l.b16 %v6847
    %v7047 = vunpack.c.l.b16 %v6848
    %v7048 = vunpack.c.l.b16 %v6849
    %v7049 = vunpack.c.l.b16 %v6850
    %v7050 = vunpack.c.l.b16 %v6851
    %v7051 = vunpack.c.l.b16 %v6852
    %v7052 = vunpack.c.l.b16 %v6853
    %v7053 = vunpack.c.l.b16 %v6854
    %v7054 = vunpack.c.l.b16 %v6855
    %v7055 = vunpack.c.l.b16 %v6856
    %v7056 = vunpack.c.l.b16 %v6857
    %v7057 = vunpack.c.l.b16 %v6858
    %v7058 = vunpack.c.l.b16 %v6859
    %v7059 = vunpack.c.l.b16 %v6860
    %v7060 = vunpack.c.l.b16 %v6861
    %v7061 = vunpack.c.l.b16 %v6862
    %v7062 = vunpack.c.l.b16 %v6863
    %v7063 = vunpack.c.l.b16 %v6864
    %v7064 = vunpack.c.l.b16 %v6865
    %v7065 = vunpack.c.l.b16 %v6866
    %v7066 = vunpack.c.l.b16 %v6867
    %v7067 = vunpack.c.l.b16 %v6868
    %v7068 = vunpack.c.l.b16 %v6869
    %v7069 = vunpack.c.l.b16 %v6870
    %v7070 = vunpack.c.l.b16 %v6871
    %v7071 = vunpack.c.l.b16 %v6872
    %v7072 = vunpack.c.l.b16 %v6873
    %v7073 = vunpack.c.l.b16 %v6874
    %v7074 = vunpack.c.l.b16 %v6875
    %v7075 = vunpack.c.l.b16 %v6876
    %v7076 = vunpack.c.l.b16 %v6877
    %v7077 = vunpack.c.l.b16 %v6878
    %v7078 = vunpack.c.l.b16 %v6879
    %v7079 = vunpack.c.l.b16 %v6880
    %v7080 = vunpack.c.l.b16 %v6881
    %v7081 = vunpack.c.l.b16 %v6882
    %v7082 = vunpack.c.l.b16 %v6883
    %v7083 = vunpack.c.l.b16 %v6884
    %v7084 = vunpack.c.l.b16 %v6885
    %v7085 = vunpack.c.l.b16 %v6886
    %v7086 = vunpack.c.l.b16 %v6887
    %v7087 = vunpack.c.l.b16 %v6888
    %v7088 = vunpack.c.l.b16 %v6889
    %v7089 = vunpack.c.l.b16 %v6890
    %v7090 = vunpack.c.l.b16 %v6891
    %v7091 = vunpack.c.l.b16 %v6892
    %v7092 = vunpack.c.l.b16 %v6893
    %v7093 = vunpack.c.l.b16 %v6894
    %v7094 = vunpack.c.l.b16 %v6895
    %v7095 = vunpack.c.l.b16 %v6896
    %v7096 = vunpack.c.l.b16 %v6897
    %v7097 = vunpack.c.l.b16 %v6898
    %v7098 = vunpack.c.l.b16 %v6899
    %v7099 = vunpack.c.l.b16 %v6900
    %v7100 = vunpack.c.l.b16 %v6901
    %v7101 = vunpack.c.l.b16 %v6902
    %v7102 = vunpack.c.l.b16 %v6903
    %v7103 = vunpack.c.l.b16 %v6904
    %v7104 = vunpack.c.l.b16 %v6905
    %v7105 = vunpack.c.l.b16 %v6906
    %v7106 = vunpack.c.l.b16 %v6907
    %v7107 = vunpack.c.l.b16 %v6908
    %v7108 = vunpack.c.l.b16 %v6909
    %v7109 = vunpack.c.l.b16 %v6910
    %v7110 = vunpack.c.l.b16 %v6911
    %v7111 = vunpack.c.l.b16 %v6912
    %v7112 = vunpack.c.l.b16 %v6913
    %v7113 = vpack.c.b16 %v7018, %v7017
    %v7114 = vpack.c.b16 %v7020, %v7019
    %v7115 = vpack.c.b16 %v7022, %v7021
    %v7116 = vpack.c.b16 %v7024, %v7023
    %v7117 = vpack.c.b16 %v7026, %v7025
    %v7118 = vpack.c.b16 %v7028, %v7027
    %v7119 = vpack.c.b16 %v7030, %v7029
    %v7120 = vpack.c.b16 %v7032, %v7031
    %v7121 = vpack.c.b16 %v7034, %v7033
    %v7122 = vpack.c.b16 %v7036, %v7035
    %v7123 = vpack.c.b16 %v7038, %v7037
    %v7124 = vpack.c.b16 %v7040, %v7039
    %v7125 = vpack.c.b16 %v7042, %v7041
    %v7126 = vpack.c.b16 %v7044, %v7043
    %v7127 = vpack.c.b16 %v7046, %v7045
    %v7128 = vpack.c.b16 %v7048, %v7047
    %v7129 = vpack.c.b16 %v7050, %v7049
    %v7130 = vpack.c.b16 %v7052, %v7051
    %v7131 = vpack.c.b16 %v7054, %v7053
    %v7132 = vpack.c.b16 %v7056, %v7055
    %v7133 = vpack.c.b16 %v7058, %v7057
    %v7134 = vpack.c.b16 %v7060, %v7059
    %v7135 = vpack.c.b16 %v7062, %v7061
    %v7136 = vpack.c.b16 %v7064, %v7063
    %v7137 = vpack.c.b16 %v7066, %v7065
    %v7138 = vpack.c.b16 %v7068, %v7067
    %v7139 = vpack.c.b16 %v7070, %v7069
    %v7140 = vpack.c.b16 %v7072, %v7071
    %v7141 = vpack.c.b16 %v7074, %v7073
    %v7142 = vpack.c.b16 %v7076, %v7075
    %v7143 = vpack.c.b16 %v7078, %v7077
    %v7144 = vpack.c.b16 %v7080, %v7079
    %v7145 = vpack.c.b16 %v7082, %v7081
    %v7146 = vpack.c.b16 %v7084, %v7083
    %v7147 = vpack.c.b16 %v7086, %v7085
    %v7148 = vpack.c.b16 %v7088, %v7087
    %v7149 = vpack.c.b16 %v7090, %v7089
    %v7150 = vpack.c.b16 %v7092, %v7091
    %v7151 = vpack.c.b16 %v7094, %v7093
    %v7152 = vpack.c.b16 %v7096, %v7095
    %v7153 = vpack.c.b16 %v7098, %v7097
    %v7154 = vpack.c.b16 %v7100, %v7099
    %v7155 = vpack.c.b16 %v7102, %v7101
    %v7156 = vpack.c.b16 %v7104, %v7103
    %v7157 = vpack.c.b16 %v7106, %v7105
    %v7158 = vpack.c.b16 %v7108, %v7107
    %v7159 = vpack.c.b16 %v7110, %v7109
    %v7160 = vpack.c.b16 %v7112, %v7111
    %7209 = vmatprep.subr.bf16.mxu0 0
    %7210 = vmatpush1.bf16.msra.mxu0 %v7113
    %7211 = vmatprep.subr.bf16.mxu0 0
    %7212 = vmatpush1.bf16.msra.mxu0 %v7114
    %7213 = vmatprep.subr.bf16.mxu0 0
    %7214 = vmatpush1.bf16.msra.mxu0 %v7115
    %7215 = vmatprep.subr.bf16.mxu0 0
    %7216 = vmatpush1.bf16.msra.mxu0 %v7116
    %7217 = vmatprep.subr.bf16.mxu0 0
    %7218 = vmatpush1.bf16.msra.mxu0 %v7117
    %7219 = vmatprep.subr.bf16.mxu0 0
    %7220 = vmatpush1.bf16.msra.mxu0 %v7118
    %7221 = vmatprep.subr.bf16.mxu0 0
    %7222 = vmatpush1.bf16.msra.mxu0 %v7119
    %7223 = vmatprep.subr.bf16.mxu0 0
    %7224 = vmatpush1.bf16.msra.mxu0 %v7120
    %7225 = vmatprep.subr.bf16.mxu0 0
    %7226 = vmatpush1.bf16.msra.mxu0 %v7121
    %7227 = vmatprep.subr.bf16.mxu0 0
    %7228 = vmatpush1.bf16.msra.mxu0 %v7122
    %7229 = vmatprep.subr.bf16.mxu0 0
    %7230 = vmatpush1.bf16.msra.mxu0 %v7123
    %7231 = vmatprep.subr.bf16.mxu0 0
    %7232 = vmatpush1.bf16.msra.mxu0 %v7124
    %7233 = vmatprep.subr.bf16.mxu0 0
    %7234 = vmatpush1.bf16.msra.mxu0 %v7125
    %7235 = vmatprep.subr.bf16.mxu0 0
    %7236 = vmatpush1.bf16.msra.mxu0 %v7126
    %7237 = vmatprep.subr.bf16.mxu0 0
    %7238 = vmatpush1.bf16.msra.mxu0 %v7127
    %7239 = vmatprep.subr.bf16.mxu0 0
    %7240 = vmatpush1.bf16.msra.mxu0 %v7128
    %7241 = vmatprep.mubr.bf16.mxu0 %v6813
    %7242 = vmatmul.mubr.bf16.gmra.mrb[0].mxu0 %v6812
    %v7243 = vpop.f32.mrb[0].mxu0
    %v7244 = vadd.f32 %v6919, %v7243
    %v7245 = vpop.f32.mrb[0].mxu0
    %v7246 = vpop.f32.mrb[0].mxu0
    %v7247 = vadd.f32 %v6919, %v7246
    %v7248 = vpop.f32.mrb[0].mxu0
    %7249 = vdwg.mxu0
    %7250 = vmatprep.subr.bf16.mxu0 0
    %7251 = vmatpush1.bf16.msra.mxu0 %v7129
    %7252 = vmatprep.subr.bf16.mxu0 0
    %7253 = vmatpush1.bf16.msra.mxu0 %v7130
    %7254 = vmatprep.subr.bf16.mxu0 0
    %7255 = vmatpush1.bf16.msra.mxu0 %v7131
    %7256 = vmatprep.subr.bf16.mxu0 0
    %7257 = vmatpush1.bf16.msra.mxu0 %v7132
    %7258 = vmatprep.subr.bf16.mxu0 0
    %7259 = vmatpush1.bf16.msra.mxu0 %v7133
    %7260 = vmatprep.subr.bf16.mxu0 0
    %7261 = vmatpush1.bf16.msra.mxu0 %v7134
    %7262 = vmatprep.subr.bf16.mxu0 0
    %7263 = vmatpush1.bf16.msra.mxu0 %v7135
    %7264 = vmatprep.subr.bf16.mxu0 0
    %7265 = vmatpush1.bf16.msra.mxu0 %v7136
    %7266 = vmatprep.subr.bf16.mxu0 0
    %7267 = vmatpush1.bf16.msra.mxu0 %v7137
    %7268 = vmatprep.subr.bf16.mxu0 0
    %7269 = vmatpush1.bf16.msra.mxu0 %v7138
    %7270 = vmatprep.subr.bf16.mxu0 0
    %7271 = vmatpush1.bf16.msra.mxu0 %v7139
    %7272 = vmatprep.subr.bf16.mxu0 0
    %7273 = vmatpush1.bf16.msra.mxu0 %v7140
    %7274 = vmatprep.subr.bf16.mxu0 0
    %7275 = vmatpush1.bf16.msra.mxu0 %v7141
    %7276 = vmatprep.subr.bf16.mxu0 0
    %7277 = vmatpush1.bf16.msra.mxu0 %v7142
    %7278 = vmatprep.subr.bf16.mxu0 0
    %7279 = vmatpush1.bf16.msra.mxu0 %v7143
    %7280 = vmatprep.subr.bf16.mxu0 0
    %7281 = vmatpush1.bf16.msra.mxu0 %v7144
    %7282 = vmatprep.mubr.bf16.mxu0 %v6815
    %7283 = vmatmul.mubr.bf16.gmra.mrb[0].mxu0 %v6814
    %v7284 = vpop.f32.mrb[0].mxu0
    %v7285 = vadd.f32 %v7244, %v7284
    %v7286 = vpop.f32.mrb[0].mxu0
    %v7287 = vpop.f32.mrb[0].mxu0
    %v7288 = vadd.f32 %v7247, %v7287
    %v7289 = vpop.f32.mrb[0].mxu0
    %7290 = vdwg.mxu0
    %7291 = vmatprep.subr.bf16.mxu0 0
    %7292 = vmatpush1.bf16.msra.mxu0 %v7145
    %7293 = vmatprep.subr.bf16.mxu0 0
    %7294 = vmatpush1.bf16.msra.mxu0 %v7146
    %7295 = vmatprep.subr.bf16.mxu0 0
    %7296 = vmatpush1.bf16.msra.mxu0 %v7147
    %7297 = vmatprep.subr.bf16.mxu0 0
    %7298 = vmatpush1.bf16.msra.mxu0 %v7148
    %7299 = vmatprep.subr.bf16.mxu0 0
    %7300 = vmatpush1.bf16.msra.mxu0 %v7149
    %7301 = vmatprep.subr.bf16.mxu0 0
    %7302 = vmatpush1.bf16.msra.mxu0 %v7150
    %7303 = vmatprep.subr.bf16.mxu0 0
    %7304 = vmatpush1.bf16.msra.mxu0 %v7151
    %7305 = vmatprep.subr.bf16.mxu0 0
    %7306 = vmatpush1.bf16.msra.mxu0 %v7152
    %7307 = vmatprep.subr.bf16.mxu0 0
    %7308 = vmatpush1.bf16.msra.mxu0 %v7153
    %7309 = vmatprep.subr.bf16.mxu0 0
    %7310 = vmatpush1.bf16.msra.mxu0 %v7154
    %7311 = vmatprep.subr.bf16.mxu0 0
    %7312 = vmatpush1.bf16.msra.mxu0 %v7155
    %7313 = vmatprep.subr.bf16.mxu0 0
    %7314 = vmatpush1.bf16.msra.mxu0 %v7156
    %7315 = vmatprep.subr.bf16.mxu0 0
    %7316 = vmatpush1.bf16.msra.mxu0 %v7157
    %7317 = vmatprep.subr.bf16.mxu0 0
    %7318 = vmatpush1.bf16.msra.mxu0 %v7158
    %7319 = vmatprep.subr.bf16.mxu0 0
    %7320 = vmatpush1.bf16.msra.mxu0 %v7159
    %7321 = vmatprep.subr.bf16.mxu0 0
    %7322 = vmatpush1.bf16.msra.mxu0 %v7160
    %7323 = vmatprep.mubr.bf16.mxu0 %v6817
    %7324 = vmatmul.mubr.bf16.gmra.mrb[0].mxu0 %v6816
    %v7325 = vpop.f32.mrb[0].mxu0
    %v7326 = vadd.f32 %v7285, %v7325
    %v7327 = vpop.f32.mrb[0].mxu0
    %v7328 = vpop.f32.mrb[0].mxu0
    %v7329 = vadd.f32 %v7288, %v7328
    %v7330 = vpop.f32.mrb[0].mxu0
    %7331 = vdwg.mxu0
    %v7332 = vtanh.pop %v7326
    %v7333 = vtanh.pop %v7329
    %7334 = vst [vmem:[#allocation26] sm:$0xff] %v7332
    %7335 = vst [vmem:[#allocation26 + $0x8] sm:$0xff] %v7333
    %7336 = vst [vmem:[#allocation27] sm:$0xff] %v3873
    %7337 = vst [vmem:[#allocation27 + $0x10] sm:$0xff] %v3877
    %7338 = vst [vmem:[#allocation27 + $0x8] sm:$0xff] %v3886
    %7339 = vst [vmem:[#allocation27 + $0x18] sm:$0xff] %v3888
    // Predicated region
    $region114: #{tpu_custom_call.1} parent=1 // pred_check
      _
    $region115: #{tpu_custom_call.1} parent=1 // pred_check_branch
      %7341 = sbr.rel (0) target = $region117
    $region116: #{tpu_custom_call.1} parent=1 // pred_region
      %s7343 = ssub.s32 256, 256
      %7344 = vsyncadd [#allocation5], %s7343
      %s7345 = sshll.u32 [#allocation26], 4
      %s7346 = int_to_ptr.vmem [resolvable:$true] %s7345
      %7351 = dma.vmem_to_hbm [thread:$0]  %s7346, 256, %s14, [#allocation5], 128, 128, 8
    $region117: #{tpu_custom_call.1} parent=1 // pred_fallthru
      _
    // Predicated region
    $region118: #{tpu_custom_call.1} parent=1 // pred_check
      _
    $region119: #{tpu_custom_call.1} parent=1 // pred_check_branch
      %7353 = sbr.rel (0) target = $region121
    $region120: #{tpu_custom_call.1} parent=1 // pred_region
      %s7355 = ssub.s32 512, 512
      %7356 = vsyncadd [#allocation28], %s7355
      %s7357 = sshll.u32 [#allocation27], 4
      %s7358 = int_to_ptr.vmem [resolvable:$true] %s7357
      %7363 = dma.vmem_to_hbm [thread:$0]  %s7358, 512, %s15, [#allocation28], 256, 256, 16
    $region121: #{tpu_custom_call.1} parent=1 // pred_fallthru
      _
    // Predicated region
    $region122: #{tpu_custom_call.1} parent=1 // pred_check
      _
    $region123: #{tpu_custom_call.1} parent=1 // pred_check_branch
      %7365 = sbr.rel (0) target = $region125
    $region124: #{tpu_custom_call.1} parent=1 // pred_region
      %7366 = dma.done [#allocation5], 256
    $region125: #{tpu_custom_call.1} parent=1 // pred_fallthru
      _
    // Predicated region
    $region126: #{tpu_custom_call.1} parent=1 // pred_check
      _
    $region127: #{tpu_custom_call.1} parent=1 // pred_check_branch
      %7368 = sbr.rel (0) target = $region129
    $region128: #{tpu_custom_call.1} parent=1 // pred_region
      %7369 = dma.done [#allocation28], 512
    $region129: #{tpu_custom_call.1} parent=1 // pred_fallthru
      _
    %7370 = vsyncpa [#allocation4], 1
    %7371 = vsyncpa [#allocation7], 1
    %7372 = vsyncpa [#allocation10], 1
    %7373 = vsyncpa [#allocation13], 1
    %7374 = vsyncpa [#allocation16], 1
    %7375 = vsyncpa [#allocation19], 1
    %7376 = vsyncpa [#allocation22], 1
    %7377 = vsyncpa [#allocation25], 1
    %7378 = vsyncpa [#allocation5], 1
    %7379 = vsyncpa [#allocation28], 1

</llo_original>
